<compile_context>
chip_gen: v7x
topology: tpu7x:2x2x1
jax: 0.10.0
libtpu: 0.0.40
codegen_flags: <defaults>
</compile_context>

<pallas_src>
import jax
import jax.numpy as jnp
import numpy as np
from jax import lax
from jax.experimental import pallas as pl
from jax.experimental.pallas import tpu as pltpu


def _make_lstm_kernel(B_pad, T, Hp):
    """Kernel closure. B_pad >= 8 (sublane aligned), Hp = 128 (per-gate lane width)."""

    def kernel(x_ref, wih_ref, whh_ref, b_ref, wfc_ref, bfc_ref, out_ref,
               xg_ref, hstore_ref, h_ref, c_ref):
        # Input-to-gate preactivations for all timesteps at once: (T*B_pad, 4*Hp).
        # Runs once, off the serial critical path.
        xg_ref[...] = (
            jnp.dot(x_ref[...], wih_ref[...], preferred_element_type=jnp.float32)
            + b_ref[...]
        )

        # h0 = c0 = 0 (matches torch.zeros(...) in the module's forward).
        h_ref[...] = jnp.zeros_like(h_ref)
        c_ref[...] = jnp.zeros_like(c_ref)

        def step(t, carry):
            row = pl.multiple_of(t * B_pad, 8)            # sublane-aligned offset
            h = h_ref[...]
            c = c_ref[...]
            # gates = x_t @ W_ih^T + b + h_{t-1} @ W_hh^T   -> (B_pad, 4*Hp)
            # TODO(synk): W_hh could be held resident in MXU weight regs via
            # pltpu.matmul_push_rhs/acc_lhs/pop; left to the compiler since the
            # unrolled loop reuses the same whh_ref every step.
            gates = xg_ref[pl.ds(row, B_pad), :] + jnp.dot(
                h, whh_ref[...], preferred_element_type=jnp.float32)
            # Lane-aligned gate slices (each a full 128-lane block). PyTorch order [i,f,g,o].
            i_g = jax.nn.sigmoid(gates[:, 0 * Hp:1 * Hp])
            f_g = jax.nn.sigmoid(gates[:, 1 * Hp:2 * Hp])
            g_g = jnp.tanh(gates[:, 2 * Hp:3 * Hp])
            o_g = jax.nn.sigmoid(gates[:, 3 * Hp:4 * Hp])
            c_new = f_g * c + i_g * g_g
            h_new = o_g * jnp.tanh(c_new)
            h_ref[...] = h_new
            c_ref[...] = c_new
            hstore_ref[pl.ds(row, B_pad), :] = h_new      # aligned, unmasked store
            return carry

        # T is small and static: fully unroll the recurrence for scheduler visibility.
        lax.fori_loop(0, T, step, None, unroll=True)

        # Final linear layer on every timestep's hidden state, lane-dense output
        # (Op = 128 padded columns; the real column 0 is sliced in the wrapper).
        out_ref[...] = (
            jnp.dot(hstore_ref[...], wfc_ref[...], preferred_element_type=jnp.float32)
            + bfc_ref[...]
        ).astype(out_ref.dtype)

    return kernel


def _pad_gate_lanes(m, H, Hp):
    """(..., 4*H) -> (..., 4*Hp): zero-pad each of the 4 gate blocks from H to Hp lanes."""
    lead = m.shape[:-1]
    m4 = m.reshape(lead + (4, H))
    pad = [(0, 0)] * (len(lead) + 1) + [(0, Hp - H)]
    return jnp.pad(m4, pad).reshape(lead + (4 * Hp,))


def lstm_forward(x, params):
    """x: (B, T, D_in) float32.  Returns (B, T, out_dim) float32."""
    B, T, Din = x.shape
    w_ih = jnp.asarray(params["w_ih"], jnp.float32)   # (4H, Din)  PyTorch layout
    w_hh = jnp.asarray(params["w_hh"], jnp.float32)   # (4H, H)
    b_ih = jnp.asarray(params["b_ih"], jnp.float32)   # (4H,)
    b_hh = jnp.asarray(params["b_hh"], jnp.float32)   # (4H,)
    w_fc = jnp.asarray(params["w_fc"], jnp.float32)   # (out, H)
    b_fc = jnp.asarray(params["b_fc"], jnp.float32)   # (out,)
    H = w_hh.shape[1]
    out_dim = w_fc.shape[0]

    # --- Padded layout (layout glue only) ---------------------------------
    Hp = 128                                   # per-gate lane width (full vreg lane dim)
    Op = 128                                   # lane-dense FC output width
    B_pad = max(8, -(-B // 8) * 8)             # sublane-aligned batch rows

    wih_t = _pad_gate_lanes(w_ih.T, H, Hp)                        # (Din, 4*Hp)
    whh_t = _pad_gate_lanes(w_hh.T, H, Hp)                        # (H,   4*Hp)
    whh_t = jnp.pad(whh_t, ((0, Hp - H), (0, 0)))                 # (Hp,  4*Hp)
    b = _pad_gate_lanes((b_ih + b_hh)[None, :], H, Hp)            # (1,   4*Hp)
    wfc_t = jnp.pad(w_fc.T, ((0, Hp - H), (0, Op - out_dim)))     # (Hp,  Op)
    bfc = jnp.pad(b_fc[None, :], ((0, 0), (0, Op - out_dim)))     # (1,   Op)

    # Time-major, batch zero-padded to B_pad, flattened to 2-D for the kernel.
    x_p = jnp.pad(x.astype(jnp.float32), ((0, B_pad - B), (0, 0), (0, 0)))
    x2d = jnp.transpose(x_p, (1, 0, 2)).reshape(T * B_pad, Din)

    kernel = _make_lstm_kernel(B_pad, T, Hp)
    vmem = pl.BlockSpec(memory_space=pltpu.MemorySpace.VMEM)

    flops = (2 * T * B_pad * Din * 4 * Hp            # input projection
             + T * 2 * B_pad * Hp * 4 * Hp           # recurrent matmuls
             + T * B_pad * Hp * 10                   # gate elementwise
             + 2 * T * B_pad * Hp * Op)              # final linear
    transcendentals = T * B_pad * Hp * 5             # 3 sigmoid + 2 tanh per step
    bytes_accessed = 4 * (x2d.size + wih_t.size + whh_t.size + b.size
                          + wfc_t.size + bfc.size + T * B_pad * Op)

    out2d = pl.pallas_call(
        kernel,
        out_shape=jax.ShapeDtypeStruct((T * B_pad, Op), jnp.float32),
        in_specs=[vmem] * 6,
        out_specs=vmem,
        scratch_shapes=[
            pltpu.VMEM((T * B_pad, 4 * Hp), jnp.float32),   # xg: input gate preactivations
            pltpu.VMEM((T * B_pad, Hp), jnp.float32),       # hstore: all hidden states
            pltpu.VMEM((B_pad, Hp), jnp.float32),           # h
            pltpu.VMEM((B_pad, Hp), jnp.float32),           # c
        ],
        cost_estimate=pl.CostEstimate(
            flops=flops, transcendentals=transcendentals,
            bytes_accessed=bytes_accessed),
    )(x2d, wih_t, whh_t, b, wfc_t, bfc)

    # Undo padding: back to (B, T, out_dim).
    out = jnp.transpose(out2d.reshape(T, B_pad, Op), (1, 0, 2))
    return out[:B, :, :out_dim]


def _reference_forward(x, params):
    """Pure-JAX reference of the PyTorch module's forward (for verification)."""
    B, T, Din = x.shape
    H = params["w_hh"].shape[1]
    wih_t = params["w_ih"].T
    whh_t = params["w_hh"].T
    b = (params["b_ih"] + params["b_hh"])[None, :]

    def step(carry, xt):
        h, c = carry
        gates = xt @ wih_t + b + h @ whh_t
        i = jax.nn.sigmoid(gates[:, 0 * H:1 * H])
        f = jax.nn.sigmoid(gates[:, 1 * H:2 * H])
        g = jnp.tanh(gates[:, 2 * H:3 * H])
        o = jax.nn.sigmoid(gates[:, 3 * H:4 * H])
        c = f * c + i * g
        h = o * jnp.tanh(c)
        return (h, c), h

    h0 = jnp.zeros((B, H), jnp.float32)
    c0 = jnp.zeros((B, H), jnp.float32)
    _, hs = lax.scan(step, (h0, c0), jnp.transpose(x, (1, 0, 2)))  # (T, B, H)
    out = jnp.transpose(hs, (1, 0, 2)) @ params["w_fc"].T + params["b_fc"][None, None, :]
    return out


def init_params(key, input_dim, hidden_dim, output_dim):
    # Deterministic init mimicking PyTorch's U(-1/sqrt(H), 1/sqrt(H)).
    k = 1.0 / jnp.sqrt(jnp.float32(hidden_dim))
    keys = jax.random.split(key, 6)
    u = lambda kk, shape: jax.random.uniform(kk, shape, jnp.float32, -k, k)
    return {
        "w_ih": u(keys[0], (4 * hidden_dim, input_dim)),
        "w_hh": u(keys[1], (4 * hidden_dim, hidden_dim)),
        "b_ih": u(keys[2], (4 * hidden_dim,)),
        "b_hh": u(keys[3], (4 * hidden_dim,)),
        "w_fc": u(keys[4], (output_dim, hidden_dim)),
        "b_fc": u(keys[5], (output_dim,)),
    }


if __name__ == "__main__":
    hidden_dim = 64
    input_dim = 7
    output_dim = 1
    B, T = 2, 8

    key = jax.random.PRNGKey(0)
    pkey, xkey = jax.random.split(key)
    params = init_params(pkey, input_dim, hidden_dim, output_dim)
    x = jax.random.normal(xkey, (B, T, input_dim), jnp.float32)

    out = lstm_forward(x, params)
    out = jax.block_until_ready(out)
    assert out.shape == (B, T, output_dim), out.shape

    ref = jax.block_until_ready(_reference_forward(x, params))
    np.testing.assert_allclose(np.asarray(out), np.asarray(ref), rtol=1e-5, atol=1e-5)

    print("KERNEL_OK")
</pallas_src>

<mosaic_0001>
module attributes {stable_mosaic.version = 11 : i64} {
  func.func @kernel(%arg0: memref<64x7xf32, #tpu.memory_space<vmem>>, %arg1: memref<7x512xf32, #tpu.memory_space<vmem>>, %arg2: memref<128x512xf32, #tpu.memory_space<vmem>>, %arg3: memref<1x512xf32, #tpu.memory_space<vmem>>, %arg4: memref<128x128xf32, #tpu.memory_space<vmem>>, %arg5: memref<1x128xf32, #tpu.memory_space<vmem>>, %arg6: memref<64x128xf32, #tpu.memory_space<vmem>>, %arg7: memref<64x512xf32, #tpu.memory_space<vmem>>, %arg8: memref<64x128xf32, #tpu.memory_space<vmem>>, %arg9: memref<8x128xf32, #tpu.memory_space<vmem>>, %arg10: memref<8x128xf32, #tpu.memory_space<vmem>>) attributes {dimension_semantics = [], scalar_prefetch = 0 : i64, scratch_operands = 4 : i64, tpu.core_type = #tpu.core_type<tc>} {
    %c0 = arith.constant 0 : index
    %c0_0 = arith.constant 0 : index
    %0 = vector.load %arg0[%c0, %c0_0] : memref<64x7xf32, #tpu.memory_space<vmem>>, vector<64x7xf32>
    %c0_1 = arith.constant 0 : index
    %c0_2 = arith.constant 0 : index
    %1 = vector.load %arg1[%c0_1, %c0_2] : memref<7x512xf32, #tpu.memory_space<vmem>>, vector<7x512xf32>
    %cst = arith.constant dense<0.000000e+00> : vector<64x512xf32>
    %2 = tpu.matmul %0, %1, %cst {dimension_numbers = #tpu.dot_dimension_numbers<[1], [0], [0], [1], [0, 0, 1, 1], [], []>} : vector<64x7xf32>, vector<7x512xf32>, vector<64x512xf32> -> vector<64x512xf32>
    %c0_3 = arith.constant 0 : index
    %c0_4 = arith.constant 0 : index
    %3 = vector.load %arg3[%c0_3, %c0_4] : memref<1x512xf32, #tpu.memory_space<vmem>>, vector<1x512xf32>
    %4 = vector.broadcast %3 : vector<1x512xf32> to vector<64x512xf32>
    %5 = arith.addf %2, %4 : vector<64x512xf32>
    %c0_5 = arith.constant 0 : index
    %c0_6 = arith.constant 0 : index
    %6 = vector.load %arg7[%c0_5, %c0_6] : memref<64x512xf32, #tpu.memory_space<vmem>>, vector<64x512xf32>
    tpu.vector_store %arg7[%c0_5, %c0_6], %5 {strides = array<i32>} : memref<64x512xf32, #tpu.memory_space<vmem>>, vector<64x512xf32>,
    %cst_7 = arith.constant 0.000000e+00 : f32
    %7 = vector.broadcast %cst_7 : f32 to vector<8x128xf32>
    %c0_8 = arith.constant 0 : index
    %c0_9 = arith.constant 0 : index
    %8 = vector.load %arg9[%c0_8, %c0_9] : memref<8x128xf32, #tpu.memory_space<vmem>>, vector<8x128xf32>
    tpu.vector_store %arg9[%c0_8, %c0_9], %7 {strides = array<i32>} : memref<8x128xf32, #tpu.memory_space<vmem>>, vector<8x128xf32>,
    %cst_10 = arith.constant 0.000000e+00 : f32
    %9 = vector.broadcast %cst_10 : f32 to vector<8x128xf32>
    %c0_11 = arith.constant 0 : index
    %c0_12 = arith.constant 0 : index
    %10 = vector.load %arg10[%c0_11, %c0_12] : memref<8x128xf32, #tpu.memory_space<vmem>>, vector<8x128xf32>
    tpu.vector_store %arg10[%c0_11, %c0_12], %9 {strides = array<i32>} : memref<8x128xf32, #tpu.memory_space<vmem>>, vector<8x128xf32>,
    %c0_i32 = arith.constant 0 : i32
    %c8_i32 = arith.constant 8 : i32
    %11 = arith.muli %c0_i32, %c8_i32 : i32
    %12 = tpu.assume_multiple %11, 8 : i32
    %c0_13 = arith.constant 0 : index
    %c0_14 = arith.constant 0 : index
    %13 = vector.load %arg9[%c0_13, %c0_14] : memref<8x128xf32, #tpu.memory_space<vmem>>, vector<8x128xf32>
    %c0_15 = arith.constant 0 : index
    %c0_16 = arith.constant 0 : index
    %14 = vector.load %arg10[%c0_15, %c0_16] : memref<8x128xf32, #tpu.memory_space<vmem>>, vector<8x128xf32>
    %15 = arith.index_cast %12 : i32 to index
    %c0_17 = arith.constant 0 : index
    %16 = vector.load %arg7[%15, %c0_17] : memref<64x512xf32, #tpu.memory_space<vmem>>, vector<8x512xf32>
    %c0_18 = arith.constant 0 : index
    %c0_19 = arith.constant 0 : index
    %17 = vector.load %arg2[%c0_18, %c0_19] : memref<128x512xf32, #tpu.memory_space<vmem>>, vector<128x512xf32>
    %cst_20 = arith.constant dense<0.000000e+00> : vector<8x512xf32>
    %18 = tpu.matmul %13, %17, %cst_20 {dimension_numbers = #tpu.dot_dimension_numbers<[1], [0], [0], [1], [0, 0, 1, 1], [], []>} : vector<8x128xf32>, vector<128x512xf32>, vector<8x512xf32> -> vector<8x512xf32>
    %19 = arith.addf %16, %18 : vector<8x512xf32>
    %20 = vector.extract_strided_slice %19 {offsets = [0, 0], sizes = [8, 128], strides = [1, 1]} : vector<8x512xf32> to vector<8x128xf32>
    %21 = arith.negf %20 : vector<8x128xf32>
    %22 = math.exp %21 : vector<8x128xf32>
    %cst_21 = arith.constant 1.000000e+00 : f32
    %23 = vector.broadcast %cst_21 : f32 to vector<8x128xf32>
    %24 = arith.addf %23, %22 : vector<8x128xf32>
    %25 = arith.divf %23, %24 : vector<8x128xf32>
    %26 = vector.extract_strided_slice %19 {offsets = [0, 128], sizes = [8, 128], strides = [1, 1]} : vector<8x512xf32> to vector<8x128xf32>
    %27 = arith.negf %26 : vector<8x128xf32>
    %28 = math.exp %27 : vector<8x128xf32>
    %cst_22 = arith.constant 1.000000e+00 : f32
    %29 = vector.broadcast %cst_22 : f32 to vector<8x128xf32>
    %30 = arith.addf %29, %28 : vector<8x128xf32>
    %31 = arith.divf %29, %30 : vector<8x128xf32>
    %32 = vector.extract_strided_slice %19 {offsets = [0, 256], sizes = [8, 128], strides = [1, 1]} : vector<8x512xf32> to vector<8x128xf32>
    %33 = math.tanh %32 : vector<8x128xf32>
    %34 = vector.extract_strided_slice %19 {offsets = [0, 384], sizes = [8, 128], strides = [1, 1]} : vector<8x512xf32> to vector<8x128xf32>
    %35 = arith.negf %34 : vector<8x128xf32>
    %36 = math.exp %35 : vector<8x128xf32>
    %cst_23 = arith.constant 1.000000e+00 : f32
    %37 = vector.broadcast %cst_23 : f32 to vector<8x128xf32>
    %38 = arith.addf %37, %36 : vector<8x128xf32>
    %39 = arith.divf %37, %38 : vector<8x128xf32>
    %40 = arith.mulf %31, %14 : vector<8x128xf32>
    %41 = arith.mulf %25, %33 : vector<8x128xf32>
    %42 = arith.addf %40, %41 : vector<8x128xf32>
    %43 = math.tanh %42 : vector<8x128xf32>
    %44 = arith.mulf %39, %43 : vector<8x128xf32>
    %c0_24 = arith.constant 0 : index
    %c0_25 = arith.constant 0 : index
    %45 = vector.load %arg9[%c0_24, %c0_25] : memref<8x128xf32, #tpu.memory_space<vmem>>, vector<8x128xf32>
    tpu.vector_store %arg9[%c0_24, %c0_25], %44 {strides = array<i32>} : memref<8x128xf32, #tpu.memory_space<vmem>>, vector<8x128xf32>,
    %c0_26 = arith.constant 0 : index
    %c0_27 = arith.constant 0 : index
    %46 = vector.load %arg10[%c0_26, %c0_27] : memref<8x128xf32, #tpu.memory_space<vmem>>, vector<8x128xf32>
    tpu.vector_store %arg10[%c0_26, %c0_27], %42 {strides = array<i32>} : memref<8x128xf32, #tpu.memory_space<vmem>>, vector<8x128xf32>,
    %47 = arith.index_cast %12 : i32 to index
    %c0_28 = arith.constant 0 : index
    %48 = vector.load %arg8[%47, %c0_28] : memref<64x128xf32, #tpu.memory_space<vmem>>, vector<8x128xf32>
    tpu.vector_store %arg8[%47, %c0_28], %44 {strides = array<i32>} : memref<64x128xf32, #tpu.memory_space<vmem>>, vector<8x128xf32>,
    %c1_i32 = arith.constant 1 : i32
    %c8_i32_29 = arith.constant 8 : i32
    %49 = arith.muli %c1_i32, %c8_i32_29 : i32
    %50 = tpu.assume_multiple %49, 8 : i32
    %c0_30 = arith.constant 0 : index
    %c0_31 = arith.constant 0 : index
    %51 = vector.load %arg9[%c0_30, %c0_31] : memref<8x128xf32, #tpu.memory_space<vmem>>, vector<8x128xf32>
    %c0_32 = arith.constant 0 : index
    %c0_33 = arith.constant 0 : index
    %52 = vector.load %arg10[%c0_32, %c0_33] : memref<8x128xf32, #tpu.memory_space<vmem>>, vector<8x128xf32>
    %53 = arith.index_cast %50 : i32 to index
    %c0_34 = arith.constant 0 : index
    %54 = vector.load %arg7[%53, %c0_34] : memref<64x512xf32, #tpu.memory_space<vmem>>, vector<8x512xf32>
    %c0_35 = arith.constant 0 : index
    %c0_36 = arith.constant 0 : index
    %55 = vector.load %arg2[%c0_35, %c0_36] : memref<128x512xf32, #tpu.memory_space<vmem>>, vector<128x512xf32>
    %cst_37 = arith.constant dense<0.000000e+00> : vector<8x512xf32>
    %56 = tpu.matmul %51, %55, %cst_37 {dimension_numbers = #tpu.dot_dimension_numbers<[1], [0], [0], [1], [0, 0, 1, 1], [], []>} : vector<8x128xf32>, vector<128x512xf32>, vector<8x512xf32> -> vector<8x512xf32>
    %57 = arith.addf %54, %56 : vector<8x512xf32>
    %58 = vector.extract_strided_slice %57 {offsets = [0, 0], sizes = [8, 128], strides = [1, 1]} : vector<8x512xf32> to vector<8x128xf32>
    %59 = arith.negf %58 : vector<8x128xf32>
    %60 = math.exp %59 : vector<8x128xf32>
    %cst_38 = arith.constant 1.000000e+00 : f32
    %61 = vector.broadcast %cst_38 : f32 to vector<8x128xf32>
    %62 = arith.addf %61, %60 : vector<8x128xf32>
    %63 = arith.divf %61, %62 : vector<8x128xf32>
    %64 = vector.extract_strided_slice %57 {offsets = [0, 128], sizes = [8, 128], strides = [1, 1]} : vector<8x512xf32> to vector<8x128xf32>
    %65 = arith.negf %64 : vector<8x128xf32>
    %66 = math.exp %65 : vector<8x128xf32>
    %cst_39 = arith.constant 1.000000e+00 : f32
    %67 = vector.broadcast %cst_39 : f32 to vector<8x128xf32>
    %68 = arith.addf %67, %66 : vector<8x128xf32>
    %69 = arith.divf %67, %68 : vector<8x128xf32>
    %70 = vector.extract_strided_slice %57 {offsets = [0, 256], sizes = [8, 128], strides = [1, 1]} : vector<8x512xf32> to vector<8x128xf32>
    %71 = math.tanh %70 : vector<8x128xf32>
    %72 = vector.extract_strided_slice %57 {offsets = [0, 384], sizes = [8, 128], strides = [1, 1]} : vector<8x512xf32> to vector<8x128xf32>
    %73 = arith.negf %72 : vector<8x128xf32>
    %74 = math.exp %73 : vector<8x128xf32>
    %cst_40 = arith.constant 1.000000e+00 : f32
    %75 = vector.broadcast %cst_40 : f32 to vector<8x128xf32>
    %76 = arith.addf %75, %74 : vector<8x128xf32>
    %77 = arith.divf %75, %76 : vector<8x128xf32>
    %78 = arith.mulf %69, %52 : vector<8x128xf32>
    %79 = arith.mulf %63, %71 : vector<8x128xf32>
    %80 = arith.addf %78, %79 : vector<8x128xf32>
    %81 = math.tanh %80 : vector<8x128xf32>
    %82 = arith.mulf %77, %81 : vector<8x128xf32>
    %c0_41 = arith.constant 0 : index
    %c0_42 = arith.constant 0 : index
    %83 = vector.load %arg9[%c0_41, %c0_42] : memref<8x128xf32, #tpu.memory_space<vmem>>, vector<8x128xf32>
    tpu.vector_store %arg9[%c0_41, %c0_42], %82 {strides = array<i32>} : memref<8x128xf32, #tpu.memory_space<vmem>>, vector<8x128xf32>,
    %c0_43 = arith.constant 0 : index
    %c0_44 = arith.constant 0 : index
    %84 = vector.load %arg10[%c0_43, %c0_44] : memref<8x128xf32, #tpu.memory_space<vmem>>, vector<8x128xf32>
    tpu.vector_store %arg10[%c0_43, %c0_44], %80 {strides = array<i32>} : memref<8x128xf32, #tpu.memory_space<vmem>>, vector<8x128xf32>,
    %85 = arith.index_cast %50 : i32 to index
    %c0_45 = arith.constant 0 : index
    %86 = vector.load %arg8[%85, %c0_45] : memref<64x128xf32, #tpu.memory_space<vmem>>, vector<8x128xf32>
    tpu.vector_store %arg8[%85, %c0_45], %82 {strides = array<i32>} : memref<64x128xf32, #tpu.memory_space<vmem>>, vector<8x128xf32>,
    %c2_i32 = arith.constant 2 : i32
    %c8_i32_46 = arith.constant 8 : i32
    %87 = arith.muli %c2_i32, %c8_i32_46 : i32
    %88 = tpu.assume_multiple %87, 8 : i32
    %c0_47 = arith.constant 0 : index
    %c0_48 = arith.constant 0 : index
    %89 = vector.load %arg9[%c0_47, %c0_48] : memref<8x128xf32, #tpu.memory_space<vmem>>, vector<8x128xf32>
    %c0_49 = arith.constant 0 : index
    %c0_50 = arith.constant 0 : index
    %90 = vector.load %arg10[%c0_49, %c0_50] : memref<8x128xf32, #tpu.memory_space<vmem>>, vector<8x128xf32>
    %91 = arith.index_cast %88 : i32 to index
    %c0_51 = arith.constant 0 : index
    %92 = vector.load %arg7[%91, %c0_51] : memref<64x512xf32, #tpu.memory_space<vmem>>, vector<8x512xf32>
    %c0_52 = arith.constant 0 : index
    %c0_53 = arith.constant 0 : index
    %93 = vector.load %arg2[%c0_52, %c0_53] : memref<128x512xf32, #tpu.memory_space<vmem>>, vector<128x512xf32>
    %cst_54 = arith.constant dense<0.000000e+00> : vector<8x512xf32>
    %94 = tpu.matmul %89, %93, %cst_54 {dimension_numbers = #tpu.dot_dimension_numbers<[1], [0], [0], [1], [0, 0, 1, 1], [], []>} : vector<8x128xf32>, vector<128x512xf32>, vector<8x512xf32> -> vector<8x512xf32>
    %95 = arith.addf %92, %94 : vector<8x512xf32>
    %96 = vector.extract_strided_slice %95 {offsets = [0, 0], sizes = [8, 128], strides = [1, 1]} : vector<8x512xf32> to vector<8x128xf32>
    %97 = arith.negf %96 : vector<8x128xf32>
    %98 = math.exp %97 : vector<8x128xf32>
    %cst_55 = arith.constant 1.000000e+00 : f32
    %99 = vector.broadcast %cst_55 : f32 to vector<8x128xf32>
    %100 = arith.addf %99, %98 : vector<8x128xf32>
    %101 = arith.divf %99, %100 : vector<8x128xf32>
    %102 = vector.extract_strided_slice %95 {offsets = [0, 128], sizes = [8, 128], strides = [1, 1]} : vector<8x512xf32> to vector<8x128xf32>
    %103 = arith.negf %102 : vector<8x128xf32>
    %104 = math.exp %103 : vector<8x128xf32>
    %cst_56 = arith.constant 1.000000e+00 : f32
    %105 = vector.broadcast %cst_56 : f32 to vector<8x128xf32>
    %106 = arith.addf %105, %104 : vector<8x128xf32>
    %107 = arith.divf %105, %106 : vector<8x128xf32>
    %108 = vector.extract_strided_slice %95 {offsets = [0, 256], sizes = [8, 128], strides = [1, 1]} : vector<8x512xf32> to vector<8x128xf32>
    %109 = math.tanh %108 : vector<8x128xf32>
    %110 = vector.extract_strided_slice %95 {offsets = [0, 384], sizes = [8, 128], strides = [1, 1]} : vector<8x512xf32> to vector<8x128xf32>
    %111 = arith.negf %110 : vector<8x128xf32>
    %112 = math.exp %111 : vector<8x128xf32>
    %cst_57 = arith.constant 1.000000e+00 : f32
    %113 = vector.broadcast %cst_57 : f32 to vector<8x128xf32>
    %114 = arith.addf %113, %112 : vector<8x128xf32>
    %115 = arith.divf %113, %114 : vector<8x128xf32>
    %116 = arith.mulf %107, %90 : vector<8x128xf32>
    %117 = arith.mulf %101, %109 : vector<8x128xf32>
    %118 = arith.addf %116, %117 : vector<8x128xf32>
    %119 = math.tanh %118 : vector<8x128xf32>
    %120 = arith.mulf %115, %119 : vector<8x128xf32>
    %c0_58 = arith.constant 0 : index
    %c0_59 = arith.constant 0 : index
    %121 = vector.load %arg9[%c0_58, %c0_59] : memref<8x128xf32, #tpu.memory_space<vmem>>, vector<8x128xf32>
    tpu.vector_store %arg9[%c0_58, %c0_59], %120 {strides = array<i32>} : memref<8x128xf32, #tpu.memory_space<vmem>>, vector<8x128xf32>,
    %c0_60 = arith.constant 0 : index
    %c0_61 = arith.constant 0 : index
    %122 = vector.load %arg10[%c0_60, %c0_61] : memref<8x128xf32, #tpu.memory_space<vmem>>, vector<8x128xf32>
    tpu.vector_store %arg10[%c0_60, %c0_61], %118 {strides = array<i32>} : memref<8x128xf32, #tpu.memory_space<vmem>>, vector<8x128xf32>,
    %123 = arith.index_cast %88 : i32 to index
    %c0_62 = arith.constant 0 : index
    %124 = vector.load %arg8[%123, %c0_62] : memref<64x128xf32, #tpu.memory_space<vmem>>, vector<8x128xf32>
    tpu.vector_store %arg8[%123, %c0_62], %120 {strides = array<i32>} : memref<64x128xf32, #tpu.memory_space<vmem>>, vector<8x128xf32>,
    %c3_i32 = arith.constant 3 : i32
    %c8_i32_63 = arith.constant 8 : i32
    %125 = arith.muli %c3_i32, %c8_i32_63 : i32
    %126 = tpu.assume_multiple %125, 8 : i32
    %c0_64 = arith.constant 0 : index
    %c0_65 = arith.constant 0 : index
    %127 = vector.load %arg9[%c0_64, %c0_65] : memref<8x128xf32, #tpu.memory_space<vmem>>, vector<8x128xf32>
    %c0_66 = arith.constant 0 : index
    %c0_67 = arith.constant 0 : index
    %128 = vector.load %arg10[%c0_66, %c0_67] : memref<8x128xf32, #tpu.memory_space<vmem>>, vector<8x128xf32>
    %129 = arith.index_cast %126 : i32 to index
    %c0_68 = arith.constant 0 : index
    %130 = vector.load %arg7[%129, %c0_68] : memref<64x512xf32, #tpu.memory_space<vmem>>, vector<8x512xf32>
    %c0_69 = arith.constant 0 : index
    %c0_70 = arith.constant 0 : index
    %131 = vector.load %arg2[%c0_69, %c0_70] : memref<128x512xf32, #tpu.memory_space<vmem>>, vector<128x512xf32>
    %cst_71 = arith.constant dense<0.000000e+00> : vector<8x512xf32>
    %132 = tpu.matmul %127, %131, %cst_71 {dimension_numbers = #tpu.dot_dimension_numbers<[1], [0], [0], [1], [0, 0, 1, 1], [], []>} : vector<8x128xf32>, vector<128x512xf32>, vector<8x512xf32> -> vector<8x512xf32>
    %133 = arith.addf %130, %132 : vector<8x512xf32>
    %134 = vector.extract_strided_slice %133 {offsets = [0, 0], sizes = [8, 128], strides = [1, 1]} : vector<8x512xf32> to vector<8x128xf32>
    %135 = arith.negf %134 : vector<8x128xf32>
    %136 = math.exp %135 : vector<8x128xf32>
    %cst_72 = arith.constant 1.000000e+00 : f32
    %137 = vector.broadcast %cst_72 : f32 to vector<8x128xf32>
    %138 = arith.addf %137, %136 : vector<8x128xf32>
    %139 = arith.divf %137, %138 : vector<8x128xf32>
    %140 = vector.extract_strided_slice %133 {offsets = [0, 128], sizes = [8, 128], strides = [1, 1]} : vector<8x512xf32> to vector<8x128xf32>
    %141 = arith.negf %140 : vector<8x128xf32>
    %142 = math.exp %141 : vector<8x128xf32>
    %cst_73 = arith.constant 1.000000e+00 : f32
    %143 = vector.broadcast %cst_73 : f32 to vector<8x128xf32>
    %144 = arith.addf %143, %142 : vector<8x128xf32>
    %145 = arith.divf %143, %144 : vector<8x128xf32>
    %146 = vector.extract_strided_slice %133 {offsets = [0, 256], sizes = [8, 128], strides = [1, 1]} : vector<8x512xf32> to vector<8x128xf32>
    %147 = math.tanh %146 : vector<8x128xf32>
    %148 = vector.extract_strided_slice %133 {offsets = [0, 384], sizes = [8, 128], strides = [1, 1]} : vector<8x512xf32> to vector<8x128xf32>
    %149 = arith.negf %148 : vector<8x128xf32>
    %150 = math.exp %149 : vector<8x128xf32>
    %cst_74 = arith.constant 1.000000e+00 : f32
    %151 = vector.broadcast %cst_74 : f32 to vector<8x128xf32>
    %152 = arith.addf %151, %150 : vector<8x128xf32>
    %153 = arith.divf %151, %152 : vector<8x128xf32>
    %154 = arith.mulf %145, %128 : vector<8x128xf32>
    %155 = arith.mulf %139, %147 : vector<8x128xf32>
    %156 = arith.addf %154, %155 : vector<8x128xf32>
    %157 = math.tanh %156 : vector<8x128xf32>
    %158 = arith.mulf %153, %157 : vector<8x128xf32>
    %c0_75 = arith.constant 0 : index
    %c0_76 = arith.constant 0 : index
    %159 = vector.load %arg9[%c0_75, %c0_76] : memref<8x128xf32, #tpu.memory_space<vmem>>, vector<8x128xf32>
    tpu.vector_store %arg9[%c0_75, %c0_76], %158 {strides = array<i32>} : memref<8x128xf32, #tpu.memory_space<vmem>>, vector<8x128xf32>,
    %c0_77 = arith.constant 0 : index
    %c0_78 = arith.constant 0 : index
    %160 = vector.load %arg10[%c0_77, %c0_78] : memref<8x128xf32, #tpu.memory_space<vmem>>, vector<8x128xf32>
    tpu.vector_store %arg10[%c0_77, %c0_78], %156 {strides = array<i32>} : memref<8x128xf32, #tpu.memory_space<vmem>>, vector<8x128xf32>,
    %161 = arith.index_cast %126 : i32 to index
    %c0_79 = arith.constant 0 : index
    %162 = vector.load %arg8[%161, %c0_79] : memref<64x128xf32, #tpu.memory_space<vmem>>, vector<8x128xf32>
    tpu.vector_store %arg8[%161, %c0_79], %158 {strides = array<i32>} : memref<64x128xf32, #tpu.memory_space<vmem>>, vector<8x128xf32>,
    %c4_i32 = arith.constant 4 : i32
    %c8_i32_80 = arith.constant 8 : i32
    %163 = arith.muli %c4_i32, %c8_i32_80 : i32
    %164 = tpu.assume_multiple %163, 8 : i32
    %c0_81 = arith.constant 0 : index
    %c0_82 = arith.constant 0 : index
    %165 = vector.load %arg9[%c0_81, %c0_82] : memref<8x128xf32, #tpu.memory_space<vmem>>, vector<8x128xf32>
    %c0_83 = arith.constant 0 : index
    %c0_84 = arith.constant 0 : index
    %166 = vector.load %arg10[%c0_83, %c0_84] : memref<8x128xf32, #tpu.memory_space<vmem>>, vector<8x128xf32>
    %167 = arith.index_cast %164 : i32 to index
    %c0_85 = arith.constant 0 : index
    %168 = vector.load %arg7[%167, %c0_85] : memref<64x512xf32, #tpu.memory_space<vmem>>, vector<8x512xf32>
    %c0_86 = arith.constant 0 : index
    %c0_87 = arith.constant 0 : index
    %169 = vector.load %arg2[%c0_86, %c0_87] : memref<128x512xf32, #tpu.memory_space<vmem>>, vector<128x512xf32>
    %cst_88 = arith.constant dense<0.000000e+00> : vector<8x512xf32>
    %170 = tpu.matmul %165, %169, %cst_88 {dimension_numbers = #tpu.dot_dimension_numbers<[1], [0], [0], [1], [0, 0, 1, 1], [], []>} : vector<8x128xf32>, vector<128x512xf32>, vector<8x512xf32> -> vector<8x512xf32>
    %171 = arith.addf %168, %170 : vector<8x512xf32>
    %172 = vector.extract_strided_slice %171 {offsets = [0, 0], sizes = [8, 128], strides = [1, 1]} : vector<8x512xf32> to vector<8x128xf32>
    %173 = arith.negf %172 : vector<8x128xf32>
    %174 = math.exp %173 : vector<8x128xf32>
    %cst_89 = arith.constant 1.000000e+00 : f32
    %175 = vector.broadcast %cst_89 : f32 to vector<8x128xf32>
    %176 = arith.addf %175, %174 : vector<8x128xf32>
    %177 = arith.divf %175, %176 : vector<8x128xf32>
    %178 = vector.extract_strided_slice %171 {offsets = [0, 128], sizes = [8, 128], strides = [1, 1]} : vector<8x512xf32> to vector<8x128xf32>
    %179 = arith.negf %178 : vector<8x128xf32>
    %180 = math.exp %179 : vector<8x128xf32>
    %cst_90 = arith.constant 1.000000e+00 : f32
    %181 = vector.broadcast %cst_90 : f32 to vector<8x128xf32>
    %182 = arith.addf %181, %180 : vector<8x128xf32>
    %183 = arith.divf %181, %182 : vector<8x128xf32>
    %184 = vector.extract_strided_slice %171 {offsets = [0, 256], sizes = [8, 128], strides = [1, 1]} : vector<8x512xf32> to vector<8x128xf32>
    %185 = math.tanh %184 : vector<8x128xf32>
    %186 = vector.extract_strided_slice %171 {offsets = [0, 384], sizes = [8, 128], strides = [1, 1]} : vector<8x512xf32> to vector<8x128xf32>
    %187 = arith.negf %186 : vector<8x128xf32>
    %188 = math.exp %187 : vector<8x128xf32>
    %cst_91 = arith.constant 1.000000e+00 : f32
    %189 = vector.broadcast %cst_91 : f32 to vector<8x128xf32>
    %190 = arith.addf %189, %188 : vector<8x128xf32>
    %191 = arith.divf %189, %190 : vector<8x128xf32>
    %192 = arith.mulf %183, %166 : vector<8x128xf32>
    %193 = arith.mulf %177, %185 : vector<8x128xf32>
    %194 = arith.addf %192, %193 : vector<8x128xf32>
    %195 = math.tanh %194 : vector<8x128xf32>
    %196 = arith.mulf %191, %195 : vector<8x128xf32>
    %c0_92 = arith.constant 0 : index
    %c0_93 = arith.constant 0 : index
    %197 = vector.load %arg9[%c0_92, %c0_93] : memref<8x128xf32, #tpu.memory_space<vmem>>, vector<8x128xf32>
    tpu.vector_store %arg9[%c0_92, %c0_93], %196 {strides = array<i32>} : memref<8x128xf32, #tpu.memory_space<vmem>>, vector<8x128xf32>,
    %c0_94 = arith.constant 0 : index
    %c0_95 = arith.constant 0 : index
    %198 = vector.load %arg10[%c0_94, %c0_95] : memref<8x128xf32, #tpu.memory_space<vmem>>, vector<8x128xf32>
    tpu.vector_store %arg10[%c0_94, %c0_95], %194 {strides = array<i32>} : memref<8x128xf32, #tpu.memory_space<vmem>>, vector<8x128xf32>,
    %199 = arith.index_cast %164 : i32 to index
    %c0_96 = arith.constant 0 : index
    %200 = vector.load %arg8[%199, %c0_96] : memref<64x128xf32, #tpu.memory_space<vmem>>, vector<8x128xf32>
    tpu.vector_store %arg8[%199, %c0_96], %196 {strides = array<i32>} : memref<64x128xf32, #tpu.memory_space<vmem>>, vector<8x128xf32>,
    %c5_i32 = arith.constant 5 : i32
    %c8_i32_97 = arith.constant 8 : i32
    %201 = arith.muli %c5_i32, %c8_i32_97 : i32
    %202 = tpu.assume_multiple %201, 8 : i32
    %c0_98 = arith.constant 0 : index
    %c0_99 = arith.constant 0 : index
    %203 = vector.load %arg9[%c0_98, %c0_99] : memref<8x128xf32, #tpu.memory_space<vmem>>, vector<8x128xf32>
    %c0_100 = arith.constant 0 : index
    %c0_101 = arith.constant 0 : index
    %204 = vector.load %arg10[%c0_100, %c0_101] : memref<8x128xf32, #tpu.memory_space<vmem>>, vector<8x128xf32>
    %205 = arith.index_cast %202 : i32 to index
    %c0_102 = arith.constant 0 : index
    %206 = vector.load %arg7[%205, %c0_102] : memref<64x512xf32, #tpu.memory_space<vmem>>, vector<8x512xf32>
    %c0_103 = arith.constant 0 : index
    %c0_104 = arith.constant 0 : index
    %207 = vector.load %arg2[%c0_103, %c0_104] : memref<128x512xf32, #tpu.memory_space<vmem>>, vector<128x512xf32>
    %cst_105 = arith.constant dense<0.000000e+00> : vector<8x512xf32>
    %208 = tpu.matmul %203, %207, %cst_105 {dimension_numbers = #tpu.dot_dimension_numbers<[1], [0], [0], [1], [0, 0, 1, 1], [], []>} : vector<8x128xf32>, vector<128x512xf32>, vector<8x512xf32> -> vector<8x512xf32>
    %209 = arith.addf %206, %208 : vector<8x512xf32>
    %210 = vector.extract_strided_slice %209 {offsets = [0, 0], sizes = [8, 128], strides = [1, 1]} : vector<8x512xf32> to vector<8x128xf32>
    %211 = arith.negf %210 : vector<8x128xf32>
    %212 = math.exp %211 : vector<8x128xf32>
    %cst_106 = arith.constant 1.000000e+00 : f32
    %213 = vector.broadcast %cst_106 : f32 to vector<8x128xf32>
    %214 = arith.addf %213, %212 : vector<8x128xf32>
    %215 = arith.divf %213, %214 : vector<8x128xf32>
    %216 = vector.extract_strided_slice %209 {offsets = [0, 128], sizes = [8, 128], strides = [1, 1]} : vector<8x512xf32> to vector<8x128xf32>
    %217 = arith.negf %216 : vector<8x128xf32>
    %218 = math.exp %217 : vector<8x128xf32>
    %cst_107 = arith.constant 1.000000e+00 : f32
    %219 = vector.broadcast %cst_107 : f32 to vector<8x128xf32>
    %220 = arith.addf %219, %218 : vector<8x128xf32>
    %221 = arith.divf %219, %220 : vector<8x128xf32>
    %222 = vector.extract_strided_slice %209 {offsets = [0, 256], sizes = [8, 128], strides = [1, 1]} : vector<8x512xf32> to vector<8x128xf32>
    %223 = math.tanh %222 : vector<8x128xf32>
    %224 = vector.extract_strided_slice %209 {offsets = [0, 384], sizes = [8, 128], strides = [1, 1]} : vector<8x512xf32> to vector<8x128xf32>
    %225 = arith.negf %224 : vector<8x128xf32>
    %226 = math.exp %225 : vector<8x128xf32>
    %cst_108 = arith.constant 1.000000e+00 : f32
    %227 = vector.broadcast %cst_108 : f32 to vector<8x128xf32>
    %228 = arith.addf %227, %226 : vector<8x128xf32>
    %229 = arith.divf %227, %228 : vector<8x128xf32>
    %230 = arith.mulf %221, %204 : vector<8x128xf32>
    %231 = arith.mulf %215, %223 : vector<8x128xf32>
    %232 = arith.addf %230, %231 : vector<8x128xf32>
    %233 = math.tanh %232 : vector<8x128xf32>
    %234 = arith.mulf %229, %233 : vector<8x128xf32>
    %c0_109 = arith.constant 0 : index
    %c0_110 = arith.constant 0 : index
    %235 = vector.load %arg9[%c0_109, %c0_110] : memref<8x128xf32, #tpu.memory_space<vmem>>, vector<8x128xf32>
    tpu.vector_store %arg9[%c0_109, %c0_110], %234 {strides = array<i32>} : memref<8x128xf32, #tpu.memory_space<vmem>>, vector<8x128xf32>,
    %c0_111 = arith.constant 0 : index
    %c0_112 = arith.constant 0 : index
    %236 = vector.load %arg10[%c0_111, %c0_112] : memref<8x128xf32, #tpu.memory_space<vmem>>, vector<8x128xf32>
    tpu.vector_store %arg10[%c0_111, %c0_112], %232 {strides = array<i32>} : memref<8x128xf32, #tpu.memory_space<vmem>>, vector<8x128xf32>,
    %237 = arith.index_cast %202 : i32 to index
    %c0_113 = arith.constant 0 : index
    %238 = vector.load %arg8[%237, %c0_113] : memref<64x128xf32, #tpu.memory_space<vmem>>, vector<8x128xf32>
    tpu.vector_store %arg8[%237, %c0_113], %234 {strides = array<i32>} : memref<64x128xf32, #tpu.memory_space<vmem>>, vector<8x128xf32>,
    %c6_i32 = arith.constant 6 : i32
    %c8_i32_114 = arith.constant 8 : i32
    %239 = arith.muli %c6_i32, %c8_i32_114 : i32
    %240 = tpu.assume_multiple %239, 8 : i32
    %c0_115 = arith.constant 0 : index
    %c0_116 = arith.constant 0 : index
    %241 = vector.load %arg9[%c0_115, %c0_116] : memref<8x128xf32, #tpu.memory_space<vmem>>, vector<8x128xf32>
    %c0_117 = arith.constant 0 : index
    %c0_118 = arith.constant 0 : index
    %242 = vector.load %arg10[%c0_117, %c0_118] : memref<8x128xf32, #tpu.memory_space<vmem>>, vector<8x128xf32>
    %243 = arith.index_cast %240 : i32 to index
    %c0_119 = arith.constant 0 : index
    %244 = vector.load %arg7[%243, %c0_119] : memref<64x512xf32, #tpu.memory_space<vmem>>, vector<8x512xf32>
    %c0_120 = arith.constant 0 : index
    %c0_121 = arith.constant 0 : index
    %245 = vector.load %arg2[%c0_120, %c0_121] : memref<128x512xf32, #tpu.memory_space<vmem>>, vector<128x512xf32>
    %cst_122 = arith.constant dense<0.000000e+00> : vector<8x512xf32>
    %246 = tpu.matmul %241, %245, %cst_122 {dimension_numbers = #tpu.dot_dimension_numbers<[1], [0], [0], [1], [0, 0, 1, 1], [], []>} : vector<8x128xf32>, vector<128x512xf32>, vector<8x512xf32> -> vector<8x512xf32>
    %247 = arith.addf %244, %246 : vector<8x512xf32>
    %248 = vector.extract_strided_slice %247 {offsets = [0, 0], sizes = [8, 128], strides = [1, 1]} : vector<8x512xf32> to vector<8x128xf32>
    %249 = arith.negf %248 : vector<8x128xf32>
    %250 = math.exp %249 : vector<8x128xf32>
    %cst_123 = arith.constant 1.000000e+00 : f32
    %251 = vector.broadcast %cst_123 : f32 to vector<8x128xf32>
    %252 = arith.addf %251, %250 : vector<8x128xf32>
    %253 = arith.divf %251, %252 : vector<8x128xf32>
    %254 = vector.extract_strided_slice %247 {offsets = [0, 128], sizes = [8, 128], strides = [1, 1]} : vector<8x512xf32> to vector<8x128xf32>
    %255 = arith.negf %254 : vector<8x128xf32>
    %256 = math.exp %255 : vector<8x128xf32>
    %cst_124 = arith.constant 1.000000e+00 : f32
    %257 = vector.broadcast %cst_124 : f32 to vector<8x128xf32>
    %258 = arith.addf %257, %256 : vector<8x128xf32>
    %259 = arith.divf %257, %258 : vector<8x128xf32>
    %260 = vector.extract_strided_slice %247 {offsets = [0, 256], sizes = [8, 128], strides = [1, 1]} : vector<8x512xf32> to vector<8x128xf32>
    %261 = math.tanh %260 : vector<8x128xf32>
    %262 = vector.extract_strided_slice %247 {offsets = [0, 384], sizes = [8, 128], strides = [1, 1]} : vector<8x512xf32> to vector<8x128xf32>
    %263 = arith.negf %262 : vector<8x128xf32>
    %264 = math.exp %263 : vector<8x128xf32>
    %cst_125 = arith.constant 1.000000e+00 : f32
    %265 = vector.broadcast %cst_125 : f32 to vector<8x128xf32>
    %266 = arith.addf %265, %264 : vector<8x128xf32>
    %267 = arith.divf %265, %266 : vector<8x128xf32>
    %268 = arith.mulf %259, %242 : vector<8x128xf32>
    %269 = arith.mulf %253, %261 : vector<8x128xf32>
    %270 = arith.addf %268, %269 : vector<8x128xf32>
    %271 = math.tanh %270 : vector<8x128xf32>
    %272 = arith.mulf %267, %271 : vector<8x128xf32>
    %c0_126 = arith.constant 0 : index
    %c0_127 = arith.constant 0 : index
    %273 = vector.load %arg9[%c0_126, %c0_127] : memref<8x128xf32, #tpu.memory_space<vmem>>, vector<8x128xf32>
    tpu.vector_store %arg9[%c0_126, %c0_127], %272 {strides = array<i32>} : memref<8x128xf32, #tpu.memory_space<vmem>>, vector<8x128xf32>,
    %c0_128 = arith.constant 0 : index
    %c0_129 = arith.constant 0 : index
    %274 = vector.load %arg10[%c0_128, %c0_129] : memref<8x128xf32, #tpu.memory_space<vmem>>, vector<8x128xf32>
    tpu.vector_store %arg10[%c0_128, %c0_129], %270 {strides = array<i32>} : memref<8x128xf32, #tpu.memory_space<vmem>>, vector<8x128xf32>,
    %275 = arith.index_cast %240 : i32 to index
    %c0_130 = arith.constant 0 : index
    %276 = vector.load %arg8[%275, %c0_130] : memref<64x128xf32, #tpu.memory_space<vmem>>, vector<8x128xf32>
    tpu.vector_store %arg8[%275, %c0_130], %272 {strides = array<i32>} : memref<64x128xf32, #tpu.memory_space<vmem>>, vector<8x128xf32>,
    %c7_i32 = arith.constant 7 : i32
    %c8_i32_131 = arith.constant 8 : i32
    %277 = arith.muli %c7_i32, %c8_i32_131 : i32
    %278 = tpu.assume_multiple %277, 8 : i32
    %c0_132 = arith.constant 0 : index
    %c0_133 = arith.constant 0 : index
    %279 = vector.load %arg9[%c0_132, %c0_133] : memref<8x128xf32, #tpu.memory_space<vmem>>, vector<8x128xf32>
    %c0_134 = arith.constant 0 : index
    %c0_135 = arith.constant 0 : index
    %280 = vector.load %arg10[%c0_134, %c0_135] : memref<8x128xf32, #tpu.memory_space<vmem>>, vector<8x128xf32>
    %281 = arith.index_cast %278 : i32 to index
    %c0_136 = arith.constant 0 : index
    %282 = vector.load %arg7[%281, %c0_136] : memref<64x512xf32, #tpu.memory_space<vmem>>, vector<8x512xf32>
    %c0_137 = arith.constant 0 : index
    %c0_138 = arith.constant 0 : index
    %283 = vector.load %arg2[%c0_137, %c0_138] : memref<128x512xf32, #tpu.memory_space<vmem>>, vector<128x512xf32>
    %cst_139 = arith.constant dense<0.000000e+00> : vector<8x512xf32>
    %284 = tpu.matmul %279, %283, %cst_139 {dimension_numbers = #tpu.dot_dimension_numbers<[1], [0], [0], [1], [0, 0, 1, 1], [], []>} : vector<8x128xf32>, vector<128x512xf32>, vector<8x512xf32> -> vector<8x512xf32>
    %285 = arith.addf %282, %284 : vector<8x512xf32>
    %286 = vector.extract_strided_slice %285 {offsets = [0, 0], sizes = [8, 128], strides = [1, 1]} : vector<8x512xf32> to vector<8x128xf32>
    %287 = arith.negf %286 : vector<8x128xf32>
    %288 = math.exp %287 : vector<8x128xf32>
    %cst_140 = arith.constant 1.000000e+00 : f32
    %289 = vector.broadcast %cst_140 : f32 to vector<8x128xf32>
    %290 = arith.addf %289, %288 : vector<8x128xf32>
    %291 = arith.divf %289, %290 : vector<8x128xf32>
    %292 = vector.extract_strided_slice %285 {offsets = [0, 128], sizes = [8, 128], strides = [1, 1]} : vector<8x512xf32> to vector<8x128xf32>
    %293 = arith.negf %292 : vector<8x128xf32>
    %294 = math.exp %293 : vector<8x128xf32>
    %cst_141 = arith.constant 1.000000e+00 : f32
    %295 = vector.broadcast %cst_141 : f32 to vector<8x128xf32>
    %296 = arith.addf %295, %294 : vector<8x128xf32>
    %297 = arith.divf %295, %296 : vector<8x128xf32>
    %298 = vector.extract_strided_slice %285 {offsets = [0, 256], sizes = [8, 128], strides = [1, 1]} : vector<8x512xf32> to vector<8x128xf32>
    %299 = math.tanh %298 : vector<8x128xf32>
    %300 = vector.extract_strided_slice %285 {offsets = [0, 384], sizes = [8, 128], strides = [1, 1]} : vector<8x512xf32> to vector<8x128xf32>
    %301 = arith.negf %300 : vector<8x128xf32>
    %302 = math.exp %301 : vector<8x128xf32>
    %cst_142 = arith.constant 1.000000e+00 : f32
    %303 = vector.broadcast %cst_142 : f32 to vector<8x128xf32>
    %304 = arith.addf %303, %302 : vector<8x128xf32>
    %305 = arith.divf %303, %304 : vector<8x128xf32>
    %306 = arith.mulf %297, %280 : vector<8x128xf32>
    %307 = arith.mulf %291, %299 : vector<8x128xf32>
    %308 = arith.addf %306, %307 : vector<8x128xf32>
    %309 = math.tanh %308 : vector<8x128xf32>
    %310 = arith.mulf %305, %309 : vector<8x128xf32>
    %c0_143 = arith.constant 0 : index
    %c0_144 = arith.constant 0 : index
    %311 = vector.load %arg9[%c0_143, %c0_144] : memref<8x128xf32, #tpu.memory_space<vmem>>, vector<8x128xf32>
    tpu.vector_store %arg9[%c0_143, %c0_144], %310 {strides = array<i32>} : memref<8x128xf32, #tpu.memory_space<vmem>>, vector<8x128xf32>,
    %c0_145 = arith.constant 0 : index
    %c0_146 = arith.constant 0 : index
    %312 = vector.load %arg10[%c0_145, %c0_146] : memref<8x128xf32, #tpu.memory_space<vmem>>, vector<8x128xf32>
    tpu.vector_store %arg10[%c0_145, %c0_146], %308 {strides = array<i32>} : memref<8x128xf32, #tpu.memory_space<vmem>>, vector<8x128xf32>,
    %313 = arith.index_cast %278 : i32 to index
    %c0_147 = arith.constant 0 : index
    %314 = vector.load %arg8[%313, %c0_147] : memref<64x128xf32, #tpu.memory_space<vmem>>, vector<8x128xf32>
    tpu.vector_store %arg8[%313, %c0_147], %310 {strides = array<i32>} : memref<64x128xf32, #tpu.memory_space<vmem>>, vector<8x128xf32>,
    %c8_i32_148 = arith.constant 8 : i32
    %c0_149 = arith.constant 0 : index
    %c0_150 = arith.constant 0 : index
    %315 = vector.load %arg8[%c0_149, %c0_150] : memref<64x128xf32, #tpu.memory_space<vmem>>, vector<64x128xf32>
    %c0_151 = arith.constant 0 : index
    %c0_152 = arith.constant 0 : index
    %316 = vector.load %arg4[%c0_151, %c0_152] : memref<128x128xf32, #tpu.memory_space<vmem>>, vector<128x128xf32>
    %cst_153 = arith.constant dense<0.000000e+00> : vector<64x128xf32>
    %317 = tpu.matmul %315, %316, %cst_153 {dimension_numbers = #tpu.dot_dimension_numbers<[1], [0], [0], [1], [0, 0, 1, 1], [], []>} : vector<64x128xf32>, vector<128x128xf32>, vector<64x128xf32> -> vector<64x128xf32>
    %c0_154 = arith.constant 0 : index
    %c0_155 = arith.constant 0 : index
    %318 = vector.load %arg5[%c0_154, %c0_155] : memref<1x128xf32, #tpu.memory_space<vmem>>, vector<1x128xf32>
    %319 = vector.broadcast %318 : vector<1x128xf32> to vector<64x128xf32>
    %320 = arith.addf %317, %319 : vector<64x128xf32>
    %c0_156 = arith.constant 0 : index
    %c0_157 = arith.constant 0 : index
    %321 = vector.load %arg6[%c0_156, %c0_157] : memref<64x128xf32, #tpu.memory_space<vmem>>, vector<64x128xf32>
    tpu.vector_store %arg6[%c0_156, %c0_157], %320 {strides = array<i32>} : memref<64x128xf32, #tpu.memory_space<vmem>>, vector<64x128xf32>,
    return
  }
}

</mosaic_0001>

<llo_original>
// kernel: tpu_custom_call.1
$region0: #{tpu_custom_call.1}
  #allocation0 [shape = 'u32[]', space=smem, size = 0x4, offset = 0x4, fixed_abs, tag = 'smem constant byte address 0x4 - core index']
  #allocation1 [shape = 'u32[144,128]{1,0:T(1,128)}', space=vmem, size = 0x12000, scoped, tag = 'internal scratch']
  #allocation2 [shape = 'f32[64,512]{1,0:T(8,128)}', space=vmem, size = 0x20000, scoped, tag = 'scratch operand']
  #allocation3 [shape = 'f32[64,128]{1,0:T(8,128)}', space=vmem, size = 0x8000, scoped, tag = 'scratch operand']
  #allocation4 [shape = 'f32[8,128]{1,0:T(8,128)}', space=vmem, size = 0x1000, scoped, tag = 'scratch operand']
  #allocation5 [shape = 'f32[8,128]{1,0:T(8,128)}', space=vmem, size = 0x1000, scoped, tag = 'scratch operand']
  %s0 = inlined_call_operand.vmem [shape: f32[64,7], index: 0, kind: input, shape index: {}]
  %s1 = inlined_call_operand.vmem [shape: f32[7,512], index: 1, kind: input, shape index: {}]
  %s2 = inlined_call_operand.hbm [shape: f32[128,512], index: 2, kind: input, shape index: {}]
  %s3 = inlined_call_operand.vmem [shape: f32[1,512], index: 3, kind: input, shape index: {}]
  %s4 = inlined_call_operand.hbm [shape: f32[128,128], index: 4, kind: input, shape index: {}]
  %s5 = inlined_call_operand.vmem [shape: f32[1,128], index: 5, kind: input, shape index: {}]
  %s6 = inlined_call_operand.hbm [shape: f32[64,128], index: 6, kind: output, shape index: {}]
  %s7 = sld [smem:[#allocation0]]
  $region42: #{tpu_custom_call.1} parent=0
    _
  %s9 = ssub.s32 1, %s7
  %s10 = scalar_select 0, %s9, %s7
  $region1: #{tpu_custom_call.1} parent=0
    #allocation6 [shape = 'u8[262144]{0}', space=vmem, size = 0x40000, scoped, tag = 'input window, operand 2, single buffered']
    #allocation7 [shape = 's32[1]{0}', space=sflag, size = 0x4, scoped, tag = 'scoped memory for tpu_custom_call.1']
    #allocation8 [shape = 's32[1]{0}', space=sflag, size = 0x4, scoped, tag = 'scoped memory for tpu_custom_call.1']
    #allocation9 [shape = 'u8[65536]{0}', space=vmem, size = 0x10000, scoped, tag = 'input window, operand 4, single buffered']
    #allocation10 [shape = 's32[1]{0}', space=sflag, size = 0x4, scoped, tag = 'scoped memory for tpu_custom_call.1']
    #allocation11 [shape = 'u8[32768]{0}', space=vmem, size = 0x8000, scoped, tag = 'output window, operand 0, single buffered']
    %11 = vsyncpa [#allocation7], 0
    %12 = vsyncpa [#allocation10], 0
    %13 = vsyncpa [#allocation8], 0
    // Predicated region
    $region2: #{tpu_custom_call.1} parent=1 // pred_check
      _
    $region3: #{tpu_custom_call.1} parent=1 // pred_check_branch
      %15 = sbr.rel (0) target = $region5
    $region4: #{tpu_custom_call.1} parent=1 // pred_region
      _
    $region5: #{tpu_custom_call.1} parent=1 // pred_fallthru
      _
    // Predicated region
    $region6: #{tpu_custom_call.1} parent=1 // pred_check
      _
    $region7: #{tpu_custom_call.1} parent=1 // pred_check_branch
      %17 = sbr.rel (0) target = $region9
    $region8: #{tpu_custom_call.1} parent=1 // pred_region
      _
    $region9: #{tpu_custom_call.1} parent=1 // pred_fallthru
      _
    // Predicated region
    $region10: #{tpu_custom_call.1} parent=1 // pred_check
      _
    $region11: #{tpu_custom_call.1} parent=1 // pred_check_branch
      %19 = sbr.rel (0) target = $region13
    $region12: #{tpu_custom_call.1} parent=1 // pred_region
      %s21 = ssub.s32 8192, 8192
      %22 = vsyncadd [#allocation7], %s21
      %s23 = sshll.u32 [#allocation6], 4
      %s24 = int_to_ptr.vmem [resolvable:$true] %s23
      %29 = dma.hbm_to_vmem [thread:$0]  %s2, 8192, %s24, [#allocation7], 512, 512, 32
    $region13: #{tpu_custom_call.1} parent=1 // pred_fallthru
      _
    // Predicated region
    $region14: #{tpu_custom_call.1} parent=1 // pred_check
      _
    $region15: #{tpu_custom_call.1} parent=1 // pred_check_branch
      %31 = sbr.rel (0) target = $region17
    $region16: #{tpu_custom_call.1} parent=1 // pred_region
      _
    $region17: #{tpu_custom_call.1} parent=1 // pred_fallthru
      _
    // Predicated region
    $region18: #{tpu_custom_call.1} parent=1 // pred_check
      _
    $region19: #{tpu_custom_call.1} parent=1 // pred_check_branch
      %33 = sbr.rel (0) target = $region21
    $region20: #{tpu_custom_call.1} parent=1 // pred_region
      %s35 = ssub.s32 2048, 2048
      %36 = vsyncadd [#allocation10], %s35
      %s37 = sshll.u32 [#allocation9], 4
      %s38 = int_to_ptr.vmem [resolvable:$true] %s37
      %43 = dma.hbm_to_vmem [thread:$0]  %s4, 2048, %s38, [#allocation10], 128, 128, 8
    $region21: #{tpu_custom_call.1} parent=1 // pred_fallthru
      _
    // Predicated region
    $region22: #{tpu_custom_call.1} parent=1 // pred_check
      _
    $region23: #{tpu_custom_call.1} parent=1 // pred_check_branch
      %45 = sbr.rel (0) target = $region25
    $region24: #{tpu_custom_call.1} parent=1 // pred_region
      _
    $region25: #{tpu_custom_call.1} parent=1 // pred_fallthru
      _
    // Predicated region
    $region26: #{tpu_custom_call.1} parent=1 // pred_check
      _
    $region27: #{tpu_custom_call.1} parent=1 // pred_check_branch
      %47 = sbr.rel (0) target = $region29
    $region28: #{tpu_custom_call.1} parent=1 // pred_region
      %48 = dma.done [#allocation7], 8192
    $region29: #{tpu_custom_call.1} parent=1 // pred_fallthru
      _
    // Predicated region
    $region30: #{tpu_custom_call.1} parent=1 // pred_check
      _
    $region31: #{tpu_custom_call.1} parent=1 // pred_check_branch
      %50 = sbr.rel (0) target = $region33
    $region32: #{tpu_custom_call.1} parent=1 // pred_region
      %51 = dma.done [#allocation10], 2048
    $region33: #{tpu_custom_call.1} parent=1 // pred_fallthru
      _
    %v52 = vld [vmem:[%s0] sm:$0xff]
    %v53 = vld [vmem:[%s0 + $0x8] sm:$0xff]
    %v54 = vld [vmem:[%s0 + $0x10] sm:$0xff]
    %v55 = vld [vmem:[%s0 + $0x18] sm:$0xff]
    %v56 = vld [vmem:[%s0 + $0x20] sm:$0xff]
    %v57 = vld [vmem:[%s0 + $0x28] sm:$0xff]
    %v58 = vld [vmem:[%s0 + $0x30] sm:$0xff]
    %v59 = vld [vmem:[%s0 + $0x38] sm:$0xff]
    %v60 = vld [vmem:[%s1] sm:$0x7f]
    %v61 = vld [vmem:[%s1 + $0x8] sm:$0x7f]
    %v62 = vld [vmem:[%s1 + $0x10] sm:$0x7f]
    %v63 = vld [vmem:[%s1 + $0x18] sm:$0x7f]
    %v64 = vld [vmem:[%s3] sm:$0xf]
    %v66 = vlaneseq
    %v67 = vshrl.u32 %v66, 7
    %v68 = vsub.s32 0, %v67
    %v69 = vrot.slane %v64, %v68
    %v70 = vlaneseq
    %v71 = vshrl.u32 %v70, 7
    %v72 = vsub.s32 1, %v71
    %v73 = vrot.slane %v64, %v72
    %v74 = vlaneseq
    %v75 = vshrl.u32 %v74, 7
    %v76 = vsub.s32 2, %v75
    %v77 = vrot.slane %v64, %v76
    %v78 = vlaneseq
    %v79 = vshrl.u32 %v78, 7
    %v80 = vsub.s32 3, %v79
    %v81 = vrot.slane %v64, %v80
    %vm86 = vcmask 56320
    %v88 = vsel %vm86, %v52, 0
    %v91 = vsel %vm86, %v53, 0
    %v94 = vsel %vm86, %v54, 0
    %v97 = vsel %vm86, %v55, 0
    %v100 = vsel %vm86, %v56, 0
    %v103 = vsel %vm86, %v57, 0
    %v106 = vsel %vm86, %v58, 0
    %v109 = vsel %vm86, %v59, 0
    %vm111 = vcmask 1046528
    %v113 = vsel %vm111, %v60, 0
    %v116 = vsel %vm111, %v61, 0
    %v119 = vsel %vm111, %v62, 0
    %v122 = vsel %vm111, %v63, 0
    %124 = vmatprep.subr.mxu0 %v116
    %125 = vmatpush1.msra.mxu0 %v113
    %126 = vmatprep.subr.mxu0 0.0
    %127 = vmatpush1.msra.mxu0 0.0
    %128 = vmatprep.subr.mxu0 0.0
    %129 = vmatpush1.msra.mxu0 0.0
    %130 = vmatprep.subr.mxu0 0.0
    %131 = vmatpush1.msra.mxu0 0.0
    %132 = vmatprep.subr.mxu0 0.0
    %133 = vmatpush1.msra.mxu0 0.0
    %134 = vmatprep.subr.mxu0 0.0
    %135 = vmatpush1.msra.mxu0 0.0
    %136 = vmatprep.subr.mxu0 0.0
    %137 = vmatpush1.msra.mxu0 0.0
    %138 = vmatprep.subr.mxu0 0.0
    %139 = vmatpush1.msra.mxu0 0.0
    %140 = vmatprep.subr.mxu0 0.0
    %141 = vmatpush1.msra.mxu0 0.0
    %142 = vmatprep.subr.mxu0 0.0
    %143 = vmatpush1.msra.mxu0 0.0
    %144 = vmatprep.subr.mxu0 0.0
    %145 = vmatpush1.msra.mxu0 0.0
    %146 = vmatprep.subr.mxu0 0.0
    %147 = vmatpush1.msra.mxu0 0.0
    %148 = vmatprep.subr.mxu0 0.0
    %149 = vmatpush1.msra.mxu0 0.0
    %150 = vmatprep.subr.mxu0 0.0
    %151 = vmatpush1.msra.mxu0 0.0
    %152 = vmatprep.subr.mxu0 0.0
    %153 = vmatpush1.msra.mxu0 0.0
    %154 = vmatprep.subr.mxu0 0.0
    %155 = vmatpush1.msra.mxu0 0.0
    %156 = vmatprep.subr.mxu0 0.0
    %157 = vmatpush1.msra.mxu0 0.0
    %158 = vmatprep.subr.mxu0 0.0
    %159 = vmatpush1.msra.mxu0 0.0
    %160 = vmatprep.subr.mxu0 0.0
    %161 = vmatpush1.msra.mxu0 0.0
    %162 = vmatprep.subr.mxu0 0.0
    %163 = vmatpush1.msra.mxu0 0.0
    %164 = vmatprep.subr.mxu0 0.0
    %165 = vmatpush1.msra.mxu0 0.0
    %166 = vmatprep.subr.mxu0 0.0
    %167 = vmatpush1.msra.mxu0 0.0
    %168 = vmatprep.subr.mxu0 0.0
    %169 = vmatpush1.msra.mxu0 0.0
    %170 = vmatprep.subr.mxu0 0.0
    %171 = vmatpush1.msra.mxu0 0.0
    %172 = vmatprep.subr.mxu0 0.0
    %173 = vmatpush1.msra.mxu0 0.0
    %174 = vmatprep.subr.mxu0 0.0
    %175 = vmatpush1.msra.mxu0 0.0
    %176 = vmatprep.subr.mxu0 0.0
    %177 = vmatpush1.msra.mxu0 0.0
    %178 = vmatprep.subr.mxu0 0.0
    %179 = vmatpush1.msra.mxu0 0.0
    %180 = vmatprep.subr.mxu0 0.0
    %181 = vmatpush1.msra.mxu0 0.0
    %182 = vmatprep.subr.mxu0 0.0
    %183 = vmatpush1.msra.mxu0 0.0
    %184 = vmatprep.subr.mxu0 0.0
    %185 = vmatpush1.msra.mxu0 0.0
    %186 = vmatprep.subr.mxu0 0.0
    %187 = vmatpush1.msra.mxu0 0.0
    %188 = vmatprep.mubr.f32.mxu0 0.0
    %189 = vmatmul.mubr.f32.gmra.mrb[0].mxu0 %v88
    %v190 = vpop.f32.mrb[0].mxu0
    %v191 = vadd.f32 %v69, %v190
    %v192 = vpop.f32.mrb[0].mxu0
    %v193 = vadd.f32 %v73, %v192
    %194 = vmatprep.mubr.f32.mxu0 0.0
    %195 = vmatmul.mubr.f32.gmra.mrb[0].mxu0 %v91
    %v196 = vpop.f32.mrb[0].mxu0
    %v197 = vadd.f32 %v69, %v196
    %v198 = vpop.f32.mrb[0].mxu0
    %v199 = vadd.f32 %v73, %v198
    %200 = vmatprep.mubr.f32.mxu0 0.0
    %201 = vmatmul.mubr.f32.gmra.mrb[0].mxu0 %v94
    %v202 = vpop.f32.mrb[0].mxu0
    %v203 = vadd.f32 %v69, %v202
    %v204 = vpop.f32.mrb[0].mxu0
    %v205 = vadd.f32 %v73, %v204
    %206 = vmatprep.mubr.f32.mxu0 0.0
    %207 = vmatmul.mubr.f32.gmra.mrb[0].mxu0 %v97
    %v208 = vpop.f32.mrb[0].mxu0
    %v209 = vadd.f32 %v69, %v208
    %v210 = vpop.f32.mrb[0].mxu0
    %v211 = vadd.f32 %v73, %v210
    %212 = vmatprep.mubr.f32.mxu0 0.0
    %213 = vmatmul.mubr.f32.gmra.mrb[0].mxu0 %v100
    %v214 = vpop.f32.mrb[0].mxu0
    %v215 = vadd.f32 %v69, %v214
    %v216 = vpop.f32.mrb[0].mxu0
    %v217 = vadd.f32 %v73, %v216
    %218 = vmatprep.mubr.f32.mxu0 0.0
    %219 = vmatmul.mubr.f32.gmra.mrb[0].mxu0 %v103
    %v220 = vpop.f32.mrb[0].mxu0
    %v221 = vadd.f32 %v69, %v220
    %v222 = vpop.f32.mrb[0].mxu0
    %v223 = vadd.f32 %v73, %v222
    %224 = vmatprep.mubr.f32.mxu0 0.0
    %225 = vmatmul.mubr.f32.gmra.mrb[0].mxu0 %v106
    %v226 = vpop.f32.mrb[0].mxu0
    %v227 = vadd.f32 %v69, %v226
    %v228 = vpop.f32.mrb[0].mxu0
    %v229 = vadd.f32 %v73, %v228
    %230 = vmatprep.mubr.f32.mxu0 0.0
    %231 = vmatmul.mubr.f32.gmra.mrb[0].mxu0 %v109
    %v232 = vpop.f32.mrb[0].mxu0
    %v233 = vadd.f32 %v69, %v232
    %v234 = vpop.f32.mrb[0].mxu0
    %v235 = vadd.f32 %v73, %v234
    %236 = vdwg.mxu0
    %237 = vmatprep.subr.mxu0 %v122
    %238 = vmatpush1.msra.mxu0 %v119
    %239 = vmatprep.subr.mxu0 0.0
    %240 = vmatpush1.msra.mxu0 0.0
    %241 = vmatprep.subr.mxu0 0.0
    %242 = vmatpush1.msra.mxu0 0.0
    %243 = vmatprep.subr.mxu0 0.0
    %244 = vmatpush1.msra.mxu0 0.0
    %245 = vmatprep.subr.mxu0 0.0
    %246 = vmatpush1.msra.mxu0 0.0
    %247 = vmatprep.subr.mxu0 0.0
    %248 = vmatpush1.msra.mxu0 0.0
    %249 = vmatprep.subr.mxu0 0.0
    %250 = vmatpush1.msra.mxu0 0.0
    %251 = vmatprep.subr.mxu0 0.0
    %252 = vmatpush1.msra.mxu0 0.0
    %253 = vmatprep.subr.mxu0 0.0
    %254 = vmatpush1.msra.mxu0 0.0
    %255 = vmatprep.subr.mxu0 0.0
    %256 = vmatpush1.msra.mxu0 0.0
    %257 = vmatprep.subr.mxu0 0.0
    %258 = vmatpush1.msra.mxu0 0.0
    %259 = vmatprep.subr.mxu0 0.0
    %260 = vmatpush1.msra.mxu0 0.0
    %261 = vmatprep.subr.mxu0 0.0
    %262 = vmatpush1.msra.mxu0 0.0
    %263 = vmatprep.subr.mxu0 0.0
    %264 = vmatpush1.msra.mxu0 0.0
    %265 = vmatprep.subr.mxu0 0.0
    %266 = vmatpush1.msra.mxu0 0.0
    %267 = vmatprep.subr.mxu0 0.0
    %268 = vmatpush1.msra.mxu0 0.0
    %269 = vmatprep.subr.mxu0 0.0
    %270 = vmatpush1.msra.mxu0 0.0
    %271 = vmatprep.subr.mxu0 0.0
    %272 = vmatpush1.msra.mxu0 0.0
    %273 = vmatprep.subr.mxu0 0.0
    %274 = vmatpush1.msra.mxu0 0.0
    %275 = vmatprep.subr.mxu0 0.0
    %276 = vmatpush1.msra.mxu0 0.0
    %277 = vmatprep.subr.mxu0 0.0
    %278 = vmatpush1.msra.mxu0 0.0
    %279 = vmatprep.subr.mxu0 0.0
    %280 = vmatpush1.msra.mxu0 0.0
    %281 = vmatprep.subr.mxu0 0.0
    %282 = vmatpush1.msra.mxu0 0.0
    %283 = vmatprep.subr.mxu0 0.0
    %284 = vmatpush1.msra.mxu0 0.0
    %285 = vmatprep.subr.mxu0 0.0
    %286 = vmatpush1.msra.mxu0 0.0
    %287 = vmatprep.subr.mxu0 0.0
    %288 = vmatpush1.msra.mxu0 0.0
    %289 = vmatprep.subr.mxu0 0.0
    %290 = vmatpush1.msra.mxu0 0.0
    %291 = vmatprep.subr.mxu0 0.0
    %292 = vmatpush1.msra.mxu0 0.0
    %293 = vmatprep.subr.mxu0 0.0
    %294 = vmatpush1.msra.mxu0 0.0
    %295 = vmatprep.subr.mxu0 0.0
    %296 = vmatpush1.msra.mxu0 0.0
    %297 = vmatprep.subr.mxu0 0.0
    %298 = vmatpush1.msra.mxu0 0.0
    %299 = vmatprep.subr.mxu0 0.0
    %300 = vmatpush1.msra.mxu0 0.0
    %301 = vmatprep.mubr.f32.mxu0 0.0
    %302 = vmatmul.mubr.f32.gmra.mrb[0].mxu0 %v88
    %v303 = vpop.f32.mrb[0].mxu0
    %v304 = vadd.f32 %v77, %v303
    %v305 = vpop.f32.mrb[0].mxu0
    %v306 = vadd.f32 %v81, %v305
    %307 = vmatprep.mubr.f32.mxu0 0.0
    %308 = vmatmul.mubr.f32.gmra.mrb[0].mxu0 %v91
    %v309 = vpop.f32.mrb[0].mxu0
    %v310 = vadd.f32 %v77, %v309
    %v311 = vpop.f32.mrb[0].mxu0
    %v312 = vadd.f32 %v81, %v311
    %313 = vmatprep.mubr.f32.mxu0 0.0
    %314 = vmatmul.mubr.f32.gmra.mrb[0].mxu0 %v94
    %v315 = vpop.f32.mrb[0].mxu0
    %v316 = vadd.f32 %v77, %v315
    %v317 = vpop.f32.mrb[0].mxu0
    %v318 = vadd.f32 %v81, %v317
    %319 = vmatprep.mubr.f32.mxu0 0.0
    %320 = vmatmul.mubr.f32.gmra.mrb[0].mxu0 %v97
    %v321 = vpop.f32.mrb[0].mxu0
    %v322 = vadd.f32 %v77, %v321
    %v323 = vpop.f32.mrb[0].mxu0
    %v324 = vadd.f32 %v81, %v323
    %325 = vmatprep.mubr.f32.mxu0 0.0
    %326 = vmatmul.mubr.f32.gmra.mrb[0].mxu0 %v100
    %v327 = vpop.f32.mrb[0].mxu0
    %v328 = vadd.f32 %v77, %v327
    %v329 = vpop.f32.mrb[0].mxu0
    %v330 = vadd.f32 %v81, %v329
    %331 = vmatprep.mubr.f32.mxu0 0.0
    %332 = vmatmul.mubr.f32.gmra.mrb[0].mxu0 %v103
    %v333 = vpop.f32.mrb[0].mxu0
    %v334 = vadd.f32 %v77, %v333
    %v335 = vpop.f32.mrb[0].mxu0
    %v336 = vadd.f32 %v81, %v335
    %337 = vmatprep.mubr.f32.mxu0 0.0
    %338 = vmatmul.mubr.f32.gmra.mrb[0].mxu0 %v106
    %v339 = vpop.f32.mrb[0].mxu0
    %v340 = vadd.f32 %v77, %v339
    %v341 = vpop.f32.mrb[0].mxu0
    %v342 = vadd.f32 %v81, %v341
    %343 = vmatprep.mubr.f32.mxu0 0.0
    %344 = vmatmul.mubr.f32.gmra.mrb[0].mxu0 %v109
    %v345 = vpop.f32.mrb[0].mxu0
    %v346 = vadd.f32 %v77, %v345
    %v347 = vpop.f32.mrb[0].mxu0
    %v348 = vadd.f32 %v81, %v347
    %349 = vdwg.mxu0
    %350 = vst [vmem:[#allocation2] sm:$0xff] %v191
    %351 = vst [vmem:[#allocation2 + $0x8] sm:$0xff] %v193
    %352 = vst [vmem:[#allocation2 + $0x10] sm:$0xff] %v304
    %353 = vst [vmem:[#allocation2 + $0x18] sm:$0xff] %v306
    %354 = vst [vmem:[#allocation2 + $0x20] sm:$0xff] %v197
    %355 = vst [vmem:[#allocation2 + $0x28] sm:$0xff] %v199
    %356 = vst [vmem:[#allocation2 + $0x30] sm:$0xff] %v310
    %357 = vst [vmem:[#allocation2 + $0x38] sm:$0xff] %v312
    %358 = vst [vmem:[#allocation2 + $0x40] sm:$0xff] %v203
    %359 = vst [vmem:[#allocation2 + $0x48] sm:$0xff] %v205
    %360 = vst [vmem:[#allocation2 + $0x50] sm:$0xff] %v316
    %361 = vst [vmem:[#allocation2 + $0x58] sm:$0xff] %v318
    %362 = vst [vmem:[#allocation2 + $0x60] sm:$0xff] %v209
    %363 = vst [vmem:[#allocation2 + $0x68] sm:$0xff] %v211
    %364 = vst [vmem:[#allocation2 + $0x70] sm:$0xff] %v322
    %365 = vst [vmem:[#allocation2 + $0x78] sm:$0xff] %v324
    %366 = vst [vmem:[#allocation2 + $0x80] sm:$0xff] %v215
    %367 = vst [vmem:[#allocation2 + $0x88] sm:$0xff] %v217
    %368 = vst [vmem:[#allocation2 + $0x90] sm:$0xff] %v328
    %369 = vst [vmem:[#allocation2 + $0x98] sm:$0xff] %v330
    %370 = vst [vmem:[#allocation2 + $0xa0] sm:$0xff] %v221
    %371 = vst [vmem:[#allocation2 + $0xa8] sm:$0xff] %v223
    %372 = vst [vmem:[#allocation2 + $0xb0] sm:$0xff] %v334
    %373 = vst [vmem:[#allocation2 + $0xb8] sm:$0xff] %v336
    %374 = vst [vmem:[#allocation2 + $0xc0] sm:$0xff] %v227
    %375 = vst [vmem:[#allocation2 + $0xc8] sm:$0xff] %v229
    %376 = vst [vmem:[#allocation2 + $0xd0] sm:$0xff] %v340
    %377 = vst [vmem:[#allocation2 + $0xd8] sm:$0xff] %v342
    %378 = vst [vmem:[#allocation2 + $0xe0] sm:$0xff] %v233
    %379 = vst [vmem:[#allocation2 + $0xe8] sm:$0xff] %v235
    %380 = vst [vmem:[#allocation2 + $0xf0] sm:$0xff] %v346
    %381 = vst [vmem:[#allocation2 + $0xf8] sm:$0xff] %v348
    %382 = vst [vmem:[#allocation4] sm:$0xff] 0.0
    %383 = vst [vmem:[#allocation5] sm:$0xff] 0.0
    %v384 = vld [vmem:[#allocation4] sm:$0xff]
    %v385 = vld [vmem:[#allocation5] sm:$0xff]
    %s386 = smul.u32 0, 4
    %s387 = smul.addr %s386, 8
    %s388 = scalar_lea.vmem [#allocation2], %s387
    %v389 = vld [vmem:[%s388] sm:$0xff]
    %v390 = vld [vmem:[%s388 + $0x8] sm:$0xff]
    %v391 = vld [vmem:[%s388 + $0x10] sm:$0xff]
    %v392 = vld [vmem:[%s388 + $0x18] sm:$0xff]
    %v393 = vld [vmem:[#allocation6] sm:$0xff]
    %v394 = vld [vmem:[#allocation6 + $0x8] sm:$0xff]
    %v395 = vld [vmem:[#allocation6 + $0x10] sm:$0xff]
    %v396 = vld [vmem:[#allocation6 + $0x18] sm:$0xff]
    %v397 = vld [vmem:[#allocation6 + $0x20] sm:$0xff]
    %v398 = vld [vmem:[#allocation6 + $0x28] sm:$0xff]
    %v399 = vld [vmem:[#allocation6 + $0x30] sm:$0xff]
    %v400 = vld [vmem:[#allocation6 + $0x38] sm:$0xff]
    %v401 = vld [vmem:[#allocation6 + $0x40] sm:$0xff]
    %v402 = vld [vmem:[#allocation6 + $0x48] sm:$0xff]
    %v403 = vld [vmem:[#allocation6 + $0x50] sm:$0xff]
    %v404 = vld [vmem:[#allocation6 + $0x58] sm:$0xff]
    %v405 = vld [vmem:[#allocation6 + $0x60] sm:$0xff]
    %v406 = vld [vmem:[#allocation6 + $0x68] sm:$0xff]
    %v407 = vld [vmem:[#allocation6 + $0x70] sm:$0xff]
    %v408 = vld [vmem:[#allocation6 + $0x78] sm:$0xff]
    %v409 = vld [vmem:[#allocation6 + $0x80] sm:$0xff]
    %v410 = vld [vmem:[#allocation6 + $0x88] sm:$0xff]
    %v411 = vld [vmem:[#allocation6 + $0x90] sm:$0xff]
    %v412 = vld [vmem:[#allocation6 + $0x98] sm:$0xff]
    %v413 = vld [vmem:[#allocation6 + $0xa0] sm:$0xff]
    %v414 = vld [vmem:[#allocation6 + $0xa8] sm:$0xff]
    %v415 = vld [vmem:[#allocation6 + $0xb0] sm:$0xff]
    %v416 = vld [vmem:[#allocation6 + $0xb8] sm:$0xff]
    %v417 = vld [vmem:[#allocation6 + $0xc0] sm:$0xff]
    %v418 = vld [vmem:[#allocation6 + $0xc8] sm:$0xff]
    %v419 = vld [vmem:[#allocation6 + $0xd0] sm:$0xff]
    %v420 = vld [vmem:[#allocation6 + $0xd8] sm:$0xff]
    %v421 = vld [vmem:[#allocation6 + $0xe0] sm:$0xff]
    %v422 = vld [vmem:[#allocation6 + $0xe8] sm:$0xff]
    %v423 = vld [vmem:[#allocation6 + $0xf0] sm:$0xff]
    %v424 = vld [vmem:[#allocation6 + $0xf8] sm:$0xff]
    %v425 = vld [vmem:[#allocation6 + $0x100] sm:$0xff]
    %v426 = vld [vmem:[#allocation6 + $0x108] sm:$0xff]
    %v427 = vld [vmem:[#allocation6 + $0x110] sm:$0xff]
    %v428 = vld [vmem:[#allocation6 + $0x118] sm:$0xff]
    %v429 = vld [vmem:[#allocation6 + $0x120] sm:$0xff]
    %v430 = vld [vmem:[#allocation6 + $0x128] sm:$0xff]
    %v431 = vld [vmem:[#allocation6 + $0x130] sm:$0xff]
    %v432 = vld [vmem:[#allocation6 + $0x138] sm:$0xff]
    %v433 = vld [vmem:[#allocation6 + $0x140] sm:$0xff]
    %v434 = vld [vmem:[#allocation6 + $0x148] sm:$0xff]
    %v435 = vld [vmem:[#allocation6 + $0x150] sm:$0xff]
    %v436 = vld [vmem:[#allocation6 + $0x158] sm:$0xff]
    %v437 = vld [vmem:[#allocation6 + $0x160] sm:$0xff]
    %v438 = vld [vmem:[#allocation6 + $0x168] sm:$0xff]
    %v439 = vld [vmem:[#allocation6 + $0x170] sm:$0xff]
    %v440 = vld [vmem:[#allocation6 + $0x178] sm:$0xff]
    %v441 = vld [vmem:[#allocation6 + $0x180] sm:$0xff]
    %v442 = vld [vmem:[#allocation6 + $0x188] sm:$0xff]
    %v443 = vld [vmem:[#allocation6 + $0x190] sm:$0xff]
    %v444 = vld [vmem:[#allocation6 + $0x198] sm:$0xff]
    %v445 = vld [vmem:[#allocation6 + $0x1a0] sm:$0xff]
    %v446 = vld [vmem:[#allocation6 + $0x1a8] sm:$0xff]
    %v447 = vld [vmem:[#allocation6 + $0x1b0] sm:$0xff]
    %v448 = vld [vmem:[#allocation6 + $0x1b8] sm:$0xff]
    %v449 = vld [vmem:[#allocation6 + $0x1c0] sm:$0xff]
    %v450 = vld [vmem:[#allocation6 + $0x1c8] sm:$0xff]
    %v451 = vld [vmem:[#allocation6 + $0x1d0] sm:$0xff]
    %v452 = vld [vmem:[#allocation6 + $0x1d8] sm:$0xff]
    %v453 = vld [vmem:[#allocation6 + $0x1e0] sm:$0xff]
    %v454 = vld [vmem:[#allocation6 + $0x1e8] sm:$0xff]
    %v455 = vld [vmem:[#allocation6 + $0x1f0] sm:$0xff]
    %v456 = vld [vmem:[#allocation6 + $0x1f8] sm:$0xff]
    %457 = vmatprep.subr.mxu0 %v394
    %458 = vmatpush1.msra.mxu0 %v393
    %459 = vmatprep.subr.mxu0 %v398
    %460 = vmatpush1.msra.mxu0 %v397
    %461 = vmatprep.subr.mxu0 %v402
    %462 = vmatpush1.msra.mxu0 %v401
    %463 = vmatprep.subr.mxu0 %v406
    %464 = vmatpush1.msra.mxu0 %v405
    %465 = vmatprep.subr.mxu0 %v410
    %466 = vmatpush1.msra.mxu0 %v409
    %467 = vmatprep.subr.mxu0 %v414
    %468 = vmatpush1.msra.mxu0 %v413
    %469 = vmatprep.subr.mxu0 %v418
    %470 = vmatpush1.msra.mxu0 %v417
    %471 = vmatprep.subr.mxu0 %v422
    %472 = vmatpush1.msra.mxu0 %v421
    %473 = vmatprep.subr.mxu0 %v426
    %474 = vmatpush1.msra.mxu0 %v425
    %475 = vmatprep.subr.mxu0 %v430
    %476 = vmatpush1.msra.mxu0 %v429
    %477 = vmatprep.subr.mxu0 %v434
    %478 = vmatpush1.msra.mxu0 %v433
    %479 = vmatprep.subr.mxu0 %v438
    %480 = vmatpush1.msra.mxu0 %v437
    %481 = vmatprep.subr.mxu0 %v442
    %482 = vmatpush1.msra.mxu0 %v441
    %483 = vmatprep.subr.mxu0 %v446
    %484 = vmatpush1.msra.mxu0 %v445
    %485 = vmatprep.subr.mxu0 %v450
    %486 = vmatpush1.msra.mxu0 %v449
    %487 = vmatprep.subr.mxu0 %v454
    %488 = vmatpush1.msra.mxu0 %v453
    %489 = vmatprep.subr.mxu0 0.0
    %490 = vmatpush1.msra.mxu0 0.0
    %491 = vmatprep.subr.mxu0 0.0
    %492 = vmatpush1.msra.mxu0 0.0
    %493 = vmatprep.subr.mxu0 0.0
    %494 = vmatpush1.msra.mxu0 0.0
    %495 = vmatprep.subr.mxu0 0.0
    %496 = vmatpush1.msra.mxu0 0.0
    %497 = vmatprep.subr.mxu0 0.0
    %498 = vmatpush1.msra.mxu0 0.0
    %499 = vmatprep.subr.mxu0 0.0
    %500 = vmatpush1.msra.mxu0 0.0
    %501 = vmatprep.subr.mxu0 0.0
    %502 = vmatpush1.msra.mxu0 0.0
    %503 = vmatprep.subr.mxu0 0.0
    %504 = vmatpush1.msra.mxu0 0.0
    %505 = vmatprep.subr.mxu0 0.0
    %506 = vmatpush1.msra.mxu0 0.0
    %507 = vmatprep.subr.mxu0 0.0
    %508 = vmatpush1.msra.mxu0 0.0
    %509 = vmatprep.subr.mxu0 0.0
    %510 = vmatpush1.msra.mxu0 0.0
    %511 = vmatprep.subr.mxu0 0.0
    %512 = vmatpush1.msra.mxu0 0.0
    %513 = vmatprep.subr.mxu0 0.0
    %514 = vmatpush1.msra.mxu0 0.0
    %515 = vmatprep.subr.mxu0 0.0
    %516 = vmatpush1.msra.mxu0 0.0
    %517 = vmatprep.subr.mxu0 0.0
    %518 = vmatpush1.msra.mxu0 0.0
    %519 = vmatprep.subr.mxu0 0.0
    %520 = vmatpush1.msra.mxu0 0.0
    %521 = vmatprep.mubr.f32.mxu0 0.0
    %522 = vmatmul.mubr.f32.gmra.mrb[0].mxu0 %v384
    %v523 = vpop.f32.mrb[0].mxu0
    %v524 = vadd.f32 0.0, %v523
    %v525 = vpop.f32.mrb[0].mxu0
    %v526 = vadd.f32 0.0, %v525
    %527 = vdwg.mxu0
    %528 = vmatprep.subr.mxu0 %v396
    %529 = vmatpush1.msra.mxu0 %v395
    %530 = vmatprep.subr.mxu0 %v400
    %531 = vmatpush1.msra.mxu0 %v399
    %532 = vmatprep.subr.mxu0 %v404
    %533 = vmatpush1.msra.mxu0 %v403
    %534 = vmatprep.subr.mxu0 %v408
    %535 = vmatpush1.msra.mxu0 %v407
    %536 = vmatprep.subr.mxu0 %v412
    %537 = vmatpush1.msra.mxu0 %v411
    %538 = vmatprep.subr.mxu0 %v416
    %539 = vmatpush1.msra.mxu0 %v415
    %540 = vmatprep.subr.mxu0 %v420
    %541 = vmatpush1.msra.mxu0 %v419
    %542 = vmatprep.subr.mxu0 %v424
    %543 = vmatpush1.msra.mxu0 %v423
    %544 = vmatprep.subr.mxu0 %v428
    %545 = vmatpush1.msra.mxu0 %v427
    %546 = vmatprep.subr.mxu0 %v432
    %547 = vmatpush1.msra.mxu0 %v431
    %548 = vmatprep.subr.mxu0 %v436
    %549 = vmatpush1.msra.mxu0 %v435
    %550 = vmatprep.subr.mxu0 %v440
    %551 = vmatpush1.msra.mxu0 %v439
    %552 = vmatprep.subr.mxu0 %v444
    %553 = vmatpush1.msra.mxu0 %v443
    %554 = vmatprep.subr.mxu0 %v448
    %555 = vmatpush1.msra.mxu0 %v447
    %556 = vmatprep.subr.mxu0 %v452
    %557 = vmatpush1.msra.mxu0 %v451
    %558 = vmatprep.subr.mxu0 %v456
    %559 = vmatpush1.msra.mxu0 %v455
    %560 = vmatprep.subr.mxu0 0.0
    %561 = vmatpush1.msra.mxu0 0.0
    %562 = vmatprep.subr.mxu0 0.0
    %563 = vmatpush1.msra.mxu0 0.0
    %564 = vmatprep.subr.mxu0 0.0
    %565 = vmatpush1.msra.mxu0 0.0
    %566 = vmatprep.subr.mxu0 0.0
    %567 = vmatpush1.msra.mxu0 0.0
    %568 = vmatprep.subr.mxu0 0.0
    %569 = vmatpush1.msra.mxu0 0.0
    %570 = vmatprep.subr.mxu0 0.0
    %571 = vmatpush1.msra.mxu0 0.0
    %572 = vmatprep.subr.mxu0 0.0
    %573 = vmatpush1.msra.mxu0 0.0
    %574 = vmatprep.subr.mxu0 0.0
    %575 = vmatpush1.msra.mxu0 0.0
    %576 = vmatprep.subr.mxu0 0.0
    %577 = vmatpush1.msra.mxu0 0.0
    %578 = vmatprep.subr.mxu0 0.0
    %579 = vmatpush1.msra.mxu0 0.0
    %580 = vmatprep.subr.mxu0 0.0
    %581 = vmatpush1.msra.mxu0 0.0
    %582 = vmatprep.subr.mxu0 0.0
    %583 = vmatpush1.msra.mxu0 0.0
    %584 = vmatprep.subr.mxu0 0.0
    %585 = vmatpush1.msra.mxu0 0.0
    %586 = vmatprep.subr.mxu0 0.0
    %587 = vmatpush1.msra.mxu0 0.0
    %588 = vmatprep.subr.mxu0 0.0
    %589 = vmatpush1.msra.mxu0 0.0
    %590 = vmatprep.subr.mxu0 0.0
    %591 = vmatpush1.msra.mxu0 0.0
    %592 = vmatprep.mubr.f32.mxu0 0.0
    %593 = vmatmul.mubr.f32.gmra.mrb[0].mxu0 %v384
    %v594 = vpop.f32.mrb[0].mxu0
    %v595 = vadd.f32 0.0, %v594
    %v596 = vpop.f32.mrb[0].mxu0
    %v597 = vadd.f32 0.0, %v596
    %598 = vdwg.mxu0
    %v599 = vadd.f32 %v389, %v524
    %v600 = vadd.f32 %v390, %v526
    %v601 = vadd.f32 %v391, %v595
    %v602 = vadd.f32 %v392, %v597
    %v603 = vxor.u32 %v599, 2147483648
    %v604 = vmul.f32 %v603, 1.442695
    %v605 = vpow.pop %v604
    %v606 = vadd.f32 %v605, 1.0
    %v607 = vrcp.pop %v606
    %v608 = vmul.f32 1.0, %v607
    %v609 = vxor.u32 %v600, 2147483648
    %v610 = vmul.f32 %v609, 1.442695
    %v611 = vpow.pop %v610
    %v612 = vadd.f32 %v611, 1.0
    %v613 = vrcp.pop %v612
    %v614 = vmul.f32 1.0, %v613
    %v615 = vtanh.pop %v601
    %v616 = vxor.u32 %v602, 2147483648
    %v617 = vmul.f32 %v616, 1.442695
    %v618 = vpow.pop %v617
    %v619 = vadd.f32 %v618, 1.0
    %v620 = vrcp.pop %v619
    %v621 = vmul.f32 1.0, %v620
    %v622 = vmul.f32 %v614, %v385
    %v623 = vmul.f32 %v608, %v615
    %v624 = vadd.f32 %v622, %v623
    %v625 = vtanh.pop %v624
    %v626 = vmul.f32 %v621, %v625
    %627 = vst [vmem:[#allocation4] sm:$0xff] %v626
    %628 = vst [vmem:[#allocation5] sm:$0xff] %v624
    %629 = vst [vmem:[#allocation3] sm:$0xff] %v626
    %v630 = vld [vmem:[#allocation4] sm:$0xff]
    %v631 = vld [vmem:[#allocation5] sm:$0xff]
    %s632 = smul.u32 1, 4
    %s633 = smul.addr %s632, 8
    %s634 = scalar_lea.vmem [#allocation2], %s633
    %v635 = vld [vmem:[%s634] sm:$0xff]
    %v636 = vld [vmem:[%s634 + $0x8] sm:$0xff]
    %v637 = vld [vmem:[%s634 + $0x10] sm:$0xff]
    %v638 = vld [vmem:[%s634 + $0x18] sm:$0xff]
    %v639 = vld [vmem:[#allocation6] sm:$0xff]
    %v640 = vld [vmem:[#allocation6 + $0x8] sm:$0xff]
    %v641 = vld [vmem:[#allocation6 + $0x10] sm:$0xff]
    %v642 = vld [vmem:[#allocation6 + $0x18] sm:$0xff]
    %v643 = vld [vmem:[#allocation6 + $0x20] sm:$0xff]
    %v644 = vld [vmem:[#allocation6 + $0x28] sm:$0xff]
    %v645 = vld [vmem:[#allocation6 + $0x30] sm:$0xff]
    %v646 = vld [vmem:[#allocation6 + $0x38] sm:$0xff]
    %v647 = vld [vmem:[#allocation6 + $0x40] sm:$0xff]
    %v648 = vld [vmem:[#allocation6 + $0x48] sm:$0xff]
    %v649 = vld [vmem:[#allocation6 + $0x50] sm:$0xff]
    %v650 = vld [vmem:[#allocation6 + $0x58] sm:$0xff]
    %v651 = vld [vmem:[#allocation6 + $0x60] sm:$0xff]
    %v652 = vld [vmem:[#allocation6 + $0x68] sm:$0xff]
    %v653 = vld [vmem:[#allocation6 + $0x70] sm:$0xff]
    %v654 = vld [vmem:[#allocation6 + $0x78] sm:$0xff]
    %v655 = vld [vmem:[#allocation6 + $0x80] sm:$0xff]
    %v656 = vld [vmem:[#allocation6 + $0x88] sm:$0xff]
    %v657 = vld [vmem:[#allocation6 + $0x90] sm:$0xff]
    %v658 = vld [vmem:[#allocation6 + $0x98] sm:$0xff]
    %v659 = vld [vmem:[#allocation6 + $0xa0] sm:$0xff]
    %v660 = vld [vmem:[#allocation6 + $0xa8] sm:$0xff]
    %v661 = vld [vmem:[#allocation6 + $0xb0] sm:$0xff]
    %v662 = vld [vmem:[#allocation6 + $0xb8] sm:$0xff]
    %v663 = vld [vmem:[#allocation6 + $0xc0] sm:$0xff]
    %v664 = vld [vmem:[#allocation6 + $0xc8] sm:$0xff]
    %v665 = vld [vmem:[#allocation6 + $0xd0] sm:$0xff]
    %v666 = vld [vmem:[#allocation6 + $0xd8] sm:$0xff]
    %v667 = vld [vmem:[#allocation6 + $0xe0] sm:$0xff]
    %v668 = vld [vmem:[#allocation6 + $0xe8] sm:$0xff]
    %v669 = vld [vmem:[#allocation6 + $0xf0] sm:$0xff]
    %v670 = vld [vmem:[#allocation6 + $0xf8] sm:$0xff]
    %v671 = vld [vmem:[#allocation6 + $0x100] sm:$0xff]
    %v672 = vld [vmem:[#allocation6 + $0x108] sm:$0xff]
    %v673 = vld [vmem:[#allocation6 + $0x110] sm:$0xff]
    %v674 = vld [vmem:[#allocation6 + $0x118] sm:$0xff]
    %v675 = vld [vmem:[#allocation6 + $0x120] sm:$0xff]
    %v676 = vld [vmem:[#allocation6 + $0x128] sm:$0xff]
    %v677 = vld [vmem:[#allocation6 + $0x130] sm:$0xff]
    %v678 = vld [vmem:[#allocation6 + $0x138] sm:$0xff]
    %v679 = vld [vmem:[#allocation6 + $0x140] sm:$0xff]
    %v680 = vld [vmem:[#allocation6 + $0x148] sm:$0xff]
    %v681 = vld [vmem:[#allocation6 + $0x150] sm:$0xff]
    %v682 = vld [vmem:[#allocation6 + $0x158] sm:$0xff]
    %v683 = vld [vmem:[#allocation6 + $0x160] sm:$0xff]
    %v684 = vld [vmem:[#allocation6 + $0x168] sm:$0xff]
    %v685 = vld [vmem:[#allocation6 + $0x170] sm:$0xff]
    %v686 = vld [vmem:[#allocation6 + $0x178] sm:$0xff]
    %v687 = vld [vmem:[#allocation6 + $0x180] sm:$0xff]
    %v688 = vld [vmem:[#allocation6 + $0x188] sm:$0xff]
    %v689 = vld [vmem:[#allocation6 + $0x190] sm:$0xff]
    %v690 = vld [vmem:[#allocation6 + $0x198] sm:$0xff]
    %v691 = vld [vmem:[#allocation6 + $0x1a0] sm:$0xff]
    %v692 = vld [vmem:[#allocation6 + $0x1a8] sm:$0xff]
    %v693 = vld [vmem:[#allocation6 + $0x1b0] sm:$0xff]
    %v694 = vld [vmem:[#allocation6 + $0x1b8] sm:$0xff]
    %v695 = vld [vmem:[#allocation6 + $0x1c0] sm:$0xff]
    %v696 = vld [vmem:[#allocation6 + $0x1c8] sm:$0xff]
    %v697 = vld [vmem:[#allocation6 + $0x1d0] sm:$0xff]
    %v698 = vld [vmem:[#allocation6 + $0x1d8] sm:$0xff]
    %v699 = vld [vmem:[#allocation6 + $0x1e0] sm:$0xff]
    %v700 = vld [vmem:[#allocation6 + $0x1e8] sm:$0xff]
    %v701 = vld [vmem:[#allocation6 + $0x1f0] sm:$0xff]
    %v702 = vld [vmem:[#allocation6 + $0x1f8] sm:$0xff]
    %703 = vmatprep.subr.mxu0 %v640
    %704 = vmatpush1.msra.mxu0 %v639
    %705 = vmatprep.subr.mxu0 %v644
    %706 = vmatpush1.msra.mxu0 %v643
    %707 = vmatprep.subr.mxu0 %v648
    %708 = vmatpush1.msra.mxu0 %v647
    %709 = vmatprep.subr.mxu0 %v652
    %710 = vmatpush1.msra.mxu0 %v651
    %711 = vmatprep.subr.mxu0 %v656
    %712 = vmatpush1.msra.mxu0 %v655
    %713 = vmatprep.subr.mxu0 %v660
    %714 = vmatpush1.msra.mxu0 %v659
    %715 = vmatprep.subr.mxu0 %v664
    %716 = vmatpush1.msra.mxu0 %v663
    %717 = vmatprep.subr.mxu0 %v668
    %718 = vmatpush1.msra.mxu0 %v667
    %719 = vmatprep.subr.mxu0 %v672
    %720 = vmatpush1.msra.mxu0 %v671
    %721 = vmatprep.subr.mxu0 %v676
    %722 = vmatpush1.msra.mxu0 %v675
    %723 = vmatprep.subr.mxu0 %v680
    %724 = vmatpush1.msra.mxu0 %v679
    %725 = vmatprep.subr.mxu0 %v684
    %726 = vmatpush1.msra.mxu0 %v683
    %727 = vmatprep.subr.mxu0 %v688
    %728 = vmatpush1.msra.mxu0 %v687
    %729 = vmatprep.subr.mxu0 %v692
    %730 = vmatpush1.msra.mxu0 %v691
    %731 = vmatprep.subr.mxu0 %v696
    %732 = vmatpush1.msra.mxu0 %v695
    %733 = vmatprep.subr.mxu0 %v700
    %734 = vmatpush1.msra.mxu0 %v699
    %735 = vmatprep.subr.mxu0 0.0
    %736 = vmatpush1.msra.mxu0 0.0
    %737 = vmatprep.subr.mxu0 0.0
    %738 = vmatpush1.msra.mxu0 0.0
    %739 = vmatprep.subr.mxu0 0.0
    %740 = vmatpush1.msra.mxu0 0.0
    %741 = vmatprep.subr.mxu0 0.0
    %742 = vmatpush1.msra.mxu0 0.0
    %743 = vmatprep.subr.mxu0 0.0
    %744 = vmatpush1.msra.mxu0 0.0
    %745 = vmatprep.subr.mxu0 0.0
    %746 = vmatpush1.msra.mxu0 0.0
    %747 = vmatprep.subr.mxu0 0.0
    %748 = vmatpush1.msra.mxu0 0.0
    %749 = vmatprep.subr.mxu0 0.0
    %750 = vmatpush1.msra.mxu0 0.0
    %751 = vmatprep.subr.mxu0 0.0
    %752 = vmatpush1.msra.mxu0 0.0
    %753 = vmatprep.subr.mxu0 0.0
    %754 = vmatpush1.msra.mxu0 0.0
    %755 = vmatprep.subr.mxu0 0.0
    %756 = vmatpush1.msra.mxu0 0.0
    %757 = vmatprep.subr.mxu0 0.0
    %758 = vmatpush1.msra.mxu0 0.0
    %759 = vmatprep.subr.mxu0 0.0
    %760 = vmatpush1.msra.mxu0 0.0
    %761 = vmatprep.subr.mxu0 0.0
    %762 = vmatpush1.msra.mxu0 0.0
    %763 = vmatprep.subr.mxu0 0.0
    %764 = vmatpush1.msra.mxu0 0.0
    %765 = vmatprep.subr.mxu0 0.0
    %766 = vmatpush1.msra.mxu0 0.0
    %767 = vmatprep.mubr.f32.mxu0 0.0
    %768 = vmatmul.mubr.f32.gmra.mrb[0].mxu0 %v630
    %v769 = vpop.f32.mrb[0].mxu0
    %v770 = vadd.f32 0.0, %v769
    %v771 = vpop.f32.mrb[0].mxu0
    %v772 = vadd.f32 0.0, %v771
    %773 = vdwg.mxu0
    %774 = vmatprep.subr.mxu0 %v642
    %775 = vmatpush1.msra.mxu0 %v641
    %776 = vmatprep.subr.mxu0 %v646
    %777 = vmatpush1.msra.mxu0 %v645
    %778 = vmatprep.subr.mxu0 %v650
    %779 = vmatpush1.msra.mxu0 %v649
    %780 = vmatprep.subr.mxu0 %v654
    %781 = vmatpush1.msra.mxu0 %v653
    %782 = vmatprep.subr.mxu0 %v658
    %783 = vmatpush1.msra.mxu0 %v657
    %784 = vmatprep.subr.mxu0 %v662
    %785 = vmatpush1.msra.mxu0 %v661
    %786 = vmatprep.subr.mxu0 %v666
    %787 = vmatpush1.msra.mxu0 %v665
    %788 = vmatprep.subr.mxu0 %v670
    %789 = vmatpush1.msra.mxu0 %v669
    %790 = vmatprep.subr.mxu0 %v674
    %791 = vmatpush1.msra.mxu0 %v673
    %792 = vmatprep.subr.mxu0 %v678
    %793 = vmatpush1.msra.mxu0 %v677
    %794 = vmatprep.subr.mxu0 %v682
    %795 = vmatpush1.msra.mxu0 %v681
    %796 = vmatprep.subr.mxu0 %v686
    %797 = vmatpush1.msra.mxu0 %v685
    %798 = vmatprep.subr.mxu0 %v690
    %799 = vmatpush1.msra.mxu0 %v689
    %800 = vmatprep.subr.mxu0 %v694
    %801 = vmatpush1.msra.mxu0 %v693
    %802 = vmatprep.subr.mxu0 %v698
    %803 = vmatpush1.msra.mxu0 %v697
    %804 = vmatprep.subr.mxu0 %v702
    %805 = vmatpush1.msra.mxu0 %v701
    %806 = vmatprep.subr.mxu0 0.0
    %807 = vmatpush1.msra.mxu0 0.0
    %808 = vmatprep.subr.mxu0 0.0
    %809 = vmatpush1.msra.mxu0 0.0
    %810 = vmatprep.subr.mxu0 0.0
    %811 = vmatpush1.msra.mxu0 0.0
    %812 = vmatprep.subr.mxu0 0.0
    %813 = vmatpush1.msra.mxu0 0.0
    %814 = vmatprep.subr.mxu0 0.0
    %815 = vmatpush1.msra.mxu0 0.0
    %816 = vmatprep.subr.mxu0 0.0
    %817 = vmatpush1.msra.mxu0 0.0
    %818 = vmatprep.subr.mxu0 0.0
    %819 = vmatpush1.msra.mxu0 0.0
    %820 = vmatprep.subr.mxu0 0.0
    %821 = vmatpush1.msra.mxu0 0.0
    %822 = vmatprep.subr.mxu0 0.0
    %823 = vmatpush1.msra.mxu0 0.0
    %824 = vmatprep.subr.mxu0 0.0
    %825 = vmatpush1.msra.mxu0 0.0
    %826 = vmatprep.subr.mxu0 0.0
    %827 = vmatpush1.msra.mxu0 0.0
    %828 = vmatprep.subr.mxu0 0.0
    %829 = vmatpush1.msra.mxu0 0.0
    %830 = vmatprep.subr.mxu0 0.0
    %831 = vmatpush1.msra.mxu0 0.0
    %832 = vmatprep.subr.mxu0 0.0
    %833 = vmatpush1.msra.mxu0 0.0
    %834 = vmatprep.subr.mxu0 0.0
    %835 = vmatpush1.msra.mxu0 0.0
    %836 = vmatprep.subr.mxu0 0.0
    %837 = vmatpush1.msra.mxu0 0.0
    %838 = vmatprep.mubr.f32.mxu0 0.0
    %839 = vmatmul.mubr.f32.gmra.mrb[0].mxu0 %v630
    %v840 = vpop.f32.mrb[0].mxu0
    %v841 = vadd.f32 0.0, %v840
    %v842 = vpop.f32.mrb[0].mxu0
    %v843 = vadd.f32 0.0, %v842
    %844 = vdwg.mxu0
    %v845 = vadd.f32 %v635, %v770
    %v846 = vadd.f32 %v636, %v772
    %v847 = vadd.f32 %v637, %v841
    %v848 = vadd.f32 %v638, %v843
    %v849 = vxor.u32 %v845, 2147483648
    %v850 = vmul.f32 %v849, 1.442695
    %v851 = vpow.pop %v850
    %v852 = vadd.f32 %v851, 1.0
    %v853 = vrcp.pop %v852
    %v854 = vmul.f32 1.0, %v853
    %v855 = vxor.u32 %v846, 2147483648
    %v856 = vmul.f32 %v855, 1.442695
    %v857 = vpow.pop %v856
    %v858 = vadd.f32 %v857, 1.0
    %v859 = vrcp.pop %v858
    %v860 = vmul.f32 1.0, %v859
    %v861 = vtanh.pop %v847
    %v862 = vxor.u32 %v848, 2147483648
    %v863 = vmul.f32 %v862, 1.442695
    %v864 = vpow.pop %v863
    %v865 = vadd.f32 %v864, 1.0
    %v866 = vrcp.pop %v865
    %v867 = vmul.f32 1.0, %v866
    %v868 = vmul.f32 %v860, %v631
    %v869 = vmul.f32 %v854, %v861
    %v870 = vadd.f32 %v868, %v869
    %v871 = vtanh.pop %v870
    %v872 = vmul.f32 %v867, %v871
    %873 = vst [vmem:[#allocation4] sm:$0xff] %v872
    %874 = vst [vmem:[#allocation5] sm:$0xff] %v870
    %s875 = scalar_lea.vmem [#allocation3], 8
    %876 = vst [vmem:[%s875] sm:$0xff] %v872
    %v877 = vld [vmem:[#allocation4] sm:$0xff]
    %v878 = vld [vmem:[#allocation5] sm:$0xff]
    %s879 = smul.u32 2, 4
    %s880 = smul.addr %s879, 8
    %s881 = scalar_lea.vmem [#allocation2], %s880
    %v882 = vld [vmem:[%s881] sm:$0xff]
    %v883 = vld [vmem:[%s881 + $0x8] sm:$0xff]
    %v884 = vld [vmem:[%s881 + $0x10] sm:$0xff]
    %v885 = vld [vmem:[%s881 + $0x18] sm:$0xff]
    %v886 = vld [vmem:[#allocation6] sm:$0xff]
    %v887 = vld [vmem:[#allocation6 + $0x8] sm:$0xff]
    %v888 = vld [vmem:[#allocation6 + $0x10] sm:$0xff]
    %v889 = vld [vmem:[#allocation6 + $0x18] sm:$0xff]
    %v890 = vld [vmem:[#allocation6 + $0x20] sm:$0xff]
    %v891 = vld [vmem:[#allocation6 + $0x28] sm:$0xff]
    %v892 = vld [vmem:[#allocation6 + $0x30] sm:$0xff]
    %v893 = vld [vmem:[#allocation6 + $0x38] sm:$0xff]
    %v894 = vld [vmem:[#allocation6 + $0x40] sm:$0xff]
    %v895 = vld [vmem:[#allocation6 + $0x48] sm:$0xff]
    %v896 = vld [vmem:[#allocation6 + $0x50] sm:$0xff]
    %v897 = vld [vmem:[#allocation6 + $0x58] sm:$0xff]
    %v898 = vld [vmem:[#allocation6 + $0x60] sm:$0xff]
    %v899 = vld [vmem:[#allocation6 + $0x68] sm:$0xff]
    %v900 = vld [vmem:[#allocation6 + $0x70] sm:$0xff]
    %v901 = vld [vmem:[#allocation6 + $0x78] sm:$0xff]
    %v902 = vld [vmem:[#allocation6 + $0x80] sm:$0xff]
    %v903 = vld [vmem:[#allocation6 + $0x88] sm:$0xff]
    %v904 = vld [vmem:[#allocation6 + $0x90] sm:$0xff]
    %v905 = vld [vmem:[#allocation6 + $0x98] sm:$0xff]
    %v906 = vld [vmem:[#allocation6 + $0xa0] sm:$0xff]
    %v907 = vld [vmem:[#allocation6 + $0xa8] sm:$0xff]
    %v908 = vld [vmem:[#allocation6 + $0xb0] sm:$0xff]
    %v909 = vld [vmem:[#allocation6 + $0xb8] sm:$0xff]
    %v910 = vld [vmem:[#allocation6 + $0xc0] sm:$0xff]
    %v911 = vld [vmem:[#allocation6 + $0xc8] sm:$0xff]
    %v912 = vld [vmem:[#allocation6 + $0xd0] sm:$0xff]
    %v913 = vld [vmem:[#allocation6 + $0xd8] sm:$0xff]
    %v914 = vld [vmem:[#allocation6 + $0xe0] sm:$0xff]
    %v915 = vld [vmem:[#allocation6 + $0xe8] sm:$0xff]
    %v916 = vld [vmem:[#allocation6 + $0xf0] sm:$0xff]
    %v917 = vld [vmem:[#allocation6 + $0xf8] sm:$0xff]
    %v918 = vld [vmem:[#allocation6 + $0x100] sm:$0xff]
    %v919 = vld [vmem:[#allocation6 + $0x108] sm:$0xff]
    %v920 = vld [vmem:[#allocation6 + $0x110] sm:$0xff]
    %v921 = vld [vmem:[#allocation6 + $0x118] sm:$0xff]
    %v922 = vld [vmem:[#allocation6 + $0x120] sm:$0xff]
    %v923 = vld [vmem:[#allocation6 + $0x128] sm:$0xff]
    %v924 = vld [vmem:[#allocation6 + $0x130] sm:$0xff]
    %v925 = vld [vmem:[#allocation6 + $0x138] sm:$0xff]
    %v926 = vld [vmem:[#allocation6 + $0x140] sm:$0xff]
    %v927 = vld [vmem:[#allocation6 + $0x148] sm:$0xff]
    %v928 = vld [vmem:[#allocation6 + $0x150] sm:$0xff]
    %v929 = vld [vmem:[#allocation6 + $0x158] sm:$0xff]
    %v930 = vld [vmem:[#allocation6 + $0x160] sm:$0xff]
    %v931 = vld [vmem:[#allocation6 + $0x168] sm:$0xff]
    %v932 = vld [vmem:[#allocation6 + $0x170] sm:$0xff]
    %v933 = vld [vmem:[#allocation6 + $0x178] sm:$0xff]
    %v934 = vld [vmem:[#allocation6 + $0x180] sm:$0xff]
    %v935 = vld [vmem:[#allocation6 + $0x188] sm:$0xff]
    %v936 = vld [vmem:[#allocation6 + $0x190] sm:$0xff]
    %v937 = vld [vmem:[#allocation6 + $0x198] sm:$0xff]
    %v938 = vld [vmem:[#allocation6 + $0x1a0] sm:$0xff]
    %v939 = vld [vmem:[#allocation6 + $0x1a8] sm:$0xff]
    %v940 = vld [vmem:[#allocation6 + $0x1b0] sm:$0xff]
    %v941 = vld [vmem:[#allocation6 + $0x1b8] sm:$0xff]
    %v942 = vld [vmem:[#allocation6 + $0x1c0] sm:$0xff]
    %v943 = vld [vmem:[#allocation6 + $0x1c8] sm:$0xff]
    %v944 = vld [vmem:[#allocation6 + $0x1d0] sm:$0xff]
    %v945 = vld [vmem:[#allocation6 + $0x1d8] sm:$0xff]
    %v946 = vld [vmem:[#allocation6 + $0x1e0] sm:$0xff]
    %v947 = vld [vmem:[#allocation6 + $0x1e8] sm:$0xff]
    %v948 = vld [vmem:[#allocation6 + $0x1f0] sm:$0xff]
    %v949 = vld [vmem:[#allocation6 + $0x1f8] sm:$0xff]
    %950 = vmatprep.subr.mxu0 %v887
    %951 = vmatpush1.msra.mxu0 %v886
    %952 = vmatprep.subr.mxu0 %v891
    %953 = vmatpush1.msra.mxu0 %v890
    %954 = vmatprep.subr.mxu0 %v895
    %955 = vmatpush1.msra.mxu0 %v894
    %956 = vmatprep.subr.mxu0 %v899
    %957 = vmatpush1.msra.mxu0 %v898
    %958 = vmatprep.subr.mxu0 %v903
    %959 = vmatpush1.msra.mxu0 %v902
    %960 = vmatprep.subr.mxu0 %v907
    %961 = vmatpush1.msra.mxu0 %v906
    %962 = vmatprep.subr.mxu0 %v911
    %963 = vmatpush1.msra.mxu0 %v910
    %964 = vmatprep.subr.mxu0 %v915
    %965 = vmatpush1.msra.mxu0 %v914
    %966 = vmatprep.subr.mxu0 %v919
    %967 = vmatpush1.msra.mxu0 %v918
    %968 = vmatprep.subr.mxu0 %v923
    %969 = vmatpush1.msra.mxu0 %v922
    %970 = vmatprep.subr.mxu0 %v927
    %971 = vmatpush1.msra.mxu0 %v926
    %972 = vmatprep.subr.mxu0 %v931
    %973 = vmatpush1.msra.mxu0 %v930
    %974 = vmatprep.subr.mxu0 %v935
    %975 = vmatpush1.msra.mxu0 %v934
    %976 = vmatprep.subr.mxu0 %v939
    %977 = vmatpush1.msra.mxu0 %v938
    %978 = vmatprep.subr.mxu0 %v943
    %979 = vmatpush1.msra.mxu0 %v942
    %980 = vmatprep.subr.mxu0 %v947
    %981 = vmatpush1.msra.mxu0 %v946
    %982 = vmatprep.subr.mxu0 0.0
    %983 = vmatpush1.msra.mxu0 0.0
    %984 = vmatprep.subr.mxu0 0.0
    %985 = vmatpush1.msra.mxu0 0.0
    %986 = vmatprep.subr.mxu0 0.0
    %987 = vmatpush1.msra.mxu0 0.0
    %988 = vmatprep.subr.mxu0 0.0
    %989 = vmatpush1.msra.mxu0 0.0
    %990 = vmatprep.subr.mxu0 0.0
    %991 = vmatpush1.msra.mxu0 0.0
    %992 = vmatprep.subr.mxu0 0.0
    %993 = vmatpush1.msra.mxu0 0.0
    %994 = vmatprep.subr.mxu0 0.0
    %995 = vmatpush1.msra.mxu0 0.0
    %996 = vmatprep.subr.mxu0 0.0
    %997 = vmatpush1.msra.mxu0 0.0
    %998 = vmatprep.subr.mxu0 0.0
    %999 = vmatpush1.msra.mxu0 0.0
    %1000 = vmatprep.subr.mxu0 0.0
    %1001 = vmatpush1.msra.mxu0 0.0
    %1002 = vmatprep.subr.mxu0 0.0
    %1003 = vmatpush1.msra.mxu0 0.0
    %1004 = vmatprep.subr.mxu0 0.0
    %1005 = vmatpush1.msra.mxu0 0.0
    %1006 = vmatprep.subr.mxu0 0.0
    %1007 = vmatpush1.msra.mxu0 0.0
    %1008 = vmatprep.subr.mxu0 0.0
    %1009 = vmatpush1.msra.mxu0 0.0
    %1010 = vmatprep.subr.mxu0 0.0
    %1011 = vmatpush1.msra.mxu0 0.0
    %1012 = vmatprep.subr.mxu0 0.0
    %1013 = vmatpush1.msra.mxu0 0.0
    %1014 = vmatprep.mubr.f32.mxu0 0.0
    %1015 = vmatmul.mubr.f32.gmra.mrb[0].mxu0 %v877
    %v1016 = vpop.f32.mrb[0].mxu0
    %v1017 = vadd.f32 0.0, %v1016
    %v1018 = vpop.f32.mrb[0].mxu0
    %v1019 = vadd.f32 0.0, %v1018
    %1020 = vdwg.mxu0
    %1021 = vmatprep.subr.mxu0 %v889
    %1022 = vmatpush1.msra.mxu0 %v888
    %1023 = vmatprep.subr.mxu0 %v893
    %1024 = vmatpush1.msra.mxu0 %v892
    %1025 = vmatprep.subr.mxu0 %v897
    %1026 = vmatpush1.msra.mxu0 %v896
    %1027 = vmatprep.subr.mxu0 %v901
    %1028 = vmatpush1.msra.mxu0 %v900
    %1029 = vmatprep.subr.mxu0 %v905
    %1030 = vmatpush1.msra.mxu0 %v904
    %1031 = vmatprep.subr.mxu0 %v909
    %1032 = vmatpush1.msra.mxu0 %v908
    %1033 = vmatprep.subr.mxu0 %v913
    %1034 = vmatpush1.msra.mxu0 %v912
    %1035 = vmatprep.subr.mxu0 %v917
    %1036 = vmatpush1.msra.mxu0 %v916
    %1037 = vmatprep.subr.mxu0 %v921
    %1038 = vmatpush1.msra.mxu0 %v920
    %1039 = vmatprep.subr.mxu0 %v925
    %1040 = vmatpush1.msra.mxu0 %v924
    %1041 = vmatprep.subr.mxu0 %v929
    %1042 = vmatpush1.msra.mxu0 %v928
    %1043 = vmatprep.subr.mxu0 %v933
    %1044 = vmatpush1.msra.mxu0 %v932
    %1045 = vmatprep.subr.mxu0 %v937
    %1046 = vmatpush1.msra.mxu0 %v936
    %1047 = vmatprep.subr.mxu0 %v941
    %1048 = vmatpush1.msra.mxu0 %v940
    %1049 = vmatprep.subr.mxu0 %v945
    %1050 = vmatpush1.msra.mxu0 %v944
    %1051 = vmatprep.subr.mxu0 %v949
    %1052 = vmatpush1.msra.mxu0 %v948
    %1053 = vmatprep.subr.mxu0 0.0
    %1054 = vmatpush1.msra.mxu0 0.0
    %1055 = vmatprep.subr.mxu0 0.0
    %1056 = vmatpush1.msra.mxu0 0.0
    %1057 = vmatprep.subr.mxu0 0.0
    %1058 = vmatpush1.msra.mxu0 0.0
    %1059 = vmatprep.subr.mxu0 0.0
    %1060 = vmatpush1.msra.mxu0 0.0
    %1061 = vmatprep.subr.mxu0 0.0
    %1062 = vmatpush1.msra.mxu0 0.0
    %1063 = vmatprep.subr.mxu0 0.0
    %1064 = vmatpush1.msra.mxu0 0.0
    %1065 = vmatprep.subr.mxu0 0.0
    %1066 = vmatpush1.msra.mxu0 0.0
    %1067 = vmatprep.subr.mxu0 0.0
    %1068 = vmatpush1.msra.mxu0 0.0
    %1069 = vmatprep.subr.mxu0 0.0
    %1070 = vmatpush1.msra.mxu0 0.0
    %1071 = vmatprep.subr.mxu0 0.0
    %1072 = vmatpush1.msra.mxu0 0.0
    %1073 = vmatprep.subr.mxu0 0.0
    %1074 = vmatpush1.msra.mxu0 0.0
    %1075 = vmatprep.subr.mxu0 0.0
    %1076 = vmatpush1.msra.mxu0 0.0
    %1077 = vmatprep.subr.mxu0 0.0
    %1078 = vmatpush1.msra.mxu0 0.0
    %1079 = vmatprep.subr.mxu0 0.0
    %1080 = vmatpush1.msra.mxu0 0.0
    %1081 = vmatprep.subr.mxu0 0.0
    %1082 = vmatpush1.msra.mxu0 0.0
    %1083 = vmatprep.subr.mxu0 0.0
    %1084 = vmatpush1.msra.mxu0 0.0
    %1085 = vmatprep.mubr.f32.mxu0 0.0
    %1086 = vmatmul.mubr.f32.gmra.mrb[0].mxu0 %v877
    %v1087 = vpop.f32.mrb[0].mxu0
    %v1088 = vadd.f32 0.0, %v1087
    %v1089 = vpop.f32.mrb[0].mxu0
    %v1090 = vadd.f32 0.0, %v1089
    %1091 = vdwg.mxu0
    %v1092 = vadd.f32 %v882, %v1017
    %v1093 = vadd.f32 %v883, %v1019
    %v1094 = vadd.f32 %v884, %v1088
    %v1095 = vadd.f32 %v885, %v1090
    %v1096 = vxor.u32 %v1092, 2147483648
    %v1097 = vmul.f32 %v1096, 1.442695
    %v1098 = vpow.pop %v1097
    %v1099 = vadd.f32 %v1098, 1.0
    %v1100 = vrcp.pop %v1099
    %v1101 = vmul.f32 1.0, %v1100
    %v1102 = vxor.u32 %v1093, 2147483648
    %v1103 = vmul.f32 %v1102, 1.442695
    %v1104 = vpow.pop %v1103
    %v1105 = vadd.f32 %v1104, 1.0
    %v1106 = vrcp.pop %v1105
    %v1107 = vmul.f32 1.0, %v1106
    %v1108 = vtanh.pop %v1094
    %v1109 = vxor.u32 %v1095, 2147483648
    %v1110 = vmul.f32 %v1109, 1.442695
    %v1111 = vpow.pop %v1110
    %v1112 = vadd.f32 %v1111, 1.0
    %v1113 = vrcp.pop %v1112
    %v1114 = vmul.f32 1.0, %v1113
    %v1115 = vmul.f32 %v1107, %v878
    %v1116 = vmul.f32 %v1101, %v1108
    %v1117 = vadd.f32 %v1115, %v1116
    %v1118 = vtanh.pop %v1117
    %v1119 = vmul.f32 %v1114, %v1118
    %1120 = vst [vmem:[#allocation4] sm:$0xff] %v1119
    %1121 = vst [vmem:[#allocation5] sm:$0xff] %v1117
    %s1122 = scalar_lea.vmem [#allocation3], 16
    %1123 = vst [vmem:[%s1122] sm:$0xff] %v1119
    %v1124 = vld [vmem:[#allocation4] sm:$0xff]
    %v1125 = vld [vmem:[#allocation5] sm:$0xff]
    %s1126 = smul.u32 3, 4
    %s1127 = smul.addr %s1126, 8
    %s1128 = scalar_lea.vmem [#allocation2], %s1127
    %v1129 = vld [vmem:[%s1128] sm:$0xff]
    %v1130 = vld [vmem:[%s1128 + $0x8] sm:$0xff]
    %v1131 = vld [vmem:[%s1128 + $0x10] sm:$0xff]
    %v1132 = vld [vmem:[%s1128 + $0x18] sm:$0xff]
    %v1133 = vld [vmem:[#allocation6] sm:$0xff]
    %v1134 = vld [vmem:[#allocation6 + $0x8] sm:$0xff]
    %v1135 = vld [vmem:[#allocation6 + $0x10] sm:$0xff]
    %v1136 = vld [vmem:[#allocation6 + $0x18] sm:$0xff]
    %v1137 = vld [vmem:[#allocation6 + $0x20] sm:$0xff]
    %v1138 = vld [vmem:[#allocation6 + $0x28] sm:$0xff]
    %v1139 = vld [vmem:[#allocation6 + $0x30] sm:$0xff]
    %v1140 = vld [vmem:[#allocation6 + $0x38] sm:$0xff]
    %v1141 = vld [vmem:[#allocation6 + $0x40] sm:$0xff]
    %v1142 = vld [vmem:[#allocation6 + $0x48] sm:$0xff]
    %v1143 = vld [vmem:[#allocation6 + $0x50] sm:$0xff]
    %v1144 = vld [vmem:[#allocation6 + $0x58] sm:$0xff]
    %v1145 = vld [vmem:[#allocation6 + $0x60] sm:$0xff]
    %v1146 = vld [vmem:[#allocation6 + $0x68] sm:$0xff]
    %v1147 = vld [vmem:[#allocation6 + $0x70] sm:$0xff]
    %v1148 = vld [vmem:[#allocation6 + $0x78] sm:$0xff]
    %v1149 = vld [vmem:[#allocation6 + $0x80] sm:$0xff]
    %v1150 = vld [vmem:[#allocation6 + $0x88] sm:$0xff]
    %v1151 = vld [vmem:[#allocation6 + $0x90] sm:$0xff]
    %v1152 = vld [vmem:[#allocation6 + $0x98] sm:$0xff]
    %v1153 = vld [vmem:[#allocation6 + $0xa0] sm:$0xff]
    %v1154 = vld [vmem:[#allocation6 + $0xa8] sm:$0xff]
    %v1155 = vld [vmem:[#allocation6 + $0xb0] sm:$0xff]
    %v1156 = vld [vmem:[#allocation6 + $0xb8] sm:$0xff]
    %v1157 = vld [vmem:[#allocation6 + $0xc0] sm:$0xff]
    %v1158 = vld [vmem:[#allocation6 + $0xc8] sm:$0xff]
    %v1159 = vld [vmem:[#allocation6 + $0xd0] sm:$0xff]
    %v1160 = vld [vmem:[#allocation6 + $0xd8] sm:$0xff]
    %v1161 = vld [vmem:[#allocation6 + $0xe0] sm:$0xff]
    %v1162 = vld [vmem:[#allocation6 + $0xe8] sm:$0xff]
    %v1163 = vld [vmem:[#allocation6 + $0xf0] sm:$0xff]
    %v1164 = vld [vmem:[#allocation6 + $0xf8] sm:$0xff]
    %v1165 = vld [vmem:[#allocation6 + $0x100] sm:$0xff]
    %v1166 = vld [vmem:[#allocation6 + $0x108] sm:$0xff]
    %v1167 = vld [vmem:[#allocation6 + $0x110] sm:$0xff]
    %v1168 = vld [vmem:[#allocation6 + $0x118] sm:$0xff]
    %v1169 = vld [vmem:[#allocation6 + $0x120] sm:$0xff]
    %v1170 = vld [vmem:[#allocation6 + $0x128] sm:$0xff]
    %v1171 = vld [vmem:[#allocation6 + $0x130] sm:$0xff]
    %v1172 = vld [vmem:[#allocation6 + $0x138] sm:$0xff]
    %v1173 = vld [vmem:[#allocation6 + $0x140] sm:$0xff]
    %v1174 = vld [vmem:[#allocation6 + $0x148] sm:$0xff]
    %v1175 = vld [vmem:[#allocation6 + $0x150] sm:$0xff]
    %v1176 = vld [vmem:[#allocation6 + $0x158] sm:$0xff]
    %v1177 = vld [vmem:[#allocation6 + $0x160] sm:$0xff]
    %v1178 = vld [vmem:[#allocation6 + $0x168] sm:$0xff]
    %v1179 = vld [vmem:[#allocation6 + $0x170] sm:$0xff]
    %v1180 = vld [vmem:[#allocation6 + $0x178] sm:$0xff]
    %v1181 = vld [vmem:[#allocation6 + $0x180] sm:$0xff]
    %v1182 = vld [vmem:[#allocation6 + $0x188] sm:$0xff]
    %v1183 = vld [vmem:[#allocation6 + $0x190] sm:$0xff]
    %v1184 = vld [vmem:[#allocation6 + $0x198] sm:$0xff]
    %v1185 = vld [vmem:[#allocation6 + $0x1a0] sm:$0xff]
    %v1186 = vld [vmem:[#allocation6 + $0x1a8] sm:$0xff]
    %v1187 = vld [vmem:[#allocation6 + $0x1b0] sm:$0xff]
    %v1188 = vld [vmem:[#allocation6 + $0x1b8] sm:$0xff]
    %v1189 = vld [vmem:[#allocation6 + $0x1c0] sm:$0xff]
    %v1190 = vld [vmem:[#allocation6 + $0x1c8] sm:$0xff]
    %v1191 = vld [vmem:[#allocation6 + $0x1d0] sm:$0xff]
    %v1192 = vld [vmem:[#allocation6 + $0x1d8] sm:$0xff]
    %v1193 = vld [vmem:[#allocation6 + $0x1e0] sm:$0xff]
    %v1194 = vld [vmem:[#allocation6 + $0x1e8] sm:$0xff]
    %v1195 = vld [vmem:[#allocation6 + $0x1f0] sm:$0xff]
    %v1196 = vld [vmem:[#allocation6 + $0x1f8] sm:$0xff]
    %1197 = vmatprep.subr.mxu0 %v1134
    %1198 = vmatpush1.msra.mxu0 %v1133
    %1199 = vmatprep.subr.mxu0 %v1138
    %1200 = vmatpush1.msra.mxu0 %v1137
    %1201 = vmatprep.subr.mxu0 %v1142
    %1202 = vmatpush1.msra.mxu0 %v1141
    %1203 = vmatprep.subr.mxu0 %v1146
    %1204 = vmatpush1.msra.mxu0 %v1145
    %1205 = vmatprep.subr.mxu0 %v1150
    %1206 = vmatpush1.msra.mxu0 %v1149
    %1207 = vmatprep.subr.mxu0 %v1154
    %1208 = vmatpush1.msra.mxu0 %v1153
    %1209 = vmatprep.subr.mxu0 %v1158
    %1210 = vmatpush1.msra.mxu0 %v1157
    %1211 = vmatprep.subr.mxu0 %v1162
    %1212 = vmatpush1.msra.mxu0 %v1161
    %1213 = vmatprep.subr.mxu0 %v1166
    %1214 = vmatpush1.msra.mxu0 %v1165
    %1215 = vmatprep.subr.mxu0 %v1170
    %1216 = vmatpush1.msra.mxu0 %v1169
    %1217 = vmatprep.subr.mxu0 %v1174
    %1218 = vmatpush1.msra.mxu0 %v1173
    %1219 = vmatprep.subr.mxu0 %v1178
    %1220 = vmatpush1.msra.mxu0 %v1177
    %1221 = vmatprep.subr.mxu0 %v1182
    %1222 = vmatpush1.msra.mxu0 %v1181
    %1223 = vmatprep.subr.mxu0 %v1186
    %1224 = vmatpush1.msra.mxu0 %v1185
    %1225 = vmatprep.subr.mxu0 %v1190
    %1226 = vmatpush1.msra.mxu0 %v1189
    %1227 = vmatprep.subr.mxu0 %v1194
    %1228 = vmatpush1.msra.mxu0 %v1193
    %1229 = vmatprep.subr.mxu0 0.0
    %1230 = vmatpush1.msra.mxu0 0.0
    %1231 = vmatprep.subr.mxu0 0.0
    %1232 = vmatpush1.msra.mxu0 0.0
    %1233 = vmatprep.subr.mxu0 0.0
    %1234 = vmatpush1.msra.mxu0 0.0
    %1235 = vmatprep.subr.mxu0 0.0
    %1236 = vmatpush1.msra.mxu0 0.0
    %1237 = vmatprep.subr.mxu0 0.0
    %1238 = vmatpush1.msra.mxu0 0.0
    %1239 = vmatprep.subr.mxu0 0.0
    %1240 = vmatpush1.msra.mxu0 0.0
    %1241 = vmatprep.subr.mxu0 0.0
    %1242 = vmatpush1.msra.mxu0 0.0
    %1243 = vmatprep.subr.mxu0 0.0
    %1244 = vmatpush1.msra.mxu0 0.0
    %1245 = vmatprep.subr.mxu0 0.0
    %1246 = vmatpush1.msra.mxu0 0.0
    %1247 = vmatprep.subr.mxu0 0.0
    %1248 = vmatpush1.msra.mxu0 0.0
    %1249 = vmatprep.subr.mxu0 0.0
    %1250 = vmatpush1.msra.mxu0 0.0
    %1251 = vmatprep.subr.mxu0 0.0
    %1252 = vmatpush1.msra.mxu0 0.0
    %1253 = vmatprep.subr.mxu0 0.0
    %1254 = vmatpush1.msra.mxu0 0.0
    %1255 = vmatprep.subr.mxu0 0.0
    %1256 = vmatpush1.msra.mxu0 0.0
    %1257 = vmatprep.subr.mxu0 0.0
    %1258 = vmatpush1.msra.mxu0 0.0
    %1259 = vmatprep.subr.mxu0 0.0
    %1260 = vmatpush1.msra.mxu0 0.0
    %1261 = vmatprep.mubr.f32.mxu0 0.0
    %1262 = vmatmul.mubr.f32.gmra.mrb[0].mxu0 %v1124
    %v1263 = vpop.f32.mrb[0].mxu0
    %v1264 = vadd.f32 0.0, %v1263
    %v1265 = vpop.f32.mrb[0].mxu0
    %v1266 = vadd.f32 0.0, %v1265
    %1267 = vdwg.mxu0
    %1268 = vmatprep.subr.mxu0 %v1136
    %1269 = vmatpush1.msra.mxu0 %v1135
    %1270 = vmatprep.subr.mxu0 %v1140
    %1271 = vmatpush1.msra.mxu0 %v1139
    %1272 = vmatprep.subr.mxu0 %v1144
    %1273 = vmatpush1.msra.mxu0 %v1143
    %1274 = vmatprep.subr.mxu0 %v1148
    %1275 = vmatpush1.msra.mxu0 %v1147
    %1276 = vmatprep.subr.mxu0 %v1152
    %1277 = vmatpush1.msra.mxu0 %v1151
    %1278 = vmatprep.subr.mxu0 %v1156
    %1279 = vmatpush1.msra.mxu0 %v1155
    %1280 = vmatprep.subr.mxu0 %v1160
    %1281 = vmatpush1.msra.mxu0 %v1159
    %1282 = vmatprep.subr.mxu0 %v1164
    %1283 = vmatpush1.msra.mxu0 %v1163
    %1284 = vmatprep.subr.mxu0 %v1168
    %1285 = vmatpush1.msra.mxu0 %v1167
    %1286 = vmatprep.subr.mxu0 %v1172
    %1287 = vmatpush1.msra.mxu0 %v1171
    %1288 = vmatprep.subr.mxu0 %v1176
    %1289 = vmatpush1.msra.mxu0 %v1175
    %1290 = vmatprep.subr.mxu0 %v1180
    %1291 = vmatpush1.msra.mxu0 %v1179
    %1292 = vmatprep.subr.mxu0 %v1184
    %1293 = vmatpush1.msra.mxu0 %v1183
    %1294 = vmatprep.subr.mxu0 %v1188
    %1295 = vmatpush1.msra.mxu0 %v1187
    %1296 = vmatprep.subr.mxu0 %v1192
    %1297 = vmatpush1.msra.mxu0 %v1191
    %1298 = vmatprep.subr.mxu0 %v1196
    %1299 = vmatpush1.msra.mxu0 %v1195
    %1300 = vmatprep.subr.mxu0 0.0
    %1301 = vmatpush1.msra.mxu0 0.0
    %1302 = vmatprep.subr.mxu0 0.0
    %1303 = vmatpush1.msra.mxu0 0.0
    %1304 = vmatprep.subr.mxu0 0.0
    %1305 = vmatpush1.msra.mxu0 0.0
    %1306 = vmatprep.subr.mxu0 0.0
    %1307 = vmatpush1.msra.mxu0 0.0
    %1308 = vmatprep.subr.mxu0 0.0
    %1309 = vmatpush1.msra.mxu0 0.0
    %1310 = vmatprep.subr.mxu0 0.0
    %1311 = vmatpush1.msra.mxu0 0.0
    %1312 = vmatprep.subr.mxu0 0.0
    %1313 = vmatpush1.msra.mxu0 0.0
    %1314 = vmatprep.subr.mxu0 0.0
    %1315 = vmatpush1.msra.mxu0 0.0
    %1316 = vmatprep.subr.mxu0 0.0
    %1317 = vmatpush1.msra.mxu0 0.0
    %1318 = vmatprep.subr.mxu0 0.0
    %1319 = vmatpush1.msra.mxu0 0.0
    %1320 = vmatprep.subr.mxu0 0.0
    %1321 = vmatpush1.msra.mxu0 0.0
    %1322 = vmatprep.subr.mxu0 0.0
    %1323 = vmatpush1.msra.mxu0 0.0
    %1324 = vmatprep.subr.mxu0 0.0
    %1325 = vmatpush1.msra.mxu0 0.0
    %1326 = vmatprep.subr.mxu0 0.0
    %1327 = vmatpush1.msra.mxu0 0.0
    %1328 = vmatprep.subr.mxu0 0.0
    %1329 = vmatpush1.msra.mxu0 0.0
    %1330 = vmatprep.subr.mxu0 0.0
    %1331 = vmatpush1.msra.mxu0 0.0
    %1332 = vmatprep.mubr.f32.mxu0 0.0
    %1333 = vmatmul.mubr.f32.gmra.mrb[0].mxu0 %v1124
    %v1334 = vpop.f32.mrb[0].mxu0
    %v1335 = vadd.f32 0.0, %v1334
    %v1336 = vpop.f32.mrb[0].mxu0
    %v1337 = vadd.f32 0.0, %v1336
    %1338 = vdwg.mxu0
    %v1339 = vadd.f32 %v1129, %v1264
    %v1340 = vadd.f32 %v1130, %v1266
    %v1341 = vadd.f32 %v1131, %v1335
    %v1342 = vadd.f32 %v1132, %v1337
    %v1343 = vxor.u32 %v1339, 2147483648
    %v1344 = vmul.f32 %v1343, 1.442695
    %v1345 = vpow.pop %v1344
    %v1346 = vadd.f32 %v1345, 1.0
    %v1347 = vrcp.pop %v1346
    %v1348 = vmul.f32 1.0, %v1347
    %v1349 = vxor.u32 %v1340, 2147483648
    %v1350 = vmul.f32 %v1349, 1.442695
    %v1351 = vpow.pop %v1350
    %v1352 = vadd.f32 %v1351, 1.0
    %v1353 = vrcp.pop %v1352
    %v1354 = vmul.f32 1.0, %v1353
    %v1355 = vtanh.pop %v1341
    %v1356 = vxor.u32 %v1342, 2147483648
    %v1357 = vmul.f32 %v1356, 1.442695
    %v1358 = vpow.pop %v1357
    %v1359 = vadd.f32 %v1358, 1.0
    %v1360 = vrcp.pop %v1359
    %v1361 = vmul.f32 1.0, %v1360
    %v1362 = vmul.f32 %v1354, %v1125
    %v1363 = vmul.f32 %v1348, %v1355
    %v1364 = vadd.f32 %v1362, %v1363
    %v1365 = vtanh.pop %v1364
    %v1366 = vmul.f32 %v1361, %v1365
    %1367 = vst [vmem:[#allocation4] sm:$0xff] %v1366
    %1368 = vst [vmem:[#allocation5] sm:$0xff] %v1364
    %s1369 = scalar_lea.vmem [#allocation3], 24
    %1370 = vst [vmem:[%s1369] sm:$0xff] %v1366
    %v1371 = vld [vmem:[#allocation4] sm:$0xff]
    %v1372 = vld [vmem:[#allocation5] sm:$0xff]
    %s1373 = smul.u32 4, 4
    %s1374 = smul.addr %s1373, 8
    %s1375 = scalar_lea.vmem [#allocation2], %s1374
    %v1376 = vld [vmem:[%s1375] sm:$0xff]
    %v1377 = vld [vmem:[%s1375 + $0x8] sm:$0xff]
    %v1378 = vld [vmem:[%s1375 + $0x10] sm:$0xff]
    %v1379 = vld [vmem:[%s1375 + $0x18] sm:$0xff]
    %v1380 = vld [vmem:[#allocation6] sm:$0xff]
    %v1381 = vld [vmem:[#allocation6 + $0x8] sm:$0xff]
    %v1382 = vld [vmem:[#allocation6 + $0x10] sm:$0xff]
    %v1383 = vld [vmem:[#allocation6 + $0x18] sm:$0xff]
    %v1384 = vld [vmem:[#allocation6 + $0x20] sm:$0xff]
    %v1385 = vld [vmem:[#allocation6 + $0x28] sm:$0xff]
    %v1386 = vld [vmem:[#allocation6 + $0x30] sm:$0xff]
    %v1387 = vld [vmem:[#allocation6 + $0x38] sm:$0xff]
    %v1388 = vld [vmem:[#allocation6 + $0x40] sm:$0xff]
    %v1389 = vld [vmem:[#allocation6 + $0x48] sm:$0xff]
    %v1390 = vld [vmem:[#allocation6 + $0x50] sm:$0xff]
    %v1391 = vld [vmem:[#allocation6 + $0x58] sm:$0xff]
    %v1392 = vld [vmem:[#allocation6 + $0x60] sm:$0xff]
    %v1393 = vld [vmem:[#allocation6 + $0x68] sm:$0xff]
    %v1394 = vld [vmem:[#allocation6 + $0x70] sm:$0xff]
    %v1395 = vld [vmem:[#allocation6 + $0x78] sm:$0xff]
    %v1396 = vld [vmem:[#allocation6 + $0x80] sm:$0xff]
    %v1397 = vld [vmem:[#allocation6 + $0x88] sm:$0xff]
    %v1398 = vld [vmem:[#allocation6 + $0x90] sm:$0xff]
    %v1399 = vld [vmem:[#allocation6 + $0x98] sm:$0xff]
    %v1400 = vld [vmem:[#allocation6 + $0xa0] sm:$0xff]
    %v1401 = vld [vmem:[#allocation6 + $0xa8] sm:$0xff]
    %v1402 = vld [vmem:[#allocation6 + $0xb0] sm:$0xff]
    %v1403 = vld [vmem:[#allocation6 + $0xb8] sm:$0xff]
    %v1404 = vld [vmem:[#allocation6 + $0xc0] sm:$0xff]
    %v1405 = vld [vmem:[#allocation6 + $0xc8] sm:$0xff]
    %v1406 = vld [vmem:[#allocation6 + $0xd0] sm:$0xff]
    %v1407 = vld [vmem:[#allocation6 + $0xd8] sm:$0xff]
    %v1408 = vld [vmem:[#allocation6 + $0xe0] sm:$0xff]
    %v1409 = vld [vmem:[#allocation6 + $0xe8] sm:$0xff]
    %v1410 = vld [vmem:[#allocation6 + $0xf0] sm:$0xff]
    %v1411 = vld [vmem:[#allocation6 + $0xf8] sm:$0xff]
    %v1412 = vld [vmem:[#allocation6 + $0x100] sm:$0xff]
    %v1413 = vld [vmem:[#allocation6 + $0x108] sm:$0xff]
    %v1414 = vld [vmem:[#allocation6 + $0x110] sm:$0xff]
    %v1415 = vld [vmem:[#allocation6 + $0x118] sm:$0xff]
    %v1416 = vld [vmem:[#allocation6 + $0x120] sm:$0xff]
    %v1417 = vld [vmem:[#allocation6 + $0x128] sm:$0xff]
    %v1418 = vld [vmem:[#allocation6 + $0x130] sm:$0xff]
    %v1419 = vld [vmem:[#allocation6 + $0x138] sm:$0xff]
    %v1420 = vld [vmem:[#allocation6 + $0x140] sm:$0xff]
    %v1421 = vld [vmem:[#allocation6 + $0x148] sm:$0xff]
    %v1422 = vld [vmem:[#allocation6 + $0x150] sm:$0xff]
    %v1423 = vld [vmem:[#allocation6 + $0x158] sm:$0xff]
    %v1424 = vld [vmem:[#allocation6 + $0x160] sm:$0xff]
    %v1425 = vld [vmem:[#allocation6 + $0x168] sm:$0xff]
    %v1426 = vld [vmem:[#allocation6 + $0x170] sm:$0xff]
    %v1427 = vld [vmem:[#allocation6 + $0x178] sm:$0xff]
    %v1428 = vld [vmem:[#allocation6 + $0x180] sm:$0xff]
    %v1429 = vld [vmem:[#allocation6 + $0x188] sm:$0xff]
    %v1430 = vld [vmem:[#allocation6 + $0x190] sm:$0xff]
    %v1431 = vld [vmem:[#allocation6 + $0x198] sm:$0xff]
    %v1432 = vld [vmem:[#allocation6 + $0x1a0] sm:$0xff]
    %v1433 = vld [vmem:[#allocation6 + $0x1a8] sm:$0xff]
    %v1434 = vld [vmem:[#allocation6 + $0x1b0] sm:$0xff]
    %v1435 = vld [vmem:[#allocation6 + $0x1b8] sm:$0xff]
    %v1436 = vld [vmem:[#allocation6 + $0x1c0] sm:$0xff]
    %v1437 = vld [vmem:[#allocation6 + $0x1c8] sm:$0xff]
    %v1438 = vld [vmem:[#allocation6 + $0x1d0] sm:$0xff]
    %v1439 = vld [vmem:[#allocation6 + $0x1d8] sm:$0xff]
    %v1440 = vld [vmem:[#allocation6 + $0x1e0] sm:$0xff]
    %v1441 = vld [vmem:[#allocation6 + $0x1e8] sm:$0xff]
    %v1442 = vld [vmem:[#allocation6 + $0x1f0] sm:$0xff]
    %v1443 = vld [vmem:[#allocation6 + $0x1f8] sm:$0xff]
    %1444 = vmatprep.subr.mxu0 %v1381
    %1445 = vmatpush1.msra.mxu0 %v1380
    %1446 = vmatprep.subr.mxu0 %v1385
    %1447 = vmatpush1.msra.mxu0 %v1384
    %1448 = vmatprep.subr.mxu0 %v1389
    %1449 = vmatpush1.msra.mxu0 %v1388
    %1450 = vmatprep.subr.mxu0 %v1393
    %1451 = vmatpush1.msra.mxu0 %v1392
    %1452 = vmatprep.subr.mxu0 %v1397
    %1453 = vmatpush1.msra.mxu0 %v1396
    %1454 = vmatprep.subr.mxu0 %v1401
    %1455 = vmatpush1.msra.mxu0 %v1400
    %1456 = vmatprep.subr.mxu0 %v1405
    %1457 = vmatpush1.msra.mxu0 %v1404
    %1458 = vmatprep.subr.mxu0 %v1409
    %1459 = vmatpush1.msra.mxu0 %v1408
    %1460 = vmatprep.subr.mxu0 %v1413
    %1461 = vmatpush1.msra.mxu0 %v1412
    %1462 = vmatprep.subr.mxu0 %v1417
    %1463 = vmatpush1.msra.mxu0 %v1416
    %1464 = vmatprep.subr.mxu0 %v1421
    %1465 = vmatpush1.msra.mxu0 %v1420
    %1466 = vmatprep.subr.mxu0 %v1425
    %1467 = vmatpush1.msra.mxu0 %v1424
    %1468 = vmatprep.subr.mxu0 %v1429
    %1469 = vmatpush1.msra.mxu0 %v1428
    %1470 = vmatprep.subr.mxu0 %v1433
    %1471 = vmatpush1.msra.mxu0 %v1432
    %1472 = vmatprep.subr.mxu0 %v1437
    %1473 = vmatpush1.msra.mxu0 %v1436
    %1474 = vmatprep.subr.mxu0 %v1441
    %1475 = vmatpush1.msra.mxu0 %v1440
    %1476 = vmatprep.subr.mxu0 0.0
    %1477 = vmatpush1.msra.mxu0 0.0
    %1478 = vmatprep.subr.mxu0 0.0
    %1479 = vmatpush1.msra.mxu0 0.0
    %1480 = vmatprep.subr.mxu0 0.0
    %1481 = vmatpush1.msra.mxu0 0.0
    %1482 = vmatprep.subr.mxu0 0.0
    %1483 = vmatpush1.msra.mxu0 0.0
    %1484 = vmatprep.subr.mxu0 0.0
    %1485 = vmatpush1.msra.mxu0 0.0
    %1486 = vmatprep.subr.mxu0 0.0
    %1487 = vmatpush1.msra.mxu0 0.0
    %1488 = vmatprep.subr.mxu0 0.0
    %1489 = vmatpush1.msra.mxu0 0.0
    %1490 = vmatprep.subr.mxu0 0.0
    %1491 = vmatpush1.msra.mxu0 0.0
    %1492 = vmatprep.subr.mxu0 0.0
    %1493 = vmatpush1.msra.mxu0 0.0
    %1494 = vmatprep.subr.mxu0 0.0
    %1495 = vmatpush1.msra.mxu0 0.0
    %1496 = vmatprep.subr.mxu0 0.0
    %1497 = vmatpush1.msra.mxu0 0.0
    %1498 = vmatprep.subr.mxu0 0.0
    %1499 = vmatpush1.msra.mxu0 0.0
    %1500 = vmatprep.subr.mxu0 0.0
    %1501 = vmatpush1.msra.mxu0 0.0
    %1502 = vmatprep.subr.mxu0 0.0
    %1503 = vmatpush1.msra.mxu0 0.0
    %1504 = vmatprep.subr.mxu0 0.0
    %1505 = vmatpush1.msra.mxu0 0.0
    %1506 = vmatprep.subr.mxu0 0.0
    %1507 = vmatpush1.msra.mxu0 0.0
    %1508 = vmatprep.mubr.f32.mxu0 0.0
    %1509 = vmatmul.mubr.f32.gmra.mrb[0].mxu0 %v1371
    %v1510 = vpop.f32.mrb[0].mxu0
    %v1511 = vadd.f32 0.0, %v1510
    %v1512 = vpop.f32.mrb[0].mxu0
    %v1513 = vadd.f32 0.0, %v1512
    %1514 = vdwg.mxu0
    %1515 = vmatprep.subr.mxu0 %v1383
    %1516 = vmatpush1.msra.mxu0 %v1382
    %1517 = vmatprep.subr.mxu0 %v1387
    %1518 = vmatpush1.msra.mxu0 %v1386
    %1519 = vmatprep.subr.mxu0 %v1391
    %1520 = vmatpush1.msra.mxu0 %v1390
    %1521 = vmatprep.subr.mxu0 %v1395
    %1522 = vmatpush1.msra.mxu0 %v1394
    %1523 = vmatprep.subr.mxu0 %v1399
    %1524 = vmatpush1.msra.mxu0 %v1398
    %1525 = vmatprep.subr.mxu0 %v1403
    %1526 = vmatpush1.msra.mxu0 %v1402
    %1527 = vmatprep.subr.mxu0 %v1407
    %1528 = vmatpush1.msra.mxu0 %v1406
    %1529 = vmatprep.subr.mxu0 %v1411
    %1530 = vmatpush1.msra.mxu0 %v1410
    %1531 = vmatprep.subr.mxu0 %v1415
    %1532 = vmatpush1.msra.mxu0 %v1414
    %1533 = vmatprep.subr.mxu0 %v1419
    %1534 = vmatpush1.msra.mxu0 %v1418
    %1535 = vmatprep.subr.mxu0 %v1423
    %1536 = vmatpush1.msra.mxu0 %v1422
    %1537 = vmatprep.subr.mxu0 %v1427
    %1538 = vmatpush1.msra.mxu0 %v1426
    %1539 = vmatprep.subr.mxu0 %v1431
    %1540 = vmatpush1.msra.mxu0 %v1430
    %1541 = vmatprep.subr.mxu0 %v1435
    %1542 = vmatpush1.msra.mxu0 %v1434
    %1543 = vmatprep.subr.mxu0 %v1439
    %1544 = vmatpush1.msra.mxu0 %v1438
    %1545 = vmatprep.subr.mxu0 %v1443
    %1546 = vmatpush1.msra.mxu0 %v1442
    %1547 = vmatprep.subr.mxu0 0.0
    %1548 = vmatpush1.msra.mxu0 0.0
    %1549 = vmatprep.subr.mxu0 0.0
    %1550 = vmatpush1.msra.mxu0 0.0
    %1551 = vmatprep.subr.mxu0 0.0
    %1552 = vmatpush1.msra.mxu0 0.0
    %1553 = vmatprep.subr.mxu0 0.0
    %1554 = vmatpush1.msra.mxu0 0.0
    %1555 = vmatprep.subr.mxu0 0.0
    %1556 = vmatpush1.msra.mxu0 0.0
    %1557 = vmatprep.subr.mxu0 0.0
    %1558 = vmatpush1.msra.mxu0 0.0
    %1559 = vmatprep.subr.mxu0 0.0
    %1560 = vmatpush1.msra.mxu0 0.0
    %1561 = vmatprep.subr.mxu0 0.0
    %1562 = vmatpush1.msra.mxu0 0.0
    %1563 = vmatprep.subr.mxu0 0.0
    %1564 = vmatpush1.msra.mxu0 0.0
    %1565 = vmatprep.subr.mxu0 0.0
    %1566 = vmatpush1.msra.mxu0 0.0
    %1567 = vmatprep.subr.mxu0 0.0
    %1568 = vmatpush1.msra.mxu0 0.0
    %1569 = vmatprep.subr.mxu0 0.0
    %1570 = vmatpush1.msra.mxu0 0.0
    %1571 = vmatprep.subr.mxu0 0.0
    %1572 = vmatpush1.msra.mxu0 0.0
    %1573 = vmatprep.subr.mxu0 0.0
    %1574 = vmatpush1.msra.mxu0 0.0
    %1575 = vmatprep.subr.mxu0 0.0
    %1576 = vmatpush1.msra.mxu0 0.0
    %1577 = vmatprep.subr.mxu0 0.0
    %1578 = vmatpush1.msra.mxu0 0.0
    %1579 = vmatprep.mubr.f32.mxu0 0.0
    %1580 = vmatmul.mubr.f32.gmra.mrb[0].mxu0 %v1371
    %v1581 = vpop.f32.mrb[0].mxu0
    %v1582 = vadd.f32 0.0, %v1581
    %v1583 = vpop.f32.mrb[0].mxu0
    %v1584 = vadd.f32 0.0, %v1583
    %1585 = vdwg.mxu0
    %v1586 = vadd.f32 %v1376, %v1511
    %v1587 = vadd.f32 %v1377, %v1513
    %v1588 = vadd.f32 %v1378, %v1582
    %v1589 = vadd.f32 %v1379, %v1584
    %v1590 = vxor.u32 %v1586, 2147483648
    %v1591 = vmul.f32 %v1590, 1.442695
    %v1592 = vpow.pop %v1591
    %v1593 = vadd.f32 %v1592, 1.0
    %v1594 = vrcp.pop %v1593
    %v1595 = vmul.f32 1.0, %v1594
    %v1596 = vxor.u32 %v1587, 2147483648
    %v1597 = vmul.f32 %v1596, 1.442695
    %v1598 = vpow.pop %v1597
    %v1599 = vadd.f32 %v1598, 1.0
    %v1600 = vrcp.pop %v1599
    %v1601 = vmul.f32 1.0, %v1600
    %v1602 = vtanh.pop %v1588
    %v1603 = vxor.u32 %v1589, 2147483648
    %v1604 = vmul.f32 %v1603, 1.442695
    %v1605 = vpow.pop %v1604
    %v1606 = vadd.f32 %v1605, 1.0
    %v1607 = vrcp.pop %v1606
    %v1608 = vmul.f32 1.0, %v1607
    %v1609 = vmul.f32 %v1601, %v1372
    %v1610 = vmul.f32 %v1595, %v1602
    %v1611 = vadd.f32 %v1609, %v1610
    %v1612 = vtanh.pop %v1611
    %v1613 = vmul.f32 %v1608, %v1612
    %1614 = vst [vmem:[#allocation4] sm:$0xff] %v1613
    %1615 = vst [vmem:[#allocation5] sm:$0xff] %v1611
    %s1616 = scalar_lea.vmem [#allocation3], 32
    %1617 = vst [vmem:[%s1616] sm:$0xff] %v1613
    %v1618 = vld [vmem:[#allocation4] sm:$0xff]
    %v1619 = vld [vmem:[#allocation5] sm:$0xff]
    %s1620 = smul.u32 5, 4
    %s1621 = smul.addr %s1620, 8
    %s1622 = scalar_lea.vmem [#allocation2], %s1621
    %v1623 = vld [vmem:[%s1622] sm:$0xff]
    %v1624 = vld [vmem:[%s1622 + $0x8] sm:$0xff]
    %v1625 = vld [vmem:[%s1622 + $0x10] sm:$0xff]
    %v1626 = vld [vmem:[%s1622 + $0x18] sm:$0xff]
    %v1627 = vld [vmem:[#allocation6] sm:$0xff]
    %v1628 = vld [vmem:[#allocation6 + $0x8] sm:$0xff]
    %v1629 = vld [vmem:[#allocation6 + $0x10] sm:$0xff]
    %v1630 = vld [vmem:[#allocation6 + $0x18] sm:$0xff]
    %v1631 = vld [vmem:[#allocation6 + $0x20] sm:$0xff]
    %v1632 = vld [vmem:[#allocation6 + $0x28] sm:$0xff]
    %v1633 = vld [vmem:[#allocation6 + $0x30] sm:$0xff]
    %v1634 = vld [vmem:[#allocation6 + $0x38] sm:$0xff]
    %v1635 = vld [vmem:[#allocation6 + $0x40] sm:$0xff]
    %v1636 = vld [vmem:[#allocation6 + $0x48] sm:$0xff]
    %v1637 = vld [vmem:[#allocation6 + $0x50] sm:$0xff]
    %v1638 = vld [vmem:[#allocation6 + $0x58] sm:$0xff]
    %v1639 = vld [vmem:[#allocation6 + $0x60] sm:$0xff]
    %v1640 = vld [vmem:[#allocation6 + $0x68] sm:$0xff]
    %v1641 = vld [vmem:[#allocation6 + $0x70] sm:$0xff]
    %v1642 = vld [vmem:[#allocation6 + $0x78] sm:$0xff]
    %v1643 = vld [vmem:[#allocation6 + $0x80] sm:$0xff]
    %v1644 = vld [vmem:[#allocation6 + $0x88] sm:$0xff]
    %v1645 = vld [vmem:[#allocation6 + $0x90] sm:$0xff]
    %v1646 = vld [vmem:[#allocation6 + $0x98] sm:$0xff]
    %v1647 = vld [vmem:[#allocation6 + $0xa0] sm:$0xff]
    %v1648 = vld [vmem:[#allocation6 + $0xa8] sm:$0xff]
    %v1649 = vld [vmem:[#allocation6 + $0xb0] sm:$0xff]
    %v1650 = vld [vmem:[#allocation6 + $0xb8] sm:$0xff]
    %v1651 = vld [vmem:[#allocation6 + $0xc0] sm:$0xff]
    %v1652 = vld [vmem:[#allocation6 + $0xc8] sm:$0xff]
    %v1653 = vld [vmem:[#allocation6 + $0xd0] sm:$0xff]
    %v1654 = vld [vmem:[#allocation6 + $0xd8] sm:$0xff]
    %v1655 = vld [vmem:[#allocation6 + $0xe0] sm:$0xff]
    %v1656 = vld [vmem:[#allocation6 + $0xe8] sm:$0xff]
    %v1657 = vld [vmem:[#allocation6 + $0xf0] sm:$0xff]
    %v1658 = vld [vmem:[#allocation6 + $0xf8] sm:$0xff]
    %v1659 = vld [vmem:[#allocation6 + $0x100] sm:$0xff]
    %v1660 = vld [vmem:[#allocation6 + $0x108] sm:$0xff]
    %v1661 = vld [vmem:[#allocation6 + $0x110] sm:$0xff]
    %v1662 = vld [vmem:[#allocation6 + $0x118] sm:$0xff]
    %v1663 = vld [vmem:[#allocation6 + $0x120] sm:$0xff]
    %v1664 = vld [vmem:[#allocation6 + $0x128] sm:$0xff]
    %v1665 = vld [vmem:[#allocation6 + $0x130] sm:$0xff]
    %v1666 = vld [vmem:[#allocation6 + $0x138] sm:$0xff]
    %v1667 = vld [vmem:[#allocation6 + $0x140] sm:$0xff]
    %v1668 = vld [vmem:[#allocation6 + $0x148] sm:$0xff]
    %v1669 = vld [vmem:[#allocation6 + $0x150] sm:$0xff]
    %v1670 = vld [vmem:[#allocation6 + $0x158] sm:$0xff]
    %v1671 = vld [vmem:[#allocation6 + $0x160] sm:$0xff]
    %v1672 = vld [vmem:[#allocation6 + $0x168] sm:$0xff]
    %v1673 = vld [vmem:[#allocation6 + $0x170] sm:$0xff]
    %v1674 = vld [vmem:[#allocation6 + $0x178] sm:$0xff]
    %v1675 = vld [vmem:[#allocation6 + $0x180] sm:$0xff]
    %v1676 = vld [vmem:[#allocation6 + $0x188] sm:$0xff]
    %v1677 = vld [vmem:[#allocation6 + $0x190] sm:$0xff]
    %v1678 = vld [vmem:[#allocation6 + $0x198] sm:$0xff]
    %v1679 = vld [vmem:[#allocation6 + $0x1a0] sm:$0xff]
    %v1680 = vld [vmem:[#allocation6 + $0x1a8] sm:$0xff]
    %v1681 = vld [vmem:[#allocation6 + $0x1b0] sm:$0xff]
    %v1682 = vld [vmem:[#allocation6 + $0x1b8] sm:$0xff]
    %v1683 = vld [vmem:[#allocation6 + $0x1c0] sm:$0xff]
    %v1684 = vld [vmem:[#allocation6 + $0x1c8] sm:$0xff]
    %v1685 = vld [vmem:[#allocation6 + $0x1d0] sm:$0xff]
    %v1686 = vld [vmem:[#allocation6 + $0x1d8] sm:$0xff]
    %v1687 = vld [vmem:[#allocation6 + $0x1e0] sm:$0xff]
    %v1688 = vld [vmem:[#allocation6 + $0x1e8] sm:$0xff]
    %v1689 = vld [vmem:[#allocation6 + $0x1f0] sm:$0xff]
    %v1690 = vld [vmem:[#allocation6 + $0x1f8] sm:$0xff]
    %1691 = vmatprep.subr.mxu0 %v1628
    %1692 = vmatpush1.msra.mxu0 %v1627
    %1693 = vmatprep.subr.mxu0 %v1632
    %1694 = vmatpush1.msra.mxu0 %v1631
    %1695 = vmatprep.subr.mxu0 %v1636
    %1696 = vmatpush1.msra.mxu0 %v1635
    %1697 = vmatprep.subr.mxu0 %v1640
    %1698 = vmatpush1.msra.mxu0 %v1639
    %1699 = vmatprep.subr.mxu0 %v1644
    %1700 = vmatpush1.msra.mxu0 %v1643
    %1701 = vmatprep.subr.mxu0 %v1648
    %1702 = vmatpush1.msra.mxu0 %v1647
    %1703 = vmatprep.subr.mxu0 %v1652
    %1704 = vmatpush1.msra.mxu0 %v1651
    %1705 = vmatprep.subr.mxu0 %v1656
    %1706 = vmatpush1.msra.mxu0 %v1655
    %1707 = vmatprep.subr.mxu0 %v1660
    %1708 = vmatpush1.msra.mxu0 %v1659
    %1709 = vmatprep.subr.mxu0 %v1664
    %1710 = vmatpush1.msra.mxu0 %v1663
    %1711 = vmatprep.subr.mxu0 %v1668
    %1712 = vmatpush1.msra.mxu0 %v1667
    %1713 = vmatprep.subr.mxu0 %v1672
    %1714 = vmatpush1.msra.mxu0 %v1671
    %1715 = vmatprep.subr.mxu0 %v1676
    %1716 = vmatpush1.msra.mxu0 %v1675
    %1717 = vmatprep.subr.mxu0 %v1680
    %1718 = vmatpush1.msra.mxu0 %v1679
    %1719 = vmatprep.subr.mxu0 %v1684
    %1720 = vmatpush1.msra.mxu0 %v1683
    %1721 = vmatprep.subr.mxu0 %v1688
    %1722 = vmatpush1.msra.mxu0 %v1687
    %1723 = vmatprep.subr.mxu0 0.0
    %1724 = vmatpush1.msra.mxu0 0.0
    %1725 = vmatprep.subr.mxu0 0.0
    %1726 = vmatpush1.msra.mxu0 0.0
    %1727 = vmatprep.subr.mxu0 0.0
    %1728 = vmatpush1.msra.mxu0 0.0
    %1729 = vmatprep.subr.mxu0 0.0
    %1730 = vmatpush1.msra.mxu0 0.0
    %1731 = vmatprep.subr.mxu0 0.0
    %1732 = vmatpush1.msra.mxu0 0.0
    %1733 = vmatprep.subr.mxu0 0.0
    %1734 = vmatpush1.msra.mxu0 0.0
    %1735 = vmatprep.subr.mxu0 0.0
    %1736 = vmatpush1.msra.mxu0 0.0
    %1737 = vmatprep.subr.mxu0 0.0
    %1738 = vmatpush1.msra.mxu0 0.0
    %1739 = vmatprep.subr.mxu0 0.0
    %1740 = vmatpush1.msra.mxu0 0.0
    %1741 = vmatprep.subr.mxu0 0.0
    %1742 = vmatpush1.msra.mxu0 0.0
    %1743 = vmatprep.subr.mxu0 0.0
    %1744 = vmatpush1.msra.mxu0 0.0
    %1745 = vmatprep.subr.mxu0 0.0
    %1746 = vmatpush1.msra.mxu0 0.0
    %1747 = vmatprep.subr.mxu0 0.0
    %1748 = vmatpush1.msra.mxu0 0.0
    %1749 = vmatprep.subr.mxu0 0.0
    %1750 = vmatpush1.msra.mxu0 0.0
    %1751 = vmatprep.subr.mxu0 0.0
    %1752 = vmatpush1.msra.mxu0 0.0
    %1753 = vmatprep.subr.mxu0 0.0
    %1754 = vmatpush1.msra.mxu0 0.0
    %1755 = vmatprep.mubr.f32.mxu0 0.0
    %1756 = vmatmul.mubr.f32.gmra.mrb[0].mxu0 %v1618
    %v1757 = vpop.f32.mrb[0].mxu0
    %v1758 = vadd.f32 0.0, %v1757
    %v1759 = vpop.f32.mrb[0].mxu0
    %v1760 = vadd.f32 0.0, %v1759
    %1761 = vdwg.mxu0
    %1762 = vmatprep.subr.mxu0 %v1630
    %1763 = vmatpush1.msra.mxu0 %v1629
    %1764 = vmatprep.subr.mxu0 %v1634
    %1765 = vmatpush1.msra.mxu0 %v1633
    %1766 = vmatprep.subr.mxu0 %v1638
    %1767 = vmatpush1.msra.mxu0 %v1637
    %1768 = vmatprep.subr.mxu0 %v1642
    %1769 = vmatpush1.msra.mxu0 %v1641
    %1770 = vmatprep.subr.mxu0 %v1646
    %1771 = vmatpush1.msra.mxu0 %v1645
    %1772 = vmatprep.subr.mxu0 %v1650
    %1773 = vmatpush1.msra.mxu0 %v1649
    %1774 = vmatprep.subr.mxu0 %v1654
    %1775 = vmatpush1.msra.mxu0 %v1653
    %1776 = vmatprep.subr.mxu0 %v1658
    %1777 = vmatpush1.msra.mxu0 %v1657
    %1778 = vmatprep.subr.mxu0 %v1662
    %1779 = vmatpush1.msra.mxu0 %v1661
    %1780 = vmatprep.subr.mxu0 %v1666
    %1781 = vmatpush1.msra.mxu0 %v1665
    %1782 = vmatprep.subr.mxu0 %v1670
    %1783 = vmatpush1.msra.mxu0 %v1669
    %1784 = vmatprep.subr.mxu0 %v1674
    %1785 = vmatpush1.msra.mxu0 %v1673
    %1786 = vmatprep.subr.mxu0 %v1678
    %1787 = vmatpush1.msra.mxu0 %v1677
    %1788 = vmatprep.subr.mxu0 %v1682
    %1789 = vmatpush1.msra.mxu0 %v1681
    %1790 = vmatprep.subr.mxu0 %v1686
    %1791 = vmatpush1.msra.mxu0 %v1685
    %1792 = vmatprep.subr.mxu0 %v1690
    %1793 = vmatpush1.msra.mxu0 %v1689
    %1794 = vmatprep.subr.mxu0 0.0
    %1795 = vmatpush1.msra.mxu0 0.0
    %1796 = vmatprep.subr.mxu0 0.0
    %1797 = vmatpush1.msra.mxu0 0.0
    %1798 = vmatprep.subr.mxu0 0.0
    %1799 = vmatpush1.msra.mxu0 0.0
    %1800 = vmatprep.subr.mxu0 0.0
    %1801 = vmatpush1.msra.mxu0 0.0
    %1802 = vmatprep.subr.mxu0 0.0
    %1803 = vmatpush1.msra.mxu0 0.0
    %1804 = vmatprep.subr.mxu0 0.0
    %1805 = vmatpush1.msra.mxu0 0.0
    %1806 = vmatprep.subr.mxu0 0.0
    %1807 = vmatpush1.msra.mxu0 0.0
    %1808 = vmatprep.subr.mxu0 0.0
    %1809 = vmatpush1.msra.mxu0 0.0
    %1810 = vmatprep.subr.mxu0 0.0
    %1811 = vmatpush1.msra.mxu0 0.0
    %1812 = vmatprep.subr.mxu0 0.0
    %1813 = vmatpush1.msra.mxu0 0.0
    %1814 = vmatprep.subr.mxu0 0.0
    %1815 = vmatpush1.msra.mxu0 0.0
    %1816 = vmatprep.subr.mxu0 0.0
    %1817 = vmatpush1.msra.mxu0 0.0
    %1818 = vmatprep.subr.mxu0 0.0
    %1819 = vmatpush1.msra.mxu0 0.0
    %1820 = vmatprep.subr.mxu0 0.0
    %1821 = vmatpush1.msra.mxu0 0.0
    %1822 = vmatprep.subr.mxu0 0.0
    %1823 = vmatpush1.msra.mxu0 0.0
    %1824 = vmatprep.subr.mxu0 0.0
    %1825 = vmatpush1.msra.mxu0 0.0
    %1826 = vmatprep.mubr.f32.mxu0 0.0
    %1827 = vmatmul.mubr.f32.gmra.mrb[0].mxu0 %v1618
    %v1828 = vpop.f32.mrb[0].mxu0
    %v1829 = vadd.f32 0.0, %v1828
    %v1830 = vpop.f32.mrb[0].mxu0
    %v1831 = vadd.f32 0.0, %v1830
    %1832 = vdwg.mxu0
    %v1833 = vadd.f32 %v1623, %v1758
    %v1834 = vadd.f32 %v1624, %v1760
    %v1835 = vadd.f32 %v1625, %v1829
    %v1836 = vadd.f32 %v1626, %v1831
    %v1837 = vxor.u32 %v1833, 2147483648
    %v1838 = vmul.f32 %v1837, 1.442695
    %v1839 = vpow.pop %v1838
    %v1840 = vadd.f32 %v1839, 1.0
    %v1841 = vrcp.pop %v1840
    %v1842 = vmul.f32 1.0, %v1841
    %v1843 = vxor.u32 %v1834, 2147483648
    %v1844 = vmul.f32 %v1843, 1.442695
    %v1845 = vpow.pop %v1844
    %v1846 = vadd.f32 %v1845, 1.0
    %v1847 = vrcp.pop %v1846
    %v1848 = vmul.f32 1.0, %v1847
    %v1849 = vtanh.pop %v1835
    %v1850 = vxor.u32 %v1836, 2147483648
    %v1851 = vmul.f32 %v1850, 1.442695
    %v1852 = vpow.pop %v1851
    %v1853 = vadd.f32 %v1852, 1.0
    %v1854 = vrcp.pop %v1853
    %v1855 = vmul.f32 1.0, %v1854
    %v1856 = vmul.f32 %v1848, %v1619
    %v1857 = vmul.f32 %v1842, %v1849
    %v1858 = vadd.f32 %v1856, %v1857
    %v1859 = vtanh.pop %v1858
    %v1860 = vmul.f32 %v1855, %v1859
    %1861 = vst [vmem:[#allocation4] sm:$0xff] %v1860
    %1862 = vst [vmem:[#allocation5] sm:$0xff] %v1858
    %s1863 = scalar_lea.vmem [#allocation3], 40
    %1864 = vst [vmem:[%s1863] sm:$0xff] %v1860
    %v1865 = vld [vmem:[#allocation4] sm:$0xff]
    %v1866 = vld [vmem:[#allocation5] sm:$0xff]
    %s1867 = smul.u32 6, 4
    %s1868 = smul.addr %s1867, 8
    %s1869 = scalar_lea.vmem [#allocation2], %s1868
    %v1870 = vld [vmem:[%s1869] sm:$0xff]
    %v1871 = vld [vmem:[%s1869 + $0x8] sm:$0xff]
    %v1872 = vld [vmem:[%s1869 + $0x10] sm:$0xff]
    %v1873 = vld [vmem:[%s1869 + $0x18] sm:$0xff]
    %v1874 = vld [vmem:[#allocation6] sm:$0xff]
    %v1875 = vld [vmem:[#allocation6 + $0x8] sm:$0xff]
    %v1876 = vld [vmem:[#allocation6 + $0x10] sm:$0xff]
    %v1877 = vld [vmem:[#allocation6 + $0x18] sm:$0xff]
    %v1878 = vld [vmem:[#allocation6 + $0x20] sm:$0xff]
    %v1879 = vld [vmem:[#allocation6 + $0x28] sm:$0xff]
    %v1880 = vld [vmem:[#allocation6 + $0x30] sm:$0xff]
    %v1881 = vld [vmem:[#allocation6 + $0x38] sm:$0xff]
    %v1882 = vld [vmem:[#allocation6 + $0x40] sm:$0xff]
    %v1883 = vld [vmem:[#allocation6 + $0x48] sm:$0xff]
    %v1884 = vld [vmem:[#allocation6 + $0x50] sm:$0xff]
    %v1885 = vld [vmem:[#allocation6 + $0x58] sm:$0xff]
    %v1886 = vld [vmem:[#allocation6 + $0x60] sm:$0xff]
    %v1887 = vld [vmem:[#allocation6 + $0x68] sm:$0xff]
    %v1888 = vld [vmem:[#allocation6 + $0x70] sm:$0xff]
    %v1889 = vld [vmem:[#allocation6 + $0x78] sm:$0xff]
    %v1890 = vld [vmem:[#allocation6 + $0x80] sm:$0xff]
    %v1891 = vld [vmem:[#allocation6 + $0x88] sm:$0xff]
    %v1892 = vld [vmem:[#allocation6 + $0x90] sm:$0xff]
    %v1893 = vld [vmem:[#allocation6 + $0x98] sm:$0xff]
    %v1894 = vld [vmem:[#allocation6 + $0xa0] sm:$0xff]
    %v1895 = vld [vmem:[#allocation6 + $0xa8] sm:$0xff]
    %v1896 = vld [vmem:[#allocation6 + $0xb0] sm:$0xff]
    %v1897 = vld [vmem:[#allocation6 + $0xb8] sm:$0xff]
    %v1898 = vld [vmem:[#allocation6 + $0xc0] sm:$0xff]
    %v1899 = vld [vmem:[#allocation6 + $0xc8] sm:$0xff]
    %v1900 = vld [vmem:[#allocation6 + $0xd0] sm:$0xff]
    %v1901 = vld [vmem:[#allocation6 + $0xd8] sm:$0xff]
    %v1902 = vld [vmem:[#allocation6 + $0xe0] sm:$0xff]
    %v1903 = vld [vmem:[#allocation6 + $0xe8] sm:$0xff]
    %v1904 = vld [vmem:[#allocation6 + $0xf0] sm:$0xff]
    %v1905 = vld [vmem:[#allocation6 + $0xf8] sm:$0xff]
    %v1906 = vld [vmem:[#allocation6 + $0x100] sm:$0xff]
    %v1907 = vld [vmem:[#allocation6 + $0x108] sm:$0xff]
    %v1908 = vld [vmem:[#allocation6 + $0x110] sm:$0xff]
    %v1909 = vld [vmem:[#allocation6 + $0x118] sm:$0xff]
    %v1910 = vld [vmem:[#allocation6 + $0x120] sm:$0xff]
    %v1911 = vld [vmem:[#allocation6 + $0x128] sm:$0xff]
    %v1912 = vld [vmem:[#allocation6 + $0x130] sm:$0xff]
    %v1913 = vld [vmem:[#allocation6 + $0x138] sm:$0xff]
    %v1914 = vld [vmem:[#allocation6 + $0x140] sm:$0xff]
    %v1915 = vld [vmem:[#allocation6 + $0x148] sm:$0xff]
    %v1916 = vld [vmem:[#allocation6 + $0x150] sm:$0xff]
    %v1917 = vld [vmem:[#allocation6 + $0x158] sm:$0xff]
    %v1918 = vld [vmem:[#allocation6 + $0x160] sm:$0xff]
    %v1919 = vld [vmem:[#allocation6 + $0x168] sm:$0xff]
    %v1920 = vld [vmem:[#allocation6 + $0x170] sm:$0xff]
    %v1921 = vld [vmem:[#allocation6 + $0x178] sm:$0xff]
    %v1922 = vld [vmem:[#allocation6 + $0x180] sm:$0xff]
    %v1923 = vld [vmem:[#allocation6 + $0x188] sm:$0xff]
    %v1924 = vld [vmem:[#allocation6 + $0x190] sm:$0xff]
    %v1925 = vld [vmem:[#allocation6 + $0x198] sm:$0xff]
    %v1926 = vld [vmem:[#allocation6 + $0x1a0] sm:$0xff]
    %v1927 = vld [vmem:[#allocation6 + $0x1a8] sm:$0xff]
    %v1928 = vld [vmem:[#allocation6 + $0x1b0] sm:$0xff]
    %v1929 = vld [vmem:[#allocation6 + $0x1b8] sm:$0xff]
    %v1930 = vld [vmem:[#allocation6 + $0x1c0] sm:$0xff]
    %v1931 = vld [vmem:[#allocation6 + $0x1c8] sm:$0xff]
    %v1932 = vld [vmem:[#allocation6 + $0x1d0] sm:$0xff]
    %v1933 = vld [vmem:[#allocation6 + $0x1d8] sm:$0xff]
    %v1934 = vld [vmem:[#allocation6 + $0x1e0] sm:$0xff]
    %v1935 = vld [vmem:[#allocation6 + $0x1e8] sm:$0xff]
    %v1936 = vld [vmem:[#allocation6 + $0x1f0] sm:$0xff]
    %v1937 = vld [vmem:[#allocation6 + $0x1f8] sm:$0xff]
    %1938 = vmatprep.subr.mxu0 %v1875
    %1939 = vmatpush1.msra.mxu0 %v1874
    %1940 = vmatprep.subr.mxu0 %v1879
    %1941 = vmatpush1.msra.mxu0 %v1878
    %1942 = vmatprep.subr.mxu0 %v1883
    %1943 = vmatpush1.msra.mxu0 %v1882
    %1944 = vmatprep.subr.mxu0 %v1887
    %1945 = vmatpush1.msra.mxu0 %v1886
    %1946 = vmatprep.subr.mxu0 %v1891
    %1947 = vmatpush1.msra.mxu0 %v1890
    %1948 = vmatprep.subr.mxu0 %v1895
    %1949 = vmatpush1.msra.mxu0 %v1894
    %1950 = vmatprep.subr.mxu0 %v1899
    %1951 = vmatpush1.msra.mxu0 %v1898
    %1952 = vmatprep.subr.mxu0 %v1903
    %1953 = vmatpush1.msra.mxu0 %v1902
    %1954 = vmatprep.subr.mxu0 %v1907
    %1955 = vmatpush1.msra.mxu0 %v1906
    %1956 = vmatprep.subr.mxu0 %v1911
    %1957 = vmatpush1.msra.mxu0 %v1910
    %1958 = vmatprep.subr.mxu0 %v1915
    %1959 = vmatpush1.msra.mxu0 %v1914
    %1960 = vmatprep.subr.mxu0 %v1919
    %1961 = vmatpush1.msra.mxu0 %v1918
    %1962 = vmatprep.subr.mxu0 %v1923
    %1963 = vmatpush1.msra.mxu0 %v1922
    %1964 = vmatprep.subr.mxu0 %v1927
    %1965 = vmatpush1.msra.mxu0 %v1926
    %1966 = vmatprep.subr.mxu0 %v1931
    %1967 = vmatpush1.msra.mxu0 %v1930
    %1968 = vmatprep.subr.mxu0 %v1935
    %1969 = vmatpush1.msra.mxu0 %v1934
    %1970 = vmatprep.subr.mxu0 0.0
    %1971 = vmatpush1.msra.mxu0 0.0
    %1972 = vmatprep.subr.mxu0 0.0
    %1973 = vmatpush1.msra.mxu0 0.0
    %1974 = vmatprep.subr.mxu0 0.0
    %1975 = vmatpush1.msra.mxu0 0.0
    %1976 = vmatprep.subr.mxu0 0.0
    %1977 = vmatpush1.msra.mxu0 0.0
    %1978 = vmatprep.subr.mxu0 0.0
    %1979 = vmatpush1.msra.mxu0 0.0
    %1980 = vmatprep.subr.mxu0 0.0
    %1981 = vmatpush1.msra.mxu0 0.0
    %1982 = vmatprep.subr.mxu0 0.0
    %1983 = vmatpush1.msra.mxu0 0.0
    %1984 = vmatprep.subr.mxu0 0.0
    %1985 = vmatpush1.msra.mxu0 0.0
    %1986 = vmatprep.subr.mxu0 0.0
    %1987 = vmatpush1.msra.mxu0 0.0
    %1988 = vmatprep.subr.mxu0 0.0
    %1989 = vmatpush1.msra.mxu0 0.0
    %1990 = vmatprep.subr.mxu0 0.0
    %1991 = vmatpush1.msra.mxu0 0.0
    %1992 = vmatprep.subr.mxu0 0.0
    %1993 = vmatpush1.msra.mxu0 0.0
    %1994 = vmatprep.subr.mxu0 0.0
    %1995 = vmatpush1.msra.mxu0 0.0
    %1996 = vmatprep.subr.mxu0 0.0
    %1997 = vmatpush1.msra.mxu0 0.0
    %1998 = vmatprep.subr.mxu0 0.0
    %1999 = vmatpush1.msra.mxu0 0.0
    %2000 = vmatprep.subr.mxu0 0.0
    %2001 = vmatpush1.msra.mxu0 0.0
    %2002 = vmatprep.mubr.f32.mxu0 0.0
    %2003 = vmatmul.mubr.f32.gmra.mrb[0].mxu0 %v1865
    %v2004 = vpop.f32.mrb[0].mxu0
    %v2005 = vadd.f32 0.0, %v2004
    %v2006 = vpop.f32.mrb[0].mxu0
    %v2007 = vadd.f32 0.0, %v2006
    %2008 = vdwg.mxu0
    %2009 = vmatprep.subr.mxu0 %v1877
    %2010 = vmatpush1.msra.mxu0 %v1876
    %2011 = vmatprep.subr.mxu0 %v1881
    %2012 = vmatpush1.msra.mxu0 %v1880
    %2013 = vmatprep.subr.mxu0 %v1885
    %2014 = vmatpush1.msra.mxu0 %v1884
    %2015 = vmatprep.subr.mxu0 %v1889
    %2016 = vmatpush1.msra.mxu0 %v1888
    %2017 = vmatprep.subr.mxu0 %v1893
    %2018 = vmatpush1.msra.mxu0 %v1892
    %2019 = vmatprep.subr.mxu0 %v1897
    %2020 = vmatpush1.msra.mxu0 %v1896
    %2021 = vmatprep.subr.mxu0 %v1901
    %2022 = vmatpush1.msra.mxu0 %v1900
    %2023 = vmatprep.subr.mxu0 %v1905
    %2024 = vmatpush1.msra.mxu0 %v1904
    %2025 = vmatprep.subr.mxu0 %v1909
    %2026 = vmatpush1.msra.mxu0 %v1908
    %2027 = vmatprep.subr.mxu0 %v1913
    %2028 = vmatpush1.msra.mxu0 %v1912
    %2029 = vmatprep.subr.mxu0 %v1917
    %2030 = vmatpush1.msra.mxu0 %v1916
    %2031 = vmatprep.subr.mxu0 %v1921
    %2032 = vmatpush1.msra.mxu0 %v1920
    %2033 = vmatprep.subr.mxu0 %v1925
    %2034 = vmatpush1.msra.mxu0 %v1924
    %2035 = vmatprep.subr.mxu0 %v1929
    %2036 = vmatpush1.msra.mxu0 %v1928
    %2037 = vmatprep.subr.mxu0 %v1933
    %2038 = vmatpush1.msra.mxu0 %v1932
    %2039 = vmatprep.subr.mxu0 %v1937
    %2040 = vmatpush1.msra.mxu0 %v1936
    %2041 = vmatprep.subr.mxu0 0.0
    %2042 = vmatpush1.msra.mxu0 0.0
    %2043 = vmatprep.subr.mxu0 0.0
    %2044 = vmatpush1.msra.mxu0 0.0
    %2045 = vmatprep.subr.mxu0 0.0
    %2046 = vmatpush1.msra.mxu0 0.0
    %2047 = vmatprep.subr.mxu0 0.0
    %2048 = vmatpush1.msra.mxu0 0.0
    %2049 = vmatprep.subr.mxu0 0.0
    %2050 = vmatpush1.msra.mxu0 0.0
    %2051 = vmatprep.subr.mxu0 0.0
    %2052 = vmatpush1.msra.mxu0 0.0
    %2053 = vmatprep.subr.mxu0 0.0
    %2054 = vmatpush1.msra.mxu0 0.0
    %2055 = vmatprep.subr.mxu0 0.0
    %2056 = vmatpush1.msra.mxu0 0.0
    %2057 = vmatprep.subr.mxu0 0.0
    %2058 = vmatpush1.msra.mxu0 0.0
    %2059 = vmatprep.subr.mxu0 0.0
    %2060 = vmatpush1.msra.mxu0 0.0
    %2061 = vmatprep.subr.mxu0 0.0
    %2062 = vmatpush1.msra.mxu0 0.0
    %2063 = vmatprep.subr.mxu0 0.0
    %2064 = vmatpush1.msra.mxu0 0.0
    %2065 = vmatprep.subr.mxu0 0.0
    %2066 = vmatpush1.msra.mxu0 0.0
    %2067 = vmatprep.subr.mxu0 0.0
    %2068 = vmatpush1.msra.mxu0 0.0
    %2069 = vmatprep.subr.mxu0 0.0
    %2070 = vmatpush1.msra.mxu0 0.0
    %2071 = vmatprep.subr.mxu0 0.0
    %2072 = vmatpush1.msra.mxu0 0.0
    %2073 = vmatprep.mubr.f32.mxu0 0.0
    %2074 = vmatmul.mubr.f32.gmra.mrb[0].mxu0 %v1865
    %v2075 = vpop.f32.mrb[0].mxu0
    %v2076 = vadd.f32 0.0, %v2075
    %v2077 = vpop.f32.mrb[0].mxu0
    %v2078 = vadd.f32 0.0, %v2077
    %2079 = vdwg.mxu0
    %v2080 = vadd.f32 %v1870, %v2005
    %v2081 = vadd.f32 %v1871, %v2007
    %v2082 = vadd.f32 %v1872, %v2076
    %v2083 = vadd.f32 %v1873, %v2078
    %v2084 = vxor.u32 %v2080, 2147483648
    %v2085 = vmul.f32 %v2084, 1.442695
    %v2086 = vpow.pop %v2085
    %v2087 = vadd.f32 %v2086, 1.0
    %v2088 = vrcp.pop %v2087
    %v2089 = vmul.f32 1.0, %v2088
    %v2090 = vxor.u32 %v2081, 2147483648
    %v2091 = vmul.f32 %v2090, 1.442695
    %v2092 = vpow.pop %v2091
    %v2093 = vadd.f32 %v2092, 1.0
    %v2094 = vrcp.pop %v2093
    %v2095 = vmul.f32 1.0, %v2094
    %v2096 = vtanh.pop %v2082
    %v2097 = vxor.u32 %v2083, 2147483648
    %v2098 = vmul.f32 %v2097, 1.442695
    %v2099 = vpow.pop %v2098
    %v2100 = vadd.f32 %v2099, 1.0
    %v2101 = vrcp.pop %v2100
    %v2102 = vmul.f32 1.0, %v2101
    %v2103 = vmul.f32 %v2095, %v1866
    %v2104 = vmul.f32 %v2089, %v2096
    %v2105 = vadd.f32 %v2103, %v2104
    %v2106 = vtanh.pop %v2105
    %v2107 = vmul.f32 %v2102, %v2106
    %2108 = vst [vmem:[#allocation4] sm:$0xff] %v2107
    %2109 = vst [vmem:[#allocation5] sm:$0xff] %v2105
    %s2110 = scalar_lea.vmem [#allocation3], 48
    %2111 = vst [vmem:[%s2110] sm:$0xff] %v2107
    %v2112 = vld [vmem:[#allocation4] sm:$0xff]
    %v2113 = vld [vmem:[#allocation5] sm:$0xff]
    %s2114 = smul.u32 7, 4
    %s2115 = smul.addr %s2114, 8
    %s2116 = scalar_lea.vmem [#allocation2], %s2115
    %v2117 = vld [vmem:[%s2116] sm:$0xff]
    %v2118 = vld [vmem:[%s2116 + $0x8] sm:$0xff]
    %v2119 = vld [vmem:[%s2116 + $0x10] sm:$0xff]
    %v2120 = vld [vmem:[%s2116 + $0x18] sm:$0xff]
    %v2121 = vld [vmem:[#allocation6] sm:$0xff]
    %v2122 = vld [vmem:[#allocation6 + $0x8] sm:$0xff]
    %v2123 = vld [vmem:[#allocation6 + $0x10] sm:$0xff]
    %v2124 = vld [vmem:[#allocation6 + $0x18] sm:$0xff]
    %v2125 = vld [vmem:[#allocation6 + $0x20] sm:$0xff]
    %v2126 = vld [vmem:[#allocation6 + $0x28] sm:$0xff]
    %v2127 = vld [vmem:[#allocation6 + $0x30] sm:$0xff]
    %v2128 = vld [vmem:[#allocation6 + $0x38] sm:$0xff]
    %v2129 = vld [vmem:[#allocation6 + $0x40] sm:$0xff]
    %v2130 = vld [vmem:[#allocation6 + $0x48] sm:$0xff]
    %v2131 = vld [vmem:[#allocation6 + $0x50] sm:$0xff]
    %v2132 = vld [vmem:[#allocation6 + $0x58] sm:$0xff]
    %v2133 = vld [vmem:[#allocation6 + $0x60] sm:$0xff]
    %v2134 = vld [vmem:[#allocation6 + $0x68] sm:$0xff]
    %v2135 = vld [vmem:[#allocation6 + $0x70] sm:$0xff]
    %v2136 = vld [vmem:[#allocation6 + $0x78] sm:$0xff]
    %v2137 = vld [vmem:[#allocation6 + $0x80] sm:$0xff]
    %v2138 = vld [vmem:[#allocation6 + $0x88] sm:$0xff]
    %v2139 = vld [vmem:[#allocation6 + $0x90] sm:$0xff]
    %v2140 = vld [vmem:[#allocation6 + $0x98] sm:$0xff]
    %v2141 = vld [vmem:[#allocation6 + $0xa0] sm:$0xff]
    %v2142 = vld [vmem:[#allocation6 + $0xa8] sm:$0xff]
    %v2143 = vld [vmem:[#allocation6 + $0xb0] sm:$0xff]
    %v2144 = vld [vmem:[#allocation6 + $0xb8] sm:$0xff]
    %v2145 = vld [vmem:[#allocation6 + $0xc0] sm:$0xff]
    %v2146 = vld [vmem:[#allocation6 + $0xc8] sm:$0xff]
    %v2147 = vld [vmem:[#allocation6 + $0xd0] sm:$0xff]
    %v2148 = vld [vmem:[#allocation6 + $0xd8] sm:$0xff]
    %v2149 = vld [vmem:[#allocation6 + $0xe0] sm:$0xff]
    %v2150 = vld [vmem:[#allocation6 + $0xe8] sm:$0xff]
    %v2151 = vld [vmem:[#allocation6 + $0xf0] sm:$0xff]
    %v2152 = vld [vmem:[#allocation6 + $0xf8] sm:$0xff]
    %v2153 = vld [vmem:[#allocation6 + $0x100] sm:$0xff]
    %v2154 = vld [vmem:[#allocation6 + $0x108] sm:$0xff]
    %v2155 = vld [vmem:[#allocation6 + $0x110] sm:$0xff]
    %v2156 = vld [vmem:[#allocation6 + $0x118] sm:$0xff]
    %v2157 = vld [vmem:[#allocation6 + $0x120] sm:$0xff]
    %v2158 = vld [vmem:[#allocation6 + $0x128] sm:$0xff]
    %v2159 = vld [vmem:[#allocation6 + $0x130] sm:$0xff]
    %v2160 = vld [vmem:[#allocation6 + $0x138] sm:$0xff]
    %v2161 = vld [vmem:[#allocation6 + $0x140] sm:$0xff]
    %v2162 = vld [vmem:[#allocation6 + $0x148] sm:$0xff]
    %v2163 = vld [vmem:[#allocation6 + $0x150] sm:$0xff]
    %v2164 = vld [vmem:[#allocation6 + $0x158] sm:$0xff]
    %v2165 = vld [vmem:[#allocation6 + $0x160] sm:$0xff]
    %v2166 = vld [vmem:[#allocation6 + $0x168] sm:$0xff]
    %v2167 = vld [vmem:[#allocation6 + $0x170] sm:$0xff]
    %v2168 = vld [vmem:[#allocation6 + $0x178] sm:$0xff]
    %v2169 = vld [vmem:[#allocation6 + $0x180] sm:$0xff]
    %v2170 = vld [vmem:[#allocation6 + $0x188] sm:$0xff]
    %v2171 = vld [vmem:[#allocation6 + $0x190] sm:$0xff]
    %v2172 = vld [vmem:[#allocation6 + $0x198] sm:$0xff]
    %v2173 = vld [vmem:[#allocation6 + $0x1a0] sm:$0xff]
    %v2174 = vld [vmem:[#allocation6 + $0x1a8] sm:$0xff]
    %v2175 = vld [vmem:[#allocation6 + $0x1b0] sm:$0xff]
    %v2176 = vld [vmem:[#allocation6 + $0x1b8] sm:$0xff]
    %v2177 = vld [vmem:[#allocation6 + $0x1c0] sm:$0xff]
    %v2178 = vld [vmem:[#allocation6 + $0x1c8] sm:$0xff]
    %v2179 = vld [vmem:[#allocation6 + $0x1d0] sm:$0xff]
    %v2180 = vld [vmem:[#allocation6 + $0x1d8] sm:$0xff]
    %v2181 = vld [vmem:[#allocation6 + $0x1e0] sm:$0xff]
    %v2182 = vld [vmem:[#allocation6 + $0x1e8] sm:$0xff]
    %v2183 = vld [vmem:[#allocation6 + $0x1f0] sm:$0xff]
    %v2184 = vld [vmem:[#allocation6 + $0x1f8] sm:$0xff]
    %2185 = vmatprep.subr.mxu0 %v2122
    %2186 = vmatpush1.msra.mxu0 %v2121
    %2187 = vmatprep.subr.mxu0 %v2126
    %2188 = vmatpush1.msra.mxu0 %v2125
    %2189 = vmatprep.subr.mxu0 %v2130
    %2190 = vmatpush1.msra.mxu0 %v2129
    %2191 = vmatprep.subr.mxu0 %v2134
    %2192 = vmatpush1.msra.mxu0 %v2133
    %2193 = vmatprep.subr.mxu0 %v2138
    %2194 = vmatpush1.msra.mxu0 %v2137
    %2195 = vmatprep.subr.mxu0 %v2142
    %2196 = vmatpush1.msra.mxu0 %v2141
    %2197 = vmatprep.subr.mxu0 %v2146
    %2198 = vmatpush1.msra.mxu0 %v2145
    %2199 = vmatprep.subr.mxu0 %v2150
    %2200 = vmatpush1.msra.mxu0 %v2149
    %2201 = vmatprep.subr.mxu0 %v2154
    %2202 = vmatpush1.msra.mxu0 %v2153
    %2203 = vmatprep.subr.mxu0 %v2158
    %2204 = vmatpush1.msra.mxu0 %v2157
    %2205 = vmatprep.subr.mxu0 %v2162
    %2206 = vmatpush1.msra.mxu0 %v2161
    %2207 = vmatprep.subr.mxu0 %v2166
    %2208 = vmatpush1.msra.mxu0 %v2165
    %2209 = vmatprep.subr.mxu0 %v2170
    %2210 = vmatpush1.msra.mxu0 %v2169
    %2211 = vmatprep.subr.mxu0 %v2174
    %2212 = vmatpush1.msra.mxu0 %v2173
    %2213 = vmatprep.subr.mxu0 %v2178
    %2214 = vmatpush1.msra.mxu0 %v2177
    %2215 = vmatprep.subr.mxu0 %v2182
    %2216 = vmatpush1.msra.mxu0 %v2181
    %2217 = vmatprep.subr.mxu0 0.0
    %2218 = vmatpush1.msra.mxu0 0.0
    %2219 = vmatprep.subr.mxu0 0.0
    %2220 = vmatpush1.msra.mxu0 0.0
    %2221 = vmatprep.subr.mxu0 0.0
    %2222 = vmatpush1.msra.mxu0 0.0
    %2223 = vmatprep.subr.mxu0 0.0
    %2224 = vmatpush1.msra.mxu0 0.0
    %2225 = vmatprep.subr.mxu0 0.0
    %2226 = vmatpush1.msra.mxu0 0.0
    %2227 = vmatprep.subr.mxu0 0.0
    %2228 = vmatpush1.msra.mxu0 0.0
    %2229 = vmatprep.subr.mxu0 0.0
    %2230 = vmatpush1.msra.mxu0 0.0
    %2231 = vmatprep.subr.mxu0 0.0
    %2232 = vmatpush1.msra.mxu0 0.0
    %2233 = vmatprep.subr.mxu0 0.0
    %2234 = vmatpush1.msra.mxu0 0.0
    %2235 = vmatprep.subr.mxu0 0.0
    %2236 = vmatpush1.msra.mxu0 0.0
    %2237 = vmatprep.subr.mxu0 0.0
    %2238 = vmatpush1.msra.mxu0 0.0
    %2239 = vmatprep.subr.mxu0 0.0
    %2240 = vmatpush1.msra.mxu0 0.0
    %2241 = vmatprep.subr.mxu0 0.0
    %2242 = vmatpush1.msra.mxu0 0.0
    %2243 = vmatprep.subr.mxu0 0.0
    %2244 = vmatpush1.msra.mxu0 0.0
    %2245 = vmatprep.subr.mxu0 0.0
    %2246 = vmatpush1.msra.mxu0 0.0
    %2247 = vmatprep.subr.mxu0 0.0
    %2248 = vmatpush1.msra.mxu0 0.0
    %2249 = vmatprep.mubr.f32.mxu0 0.0
    %2250 = vmatmul.mubr.f32.gmra.mrb[0].mxu0 %v2112
    %v2251 = vpop.f32.mrb[0].mxu0
    %v2252 = vadd.f32 0.0, %v2251
    %v2253 = vpop.f32.mrb[0].mxu0
    %v2254 = vadd.f32 0.0, %v2253
    %2255 = vdwg.mxu0
    %2256 = vmatprep.subr.mxu0 %v2124
    %2257 = vmatpush1.msra.mxu0 %v2123
    %2258 = vmatprep.subr.mxu0 %v2128
    %2259 = vmatpush1.msra.mxu0 %v2127
    %2260 = vmatprep.subr.mxu0 %v2132
    %2261 = vmatpush1.msra.mxu0 %v2131
    %2262 = vmatprep.subr.mxu0 %v2136
    %2263 = vmatpush1.msra.mxu0 %v2135
    %2264 = vmatprep.subr.mxu0 %v2140
    %2265 = vmatpush1.msra.mxu0 %v2139
    %2266 = vmatprep.subr.mxu0 %v2144
    %2267 = vmatpush1.msra.mxu0 %v2143
    %2268 = vmatprep.subr.mxu0 %v2148
    %2269 = vmatpush1.msra.mxu0 %v2147
    %2270 = vmatprep.subr.mxu0 %v2152
    %2271 = vmatpush1.msra.mxu0 %v2151
    %2272 = vmatprep.subr.mxu0 %v2156
    %2273 = vmatpush1.msra.mxu0 %v2155
    %2274 = vmatprep.subr.mxu0 %v2160
    %2275 = vmatpush1.msra.mxu0 %v2159
    %2276 = vmatprep.subr.mxu0 %v2164
    %2277 = vmatpush1.msra.mxu0 %v2163
    %2278 = vmatprep.subr.mxu0 %v2168
    %2279 = vmatpush1.msra.mxu0 %v2167
    %2280 = vmatprep.subr.mxu0 %v2172
    %2281 = vmatpush1.msra.mxu0 %v2171
    %2282 = vmatprep.subr.mxu0 %v2176
    %2283 = vmatpush1.msra.mxu0 %v2175
    %2284 = vmatprep.subr.mxu0 %v2180
    %2285 = vmatpush1.msra.mxu0 %v2179
    %2286 = vmatprep.subr.mxu0 %v2184
    %2287 = vmatpush1.msra.mxu0 %v2183
    %2288 = vmatprep.subr.mxu0 0.0
    %2289 = vmatpush1.msra.mxu0 0.0
    %2290 = vmatprep.subr.mxu0 0.0
    %2291 = vmatpush1.msra.mxu0 0.0
    %2292 = vmatprep.subr.mxu0 0.0
    %2293 = vmatpush1.msra.mxu0 0.0
    %2294 = vmatprep.subr.mxu0 0.0
    %2295 = vmatpush1.msra.mxu0 0.0
    %2296 = vmatprep.subr.mxu0 0.0
    %2297 = vmatpush1.msra.mxu0 0.0
    %2298 = vmatprep.subr.mxu0 0.0
    %2299 = vmatpush1.msra.mxu0 0.0
    %2300 = vmatprep.subr.mxu0 0.0
    %2301 = vmatpush1.msra.mxu0 0.0
    %2302 = vmatprep.subr.mxu0 0.0
    %2303 = vmatpush1.msra.mxu0 0.0
    %2304 = vmatprep.subr.mxu0 0.0
    %2305 = vmatpush1.msra.mxu0 0.0
    %2306 = vmatprep.subr.mxu0 0.0
    %2307 = vmatpush1.msra.mxu0 0.0
    %2308 = vmatprep.subr.mxu0 0.0
    %2309 = vmatpush1.msra.mxu0 0.0
    %2310 = vmatprep.subr.mxu0 0.0
    %2311 = vmatpush1.msra.mxu0 0.0
    %2312 = vmatprep.subr.mxu0 0.0
    %2313 = vmatpush1.msra.mxu0 0.0
    %2314 = vmatprep.subr.mxu0 0.0
    %2315 = vmatpush1.msra.mxu0 0.0
    %2316 = vmatprep.subr.mxu0 0.0
    %2317 = vmatpush1.msra.mxu0 0.0
    %2318 = vmatprep.subr.mxu0 0.0
    %2319 = vmatpush1.msra.mxu0 0.0
    %2320 = vmatprep.mubr.f32.mxu0 0.0
    %2321 = vmatmul.mubr.f32.gmra.mrb[0].mxu0 %v2112
    %v2322 = vpop.f32.mrb[0].mxu0
    %v2323 = vadd.f32 0.0, %v2322
    %v2324 = vpop.f32.mrb[0].mxu0
    %v2325 = vadd.f32 0.0, %v2324
    %2326 = vdwg.mxu0
    %v2327 = vadd.f32 %v2117, %v2252
    %v2328 = vadd.f32 %v2118, %v2254
    %v2329 = vadd.f32 %v2119, %v2323
    %v2330 = vadd.f32 %v2120, %v2325
    %v2331 = vxor.u32 %v2327, 2147483648
    %v2332 = vmul.f32 %v2331, 1.442695
    %v2333 = vpow.pop %v2332
    %v2334 = vadd.f32 %v2333, 1.0
    %v2335 = vrcp.pop %v2334
    %v2336 = vmul.f32 1.0, %v2335
    %v2337 = vxor.u32 %v2328, 2147483648
    %v2338 = vmul.f32 %v2337, 1.442695
    %v2339 = vpow.pop %v2338
    %v2340 = vadd.f32 %v2339, 1.0
    %v2341 = vrcp.pop %v2340
    %v2342 = vmul.f32 1.0, %v2341
    %v2343 = vtanh.pop %v2329
    %v2344 = vxor.u32 %v2330, 2147483648
    %v2345 = vmul.f32 %v2344, 1.442695
    %v2346 = vpow.pop %v2345
    %v2347 = vadd.f32 %v2346, 1.0
    %v2348 = vrcp.pop %v2347
    %v2349 = vmul.f32 1.0, %v2348
    %v2350 = vmul.f32 %v2342, %v2113
    %v2351 = vmul.f32 %v2336, %v2343
    %v2352 = vadd.f32 %v2350, %v2351
    %v2353 = vtanh.pop %v2352
    %v2354 = vmul.f32 %v2349, %v2353
    %2355 = vst [vmem:[#allocation4] sm:$0xff] %v2354
    %2356 = vst [vmem:[#allocation5] sm:$0xff] %v2352
    %s2357 = scalar_lea.vmem [#allocation3], 56
    %2358 = vst [vmem:[%s2357] sm:$0xff] %v2354
    %v2359 = vld [vmem:[#allocation3] sm:$0xff]
    %v2360 = vld [vmem:[#allocation3 + $0x8] sm:$0xff]
    %v2361 = vld [vmem:[#allocation3 + $0x10] sm:$0xff]
    %v2362 = vld [vmem:[#allocation3 + $0x18] sm:$0xff]
    %v2363 = vld [vmem:[#allocation3 + $0x20] sm:$0xff]
    %v2364 = vld [vmem:[#allocation3 + $0x28] sm:$0xff]
    %v2365 = vld [vmem:[#allocation3 + $0x30] sm:$0xff]
    %v2366 = vld [vmem:[#allocation3 + $0x38] sm:$0xff]
    %v2367 = vld [vmem:[#allocation9] sm:$0xff]
    %v2368 = vld [vmem:[#allocation9 + $0x8] sm:$0xff]
    %v2369 = vld [vmem:[#allocation9 + $0x10] sm:$0xff]
    %v2370 = vld [vmem:[#allocation9 + $0x18] sm:$0xff]
    %v2371 = vld [vmem:[#allocation9 + $0x20] sm:$0xff]
    %v2372 = vld [vmem:[#allocation9 + $0x28] sm:$0xff]
    %v2373 = vld [vmem:[#allocation9 + $0x30] sm:$0xff]
    %v2374 = vld [vmem:[#allocation9 + $0x38] sm:$0xff]
    %v2375 = vld [vmem:[#allocation9 + $0x40] sm:$0xff]
    %v2376 = vld [vmem:[#allocation9 + $0x48] sm:$0xff]
    %v2377 = vld [vmem:[#allocation9 + $0x50] sm:$0xff]
    %v2378 = vld [vmem:[#allocation9 + $0x58] sm:$0xff]
    %v2379 = vld [vmem:[#allocation9 + $0x60] sm:$0xff]
    %v2380 = vld [vmem:[#allocation9 + $0x68] sm:$0xff]
    %v2381 = vld [vmem:[#allocation9 + $0x70] sm:$0xff]
    %v2382 = vld [vmem:[#allocation9 + $0x78] sm:$0xff]
    %v2383 = vld [vmem:[%s5] sm:$0x1]
    %v2385 = vlaneseq
    %v2386 = vshrl.u32 %v2385, 7
    %v2387 = vsub.s32 0, %v2386
    %v2388 = vrot.slane %v2383, %v2387
    %2390 = vmatprep.subr.mxu0 0.0
    %2391 = vmatpush1.msra.mxu0 %v2367
    %2392 = vmatprep.subr.mxu0 0.0
    %2393 = vmatpush1.msra.mxu0 %v2368
    %2394 = vmatprep.subr.mxu0 0.0
    %2395 = vmatpush1.msra.mxu0 %v2369
    %2396 = vmatprep.subr.mxu0 0.0
    %2397 = vmatpush1.msra.mxu0 %v2370
    %2398 = vmatprep.subr.mxu0 0.0
    %2399 = vmatpush1.msra.mxu0 %v2371
    %2400 = vmatprep.subr.mxu0 0.0
    %2401 = vmatpush1.msra.mxu0 %v2372
    %2402 = vmatprep.subr.mxu0 0.0
    %2403 = vmatpush1.msra.mxu0 %v2373
    %2404 = vmatprep.subr.mxu0 0.0
    %2405 = vmatpush1.msra.mxu0 %v2374
    %2406 = vmatprep.subr.mxu0 0.0
    %2407 = vmatpush1.msra.mxu0 %v2375
    %2408 = vmatprep.subr.mxu0 0.0
    %2409 = vmatpush1.msra.mxu0 %v2376
    %2410 = vmatprep.subr.mxu0 0.0
    %2411 = vmatpush1.msra.mxu0 %v2377
    %2412 = vmatprep.subr.mxu0 0.0
    %2413 = vmatpush1.msra.mxu0 %v2378
    %2414 = vmatprep.subr.mxu0 0.0
    %2415 = vmatpush1.msra.mxu0 %v2379
    %2416 = vmatprep.subr.mxu0 0.0
    %2417 = vmatpush1.msra.mxu0 %v2380
    %2418 = vmatprep.subr.mxu0 0.0
    %2419 = vmatpush1.msra.mxu0 %v2381
    %2420 = vmatprep.subr.mxu0 0.0
    %2421 = vmatpush1.msra.mxu0 %v2382
    %2422 = vmatprep.subr.mxu0 0.0
    %2423 = vmatpush1.msra.mxu0 0.0
    %2424 = vmatprep.subr.mxu0 0.0
    %2425 = vmatpush1.msra.mxu0 0.0
    %2426 = vmatprep.subr.mxu0 0.0
    %2427 = vmatpush1.msra.mxu0 0.0
    %2428 = vmatprep.subr.mxu0 0.0
    %2429 = vmatpush1.msra.mxu0 0.0
    %2430 = vmatprep.subr.mxu0 0.0
    %2431 = vmatpush1.msra.mxu0 0.0
    %2432 = vmatprep.subr.mxu0 0.0
    %2433 = vmatpush1.msra.mxu0 0.0
    %2434 = vmatprep.subr.mxu0 0.0
    %2435 = vmatpush1.msra.mxu0 0.0
    %2436 = vmatprep.subr.mxu0 0.0
    %2437 = vmatpush1.msra.mxu0 0.0
    %2438 = vmatprep.subr.mxu0 0.0
    %2439 = vmatpush1.msra.mxu0 0.0
    %2440 = vmatprep.subr.mxu0 0.0
    %2441 = vmatpush1.msra.mxu0 0.0
    %2442 = vmatprep.subr.mxu0 0.0
    %2443 = vmatpush1.msra.mxu0 0.0
    %2444 = vmatprep.subr.mxu0 0.0
    %2445 = vmatpush1.msra.mxu0 0.0
    %2446 = vmatprep.subr.mxu0 0.0
    %2447 = vmatpush1.msra.mxu0 0.0
    %2448 = vmatprep.subr.mxu0 0.0
    %2449 = vmatpush1.msra.mxu0 0.0
    %2450 = vmatprep.subr.mxu0 0.0
    %2451 = vmatpush1.msra.mxu0 0.0
    %2452 = vmatprep.subr.mxu0 0.0
    %2453 = vmatpush1.msra.mxu0 0.0
    %2454 = vmatprep.mubr.f32.mxu0 0.0
    %2455 = vmatmul.mubr.f32.gmra.mrb[0].mxu0 %v2359
    %v2456 = vpop.f32.mrb[0].mxu0
    %v2457 = vadd.f32 %v2388, %v2456
    %v2458 = vpop.f32.mrb[0].mxu0
    %2459 = vmatprep.mubr.f32.mxu0 0.0
    %2460 = vmatmul.mubr.f32.gmra.mrb[0].mxu0 %v2360
    %v2461 = vpop.f32.mrb[0].mxu0
    %v2462 = vadd.f32 %v2388, %v2461
    %v2463 = vpop.f32.mrb[0].mxu0
    %2464 = vmatprep.mubr.f32.mxu0 0.0
    %2465 = vmatmul.mubr.f32.gmra.mrb[0].mxu0 %v2361
    %v2466 = vpop.f32.mrb[0].mxu0
    %v2467 = vadd.f32 %v2388, %v2466
    %v2468 = vpop.f32.mrb[0].mxu0
    %2469 = vmatprep.mubr.f32.mxu0 0.0
    %2470 = vmatmul.mubr.f32.gmra.mrb[0].mxu0 %v2362
    %v2471 = vpop.f32.mrb[0].mxu0
    %v2472 = vadd.f32 %v2388, %v2471
    %v2473 = vpop.f32.mrb[0].mxu0
    %2474 = vmatprep.mubr.f32.mxu0 0.0
    %2475 = vmatmul.mubr.f32.gmra.mrb[0].mxu0 %v2363
    %v2476 = vpop.f32.mrb[0].mxu0
    %v2477 = vadd.f32 %v2388, %v2476
    %v2478 = vpop.f32.mrb[0].mxu0
    %2479 = vmatprep.mubr.f32.mxu0 0.0
    %2480 = vmatmul.mubr.f32.gmra.mrb[0].mxu0 %v2364
    %v2481 = vpop.f32.mrb[0].mxu0
    %v2482 = vadd.f32 %v2388, %v2481
    %v2483 = vpop.f32.mrb[0].mxu0
    %2484 = vmatprep.mubr.f32.mxu0 0.0
    %2485 = vmatmul.mubr.f32.gmra.mrb[0].mxu0 %v2365
    %v2486 = vpop.f32.mrb[0].mxu0
    %v2487 = vadd.f32 %v2388, %v2486
    %v2488 = vpop.f32.mrb[0].mxu0
    %2489 = vmatprep.mubr.f32.mxu0 0.0
    %2490 = vmatmul.mubr.f32.gmra.mrb[0].mxu0 %v2366
    %v2491 = vpop.f32.mrb[0].mxu0
    %v2492 = vadd.f32 %v2388, %v2491
    %v2493 = vpop.f32.mrb[0].mxu0
    %2494 = vdwg.mxu0
    %2495 = vst [vmem:[#allocation11] sm:$0xff] %v2457
    %2496 = vst [vmem:[#allocation11 + $0x8] sm:$0xff] %v2462
    %2497 = vst [vmem:[#allocation11 + $0x10] sm:$0xff] %v2467
    %2498 = vst [vmem:[#allocation11 + $0x18] sm:$0xff] %v2472
    %2499 = vst [vmem:[#allocation11 + $0x20] sm:$0xff] %v2477
    %2500 = vst [vmem:[#allocation11 + $0x28] sm:$0xff] %v2482
    %2501 = vst [vmem:[#allocation11 + $0x30] sm:$0xff] %v2487
    %2502 = vst [vmem:[#allocation11 + $0x38] sm:$0xff] %v2492
    // Predicated region
    $region34: #{tpu_custom_call.1} parent=1 // pred_check
      _
    $region35: #{tpu_custom_call.1} parent=1 // pred_check_branch
      %2504 = sbr.rel (0) target = $region37
    $region36: #{tpu_custom_call.1} parent=1 // pred_region
      %s2506 = ssub.s32 1024, 1024
      %2507 = vsyncadd [#allocation8], %s2506
      %s2508 = sshll.u32 [#allocation11], 4
      %s2509 = int_to_ptr.vmem [resolvable:$true] %s2508
      %2514 = dma.vmem_to_hbm [thread:$0]  %s2509, 1024, %s6, [#allocation8], 128, 128, 8
    $region37: #{tpu_custom_call.1} parent=1 // pred_fallthru
      _
    // Predicated region
    $region38: #{tpu_custom_call.1} parent=1 // pred_check
      _
    $region39: #{tpu_custom_call.1} parent=1 // pred_check_branch
      %2516 = sbr.rel (0) target = $region41
    $region40: #{tpu_custom_call.1} parent=1 // pred_region
      %2517 = dma.done [#allocation8], 1024
    $region41: #{tpu_custom_call.1} parent=1 // pred_fallthru
      _
    %2518 = vsyncpa [#allocation7], 1
    %2519 = vsyncpa [#allocation10], 1
    %2520 = vsyncpa [#allocation8], 1

</llo_original>
